<compile_context>
chip_gen: v7x
topology: tpu7x:2x2x1
jax: 0.10.0
libtpu: 0.0.40
codegen_flags: <defaults>
</compile_context>

<pallas_src>
import functools
import math

import jax
import jax.numpy as jnp
import numpy as np
from jax.experimental import pallas as pl
from jax.experimental.pallas import tpu as pltpu

LEAKY_SLOPE = 0.2   # nn.LeakyReLU(0.2)
EPS_IN = 1e-5       # nn.InstanceNorm2d default eps (affine=False, biased variance)


# ------------------------------ fused Pallas kernel ------------------------------

def _res_nn_up_kernel(x_ref, rdup_ref, cdup_ref, csum_ref,
                      w1_ref, b1_ref, w2_ref, b2_ref, w3_ref, b3_ref,
                      wsc_ref, bsc_ref,
                      o_ref,
                      pad_a_ref, pad_b_ref, pad_c_ref,
                      *, h_up, w_up):
    """Whole res_NN_up forward for ONE sample, fully VMEM-resident.

    Row-packed activation layout: (rows, W*C) with W*C on the lane axis.
      x_ref    : (h_in, w_in*cin) f32      original input rows
      rdup_ref : (h_up, h_in) f32          0/1 row duplication (NN x2 along H)
      cdup_ref : (w_in*cin, w_up*cin) f32  0/1 column duplication (NN x2 along W)
      csum_ref : (w_up*cout, w_up*cout) f32  0/1 channel collapse+broadcast matrix
      w{1,2,3} : (3, W*Ci, W*Co) bf16      banded 3x3 weights (dy-major, dx & col-pad folded)
      b*       : (1, W*Co) f32             bias rows
      wsc      : (W*cin, W*cout) bf16      banded 1x1 shortcut weight
      o_ref    : (h_up, w_up*cout) f32     output rows (lane-dense)
      pad_*    : (h_up+2, W*C) f32         row-padded images for the three 3x3 convs
    """
    f32 = jnp.float32
    bf16 = jnp.bfloat16
    H = h_up

    def put_row_padded(pad_ref, img):
        width = pad_ref.shape[-1]
        zrow = jnp.zeros((1, width), f32)
        pad_ref[0:1, :] = zrow                 # top zero row (3x3 row padding)
        pad_ref[H + 1:H + 2, :] = zrow         # bottom zero row
        pad_ref[1:H + 1, :] = img

    def banded_conv3x3(pad_ref, w_ref, b_ref):
        # One MXU dot per kernel row dy; K = W*Cin >= 128, f32 accumulation, bias once.
        acc = jnp.dot(pad_ref[0:H, :].astype(bf16), w_ref[0],
                      preferred_element_type=f32)
        acc = acc + jnp.dot(pad_ref[1:H + 1, :].astype(bf16), w_ref[1],
                            preferred_element_type=f32)
        acc = acc + jnp.dot(pad_ref[2:H + 2, :].astype(bf16), w_ref[2],
                            preferred_element_type=f32)
        return acc + b_ref[...]

    def instance_norm(t):
        # Single-pass sum / sum-of-squares stats; csum collapses the interleaved
        # (w*cout + c) lane axis per channel and broadcasts the result back to all lanes.
        inv_hw = 1.0 / (H * w_up)
        s_row = jnp.sum(t, axis=0, keepdims=True)          # (1, W*cout)
        q_row = jnp.sum(t * t, axis=0, keepdims=True)      # (1, W*cout)
        mean = jnp.dot(s_row, csum_ref[...], preferred_element_type=f32) * inv_hw
        msq = jnp.dot(q_row, csum_ref[...], preferred_element_type=f32) * inv_hw
        var = jnp.maximum(msq - mean * mean, 0.0)
        return (t - mean) * jax.lax.rsqrt(var + EPS_IN)

    def leaky(v):
        return jnp.where(v >= 0, v, LEAKY_SLOPE * v)

    # Nearest-neighbour x2 upsample, fused in-kernel (exact: 0/1 f32 matmuls).
    x = x_ref[...]
    x_wide = jnp.dot(x, cdup_ref[...], preferred_element_type=f32)       # (h_in, W*cin)
    x_up = jnp.dot(rdup_ref[...], x_wide, preferred_element_type=f32)    # (H,    W*cin)

    # self.up[1]: Conv2d(in_ch, in_ch, 3, padding=1)
    put_row_padded(pad_a_ref, x_up)
    x0 = banded_conv3x3(pad_a_ref, w1_ref, b1_ref)                       # (H, W*cin)

    # self.conv[0..2]: Conv2d(in_ch, out_ch, 3) -> InstanceNorm2d -> LeakyReLU(0.2)
    put_row_padded(pad_b_ref, x0)
    t = banded_conv3x3(pad_b_ref, w2_ref, b2_ref)                        # (H, W*cout)
    t = leaky(instance_norm(t))

    # self.conv[3..4]: Conv2d(out_ch, out_ch, 3) -> InstanceNorm2d
    put_row_padded(pad_c_ref, t)
    y = instance_norm(banded_conv3x3(pad_c_ref, w3_ref, b3_ref))         # (H, W*cout)

    # self.conv_input (1x1 shortcut on x0) + residual add + last LeakyReLU(0.2)
    sc = jnp.dot(x0.astype(bf16), wsc_ref[...],
                 preferred_element_type=f32) + bsc_ref[...]
    o_ref[...] = leaky(y + sc)


# ------------------------- weight packing (host side, once) -------------------------

def _banded_3x3(w_hwio, width):
    """(3,3,Ci,Co) HWIO -> (3, width*Ci, width*Co): dx taps and column zero-pad folded in."""
    kh, kw, ci, co = w_hwio.shape
    m = np.zeros((kh, width * ci, width * co), np.float32)
    for dy in range(kh):
        for dx in range(kw):
            blk = w_hwio[dy, dx]                           # (ci, co)
            for wo in range(width):
                wi = wo + dx - 1
                if 0 <= wi < width:
                    m[dy, wi * ci:(wi + 1) * ci, wo * co:(wo + 1) * co] = blk
    return m


def _banded_1x1(w_io, width):
    ci, co = w_io.shape
    m = np.zeros((width * ci, width * co), np.float32)
    for w in range(width):
        m[w * ci:(w + 1) * ci, w * co:(w + 1) * co] = w_io
    return m


def _row_dup(h_in):
    r = np.zeros((2 * h_in, h_in), np.float32)
    r[np.arange(2 * h_in), np.arange(2 * h_in) // 2] = 1.0
    return r


def _col_dup(w_in, ci):
    d = np.zeros((w_in * ci, 2 * w_in * ci), np.float32)
    for wi in range(w_in):
        for k in range(2):
            for c in range(ci):
                d[wi * ci + c, (2 * wi + k) * ci + c] = 1.0
    return d


def _chan_sum(width, co):
    """(width*co, width*co) 0/1 matrix: out lane l = sum over lanes with channel l % co."""
    lanes = np.arange(width * co)
    return (lanes[:, None] % co == lanes[None, :] % co).astype(np.float32)


def _init_conv_hwio(key, ksize, cin, cout):
    # Matches torch Conv2d default init (uniform with fan_in bound).
    fan_in = cin * ksize * ksize
    bound = 1.0 / math.sqrt(fan_in)
    kw_, kb_ = jax.random.split(key)
    w = jax.random.uniform(kw_, (ksize, ksize, cin, cout), jnp.float32, -bound, bound)
    b = jax.random.uniform(kb_, (cout,), jnp.float32, -bound, bound)
    return np.asarray(w), np.asarray(b)


def init_res_nn_up(key, in_ch, out_ch):
    ks = jax.random.split(key, 4)
    p = {"in_ch": in_ch, "out_ch": out_ch}
    p["up_w"], p["up_b"] = _init_conv_hwio(ks[0], 3, in_ch, in_ch)     # self.up[1]
    p["c1_w"], p["c1_b"] = _init_conv_hwio(ks[1], 3, in_ch, out_ch)    # self.conv[0]
    p["c2_w"], p["c2_b"] = _init_conv_hwio(ks[2], 3, out_ch, out_ch)   # self.conv[3]
    p["sc_w"], p["sc_b"] = _init_conv_hwio(ks[3], 1, in_ch, out_ch)    # self.conv_input
    return p


def pack_res_nn_up(params, h_in, w_in):
    """Precompute all kernel operands for a given input spatial size (once, outside jit)."""
    cin, cout = params["in_ch"], params["out_ch"]
    wu = 2 * w_in
    return {
        "cin": cin, "cout": cout, "h_in": h_in, "w_in": w_in,
        "rdup": jnp.asarray(_row_dup(h_in)),
        "cdup": jnp.asarray(_col_dup(w_in, cin)),
        "csum": jnp.asarray(_chan_sum(wu, cout)),
        "w1": jnp.asarray(_banded_3x3(params["up_w"], wu), jnp.bfloat16),
        "b1": jnp.asarray(np.tile(params["up_b"], wu)[None, :]),
        "w2": jnp.asarray(_banded_3x3(params["c1_w"], wu), jnp.bfloat16),
        "b2": jnp.asarray(np.tile(params["c1_b"], wu)[None, :]),
        "w3": jnp.asarray(_banded_3x3(params["c2_w"], wu), jnp.bfloat16),
        "b3": jnp.asarray(np.tile(params["c2_b"], wu)[None, :]),
        "wsc": jnp.asarray(_banded_1x1(params["sc_w"][0, 0], wu), jnp.bfloat16),
        "bsc": jnp.asarray(np.tile(params["sc_b"], wu)[None, :]),
    }


# ------------------------------------ forward ------------------------------------

def res_nn_up_forward(x_nhwc, pk):
    n, h_in, w_in, cin = x_nhwc.shape
    cout = pk["cout"]
    hu, wu = 2 * h_in, 2 * w_in
    wci, wco = wu * cin, wu * cout

    x_rows = x_nhwc.reshape(n, h_in, w_in * cin)      # free view: NHWC row-packing

    kernel = functools.partial(_res_nn_up_kernel, h_up=hu, w_up=wu)
    const2 = lambda b: (0, 0)
    const3 = lambda b: (0, 0, 0)

    out_rows = pl.pallas_call(
        kernel,
        out_shape=jax.ShapeDtypeStruct((n, hu, wco), jnp.float32),
        grid_spec=pltpu.PrefetchScalarGridSpec(
            num_scalar_prefetch=0,
            grid=(n,),
            in_specs=[
                pl.BlockSpec((None, h_in, w_in * cin), lambda b: (b, 0, 0)),
                pl.BlockSpec((hu, h_in), const2),
                pl.BlockSpec((w_in * cin, wci), const2),
                pl.BlockSpec((wco, wco), const2),
                pl.BlockSpec((3, wci, wci), const3),
                pl.BlockSpec((1, wci), const2),
                pl.BlockSpec((3, wci, wco), const3),
                pl.BlockSpec((1, wco), const2),
                pl.BlockSpec((3, wco, wco), const3),
                pl.BlockSpec((1, wco), const2),
                pl.BlockSpec((wci, wco), const2),
                pl.BlockSpec((1, wco), const2),
            ],
            out_specs=pl.BlockSpec((None, hu, wco), lambda b: (b, 0, 0)),
            scratch_shapes=[
                pltpu.VMEM((hu + 2, wci), jnp.float32),   # row-padded upsampled x
                pltpu.VMEM((hu + 2, wci), jnp.float32),   # row-padded x0
                pltpu.VMEM((hu + 2, wco), jnp.float32),   # row-padded post-IN activation
            ],
        ),
        compiler_params=pltpu.CompilerParams(
            # One sample per TensorCore on v7x megacore; ~2-3 MiB VMEM use keeps us far
            # below the scoped defaults on every generation, so no vmem_limit override.
            dimension_semantics=("parallel",),
        ),
    )(x_rows, pk["rdup"], pk["cdup"], pk["csum"],
      pk["w1"], pk["b1"], pk["w2"], pk["b2"], pk["w3"], pk["b3"],
      pk["wsc"], pk["bsc"])

    return out_rows.reshape(n, hu, wu, cout)          # NHWC, free view


# -------------------------------------- main --------------------------------------

if __name__ == "__main__":
    key = jax.random.PRNGKey(0)
    k_param, k_x = jax.random.split(key)

    in_ch, out_ch, h_in, w_in = 4, 8, 16, 16
    params = init_res_nn_up(k_param, in_ch, out_ch)
    packed = pack_res_nn_up(params, h_in, w_in)

    # PyTorch-style NCHW input at small shapes.
    x_nchw = jax.random.normal(k_x, (2, in_ch, h_in, w_in), jnp.float32)
    x_nhwc = jnp.transpose(x_nchw, (0, 2, 3, 1))

    fwd = jax.jit(functools.partial(res_nn_up_forward, pk=packed))
    out_nhwc = fwd(x_nhwc)
    out_nchw = jnp.transpose(out_nhwc, (0, 3, 1, 2))   # (2, 8, 32, 32), torch layout
    jax.block_until_ready(out_nchw)
    print("KERNEL_OK")
</pallas_src>

<mosaic_0001>
module attributes {stable_mosaic.version = 11 : i64} {
  func.func @_res_nn_up_kernel(%arg0: i32, %arg1: memref<1x16x64xf32, #tpu.memory_space<vmem>>, %arg2: memref<32x16xf32, #tpu.memory_space<vmem>>, %arg3: memref<64x128xf32, #tpu.memory_space<vmem>>, %arg4: memref<256x256xf32, #tpu.memory_space<vmem>>, %arg5: memref<3x128x128xbf16, #tpu.memory_space<vmem>>, %arg6: memref<1x128xf32, #tpu.memory_space<vmem>>, %arg7: memref<3x128x256xbf16, #tpu.memory_space<vmem>>, %arg8: memref<1x256xf32, #tpu.memory_space<vmem>>, %arg9: memref<3x256x256xbf16, #tpu.memory_space<vmem>>, %arg10: memref<1x256xf32, #tpu.memory_space<vmem>>, %arg11: memref<128x256xbf16, #tpu.memory_space<vmem>>, %arg12: memref<1x256xf32, #tpu.memory_space<vmem>>, %arg13: memref<1x32x256xf32, #tpu.memory_space<vmem>>, %arg14: memref<34x128xf32, #tpu.memory_space<vmem>>, %arg15: memref<34x128xf32, #tpu.memory_space<vmem>>, %arg16: memref<34x256xf32, #tpu.memory_space<vmem>>) attributes {dimension_semantics = [#tpu.dimension_semantics<parallel>], iteration_bounds = array<i64: 2>, scalar_prefetch = 0 : i64, scratch_operands = 3 : i64, tpu.core_type = #tpu.core_type<tc>, window_params = [{transform_indices = @transform_0, window_bounds = array<i64: 1, 16, 64>}, {pipeline_mode = #tpu.pipeline_mode<synchronous>, transform_indices = @transform_1, window_bounds = array<i64: 32, 16>}, {pipeline_mode = #tpu.pipeline_mode<synchronous>, transform_indices = @transform_2, window_bounds = array<i64: 64, 128>}, {pipeline_mode = #tpu.pipeline_mode<synchronous>, transform_indices = @transform_3, window_bounds = array<i64: 256, 256>}, {pipeline_mode = #tpu.pipeline_mode<synchronous>, transform_indices = @transform_4, window_bounds = array<i64: 3, 128, 128>}, {pipeline_mode = #tpu.pipeline_mode<synchronous>, transform_indices = @transform_5, window_bounds = array<i64: 1, 128>}, {pipeline_mode = #tpu.pipeline_mode<synchronous>, transform_indices = @transform_6, window_bounds = array<i64: 3, 128, 256>}, {pipeline_mode = #tpu.pipeline_mode<synchronous>, transform_indices = @transform_7, window_bounds = array<i64: 1, 256>}, {pipeline_mode = #tpu.pipeline_mode<synchronous>, transform_indices = @transform_8, window_bounds = array<i64: 3, 256, 256>}, {pipeline_mode = #tpu.pipeline_mode<synchronous>, transform_indices = @transform_9, window_bounds = array<i64: 1, 256>}, {pipeline_mode = #tpu.pipeline_mode<synchronous>, transform_indices = @transform_10, window_bounds = array<i64: 128, 256>}, {pipeline_mode = #tpu.pipeline_mode<synchronous>, transform_indices = @transform_11, window_bounds = array<i64: 1, 256>}, {transform_indices = @transform_12, window_bounds = array<i64: 1, 32, 256>}]} {
    %c0 = arith.constant 0 : index
    %c0_0 = arith.constant 0 : index
    %c0_1 = arith.constant 0 : index
    %0 = vector.load %arg1[%c0, %c0_0, %c0_1] : memref<1x16x64xf32, #tpu.memory_space<vmem>>, vector<1x16x64xf32>
    %1 = vector.shape_cast %0 : vector<1x16x64xf32> to vector<16x64xf32>
    %c0_2 = arith.constant 0 : index
    %c0_3 = arith.constant 0 : index
    %2 = vector.load %arg3[%c0_2, %c0_3] : memref<64x128xf32, #tpu.memory_space<vmem>>, vector<64x128xf32>
    %cst = arith.constant dense<0.000000e+00> : vector<16x128xf32>
    %3 = tpu.matmul %1, %2, %cst {dimension_numbers = #tpu.dot_dimension_numbers<[1], [0], [0], [1], [0, 0, 1, 1], [], []>} : vector<16x64xf32>, vector<64x128xf32>, vector<16x128xf32> -> vector<16x128xf32>
    %c0_4 = arith.constant 0 : index
    %c0_5 = arith.constant 0 : index
    %4 = vector.load %arg2[%c0_4, %c0_5] : memref<32x16xf32, #tpu.memory_space<vmem>>, vector<32x16xf32>
    %cst_6 = arith.constant dense<0.000000e+00> : vector<32x128xf32>
    %5 = tpu.matmul %4, %3, %cst_6 {dimension_numbers = #tpu.dot_dimension_numbers<[1], [0], [0], [1], [0, 0, 1, 1], [], []>} : vector<32x16xf32>, vector<16x128xf32>, vector<32x128xf32> -> vector<32x128xf32>
    %cst_7 = arith.constant 0.000000e+00 : f32
    %6 = vector.broadcast %cst_7 : f32 to vector<1x128xf32>
    %c0_8 = arith.constant 0 : index
    %c0_9 = arith.constant 0 : index
    %7 = vector.load %arg14[%c0_8, %c0_9] : memref<34x128xf32, #tpu.memory_space<vmem>>, vector<1x128xf32>
    tpu.vector_store %arg14[%c0_8, %c0_9], %6 {strides = array<i32>} : memref<34x128xf32, #tpu.memory_space<vmem>>, vector<1x128xf32>,
    %c33 = arith.constant 33 : index
    %c0_10 = arith.constant 0 : index
    %8 = vector.load %arg14[%c33, %c0_10] : memref<34x128xf32, #tpu.memory_space<vmem>>, vector<1x128xf32>
    tpu.vector_store %arg14[%c33, %c0_10], %6 {strides = array<i32>} : memref<34x128xf32, #tpu.memory_space<vmem>>, vector<1x128xf32>,
    %c1 = arith.constant 1 : index
    %c0_11 = arith.constant 0 : index
    %9 = vector.load %arg14[%c1, %c0_11] : memref<34x128xf32, #tpu.memory_space<vmem>>, vector<32x128xf32>
    tpu.vector_store %arg14[%c1, %c0_11], %5 {strides = array<i32>} : memref<34x128xf32, #tpu.memory_space<vmem>>, vector<32x128xf32>,
    %c0_12 = arith.constant 0 : index
    %c0_13 = arith.constant 0 : index
    %10 = vector.load %arg14[%c0_12, %c0_13] : memref<34x128xf32, #tpu.memory_space<vmem>>, vector<32x128xf32>
    %11 = arith.truncf %10 : vector<32x128xf32> to vector<32x128xbf16>
    %c0_14 = arith.constant 0 : index
    %c0_15 = arith.constant 0 : index
    %c0_16 = arith.constant 0 : index
    %12 = vector.load %arg5[%c0_14, %c0_15, %c0_16] : memref<3x128x128xbf16, #tpu.memory_space<vmem>>, vector<1x128x128xbf16>
    %13 = vector.shape_cast %12 : vector<1x128x128xbf16> to vector<128x128xbf16>
    %cst_17 = arith.constant dense<0.000000e+00> : vector<32x128xf32>
    %14 = tpu.matmul %11, %13, %cst_17 {dimension_numbers = #tpu.dot_dimension_numbers<[1], [0], [0], [1], [0, 0, 1, 1], [], []>} : vector<32x128xbf16>, vector<128x128xbf16>, vector<32x128xf32> -> vector<32x128xf32>
    %c1_18 = arith.constant 1 : index
    %c0_19 = arith.constant 0 : index
    %15 = vector.load %arg14[%c1_18, %c0_19] : memref<34x128xf32, #tpu.memory_space<vmem>>, vector<32x128xf32>
    %16 = arith.truncf %15 : vector<32x128xf32> to vector<32x128xbf16>
    %c1_20 = arith.constant 1 : index
    %c0_21 = arith.constant 0 : index
    %c0_22 = arith.constant 0 : index
    %17 = vector.load %arg5[%c1_20, %c0_21, %c0_22] : memref<3x128x128xbf16, #tpu.memory_space<vmem>>, vector<1x128x128xbf16>
    %18 = vector.shape_cast %17 : vector<1x128x128xbf16> to vector<128x128xbf16>
    %cst_23 = arith.constant dense<0.000000e+00> : vector<32x128xf32>
    %19 = tpu.matmul %16, %18, %cst_23 {dimension_numbers = #tpu.dot_dimension_numbers<[1], [0], [0], [1], [0, 0, 1, 1], [], []>} : vector<32x128xbf16>, vector<128x128xbf16>, vector<32x128xf32> -> vector<32x128xf32>
    %20 = arith.addf %14, %19 : vector<32x128xf32>
    %c2 = arith.constant 2 : index
    %c0_24 = arith.constant 0 : index
    %21 = vector.load %arg14[%c2, %c0_24] : memref<34x128xf32, #tpu.memory_space<vmem>>, vector<32x128xf32>
    %22 = arith.truncf %21 : vector<32x128xf32> to vector<32x128xbf16>
    %c2_25 = arith.constant 2 : index
    %c0_26 = arith.constant 0 : index
    %c0_27 = arith.constant 0 : index
    %23 = vector.load %arg5[%c2_25, %c0_26, %c0_27] : memref<3x128x128xbf16, #tpu.memory_space<vmem>>, vector<1x128x128xbf16>
    %24 = vector.shape_cast %23 : vector<1x128x128xbf16> to vector<128x128xbf16>
    %cst_28 = arith.constant dense<0.000000e+00> : vector<32x128xf32>
    %25 = tpu.matmul %22, %24, %cst_28 {dimension_numbers = #tpu.dot_dimension_numbers<[1], [0], [0], [1], [0, 0, 1, 1], [], []>} : vector<32x128xbf16>, vector<128x128xbf16>, vector<32x128xf32> -> vector<32x128xf32>
    %26 = arith.addf %20, %25 : vector<32x128xf32>
    %c0_29 = arith.constant 0 : index
    %c0_30 = arith.constant 0 : index
    %27 = vector.load %arg6[%c0_29, %c0_30] : memref<1x128xf32, #tpu.memory_space<vmem>>, vector<1x128xf32>
    %28 = vector.broadcast %27 : vector<1x128xf32> to vector<32x128xf32>
    %29 = arith.addf %26, %28 : vector<32x128xf32>
    %cst_31 = arith.constant 0.000000e+00 : f32
    %30 = vector.broadcast %cst_31 : f32 to vector<1x128xf32>
    %c0_32 = arith.constant 0 : index
    %c0_33 = arith.constant 0 : index
    %31 = vector.load %arg15[%c0_32, %c0_33] : memref<34x128xf32, #tpu.memory_space<vmem>>, vector<1x128xf32>
    tpu.vector_store %arg15[%c0_32, %c0_33], %30 {strides = array<i32>} : memref<34x128xf32, #tpu.memory_space<vmem>>, vector<1x128xf32>,
    %c33_34 = arith.constant 33 : index
    %c0_35 = arith.constant 0 : index
    %32 = vector.load %arg15[%c33_34, %c0_35] : memref<34x128xf32, #tpu.memory_space<vmem>>, vector<1x128xf32>
    tpu.vector_store %arg15[%c33_34, %c0_35], %30 {strides = array<i32>} : memref<34x128xf32, #tpu.memory_space<vmem>>, vector<1x128xf32>,
    %c1_36 = arith.constant 1 : index
    %c0_37 = arith.constant 0 : index
    %33 = vector.load %arg15[%c1_36, %c0_37] : memref<34x128xf32, #tpu.memory_space<vmem>>, vector<32x128xf32>
    tpu.vector_store %arg15[%c1_36, %c0_37], %29 {strides = array<i32>} : memref<34x128xf32, #tpu.memory_space<vmem>>, vector<32x128xf32>,
    %c0_38 = arith.constant 0 : index
    %c0_39 = arith.constant 0 : index
    %34 = vector.load %arg15[%c0_38, %c0_39] : memref<34x128xf32, #tpu.memory_space<vmem>>, vector<32x128xf32>
    %35 = arith.truncf %34 : vector<32x128xf32> to vector<32x128xbf16>
    %c0_40 = arith.constant 0 : index
    %c0_41 = arith.constant 0 : index
    %c0_42 = arith.constant 0 : index
    %36 = vector.load %arg7[%c0_40, %c0_41, %c0_42] : memref<3x128x256xbf16, #tpu.memory_space<vmem>>, vector<1x128x256xbf16>
    %37 = vector.shape_cast %36 : vector<1x128x256xbf16> to vector<128x256xbf16>
    %cst_43 = arith.constant dense<0.000000e+00> : vector<32x256xf32>
    %38 = tpu.matmul %35, %37, %cst_43 {dimension_numbers = #tpu.dot_dimension_numbers<[1], [0], [0], [1], [0, 0, 1, 1], [], []>} : vector<32x128xbf16>, vector<128x256xbf16>, vector<32x256xf32> -> vector<32x256xf32>
    %c1_44 = arith.constant 1 : index
    %c0_45 = arith.constant 0 : index
    %39 = vector.load %arg15[%c1_44, %c0_45] : memref<34x128xf32, #tpu.memory_space<vmem>>, vector<32x128xf32>
    %40 = arith.truncf %39 : vector<32x128xf32> to vector<32x128xbf16>
    %c1_46 = arith.constant 1 : index
    %c0_47 = arith.constant 0 : index
    %c0_48 = arith.constant 0 : index
    %41 = vector.load %arg7[%c1_46, %c0_47, %c0_48] : memref<3x128x256xbf16, #tpu.memory_space<vmem>>, vector<1x128x256xbf16>
    %42 = vector.shape_cast %41 : vector<1x128x256xbf16> to vector<128x256xbf16>
    %cst_49 = arith.constant dense<0.000000e+00> : vector<32x256xf32>
    %43 = tpu.matmul %40, %42, %cst_49 {dimension_numbers = #tpu.dot_dimension_numbers<[1], [0], [0], [1], [0, 0, 1, 1], [], []>} : vector<32x128xbf16>, vector<128x256xbf16>, vector<32x256xf32> -> vector<32x256xf32>
    %44 = arith.addf %38, %43 : vector<32x256xf32>
    %c2_50 = arith.constant 2 : index
    %c0_51 = arith.constant 0 : index
    %45 = vector.load %arg15[%c2_50, %c0_51] : memref<34x128xf32, #tpu.memory_space<vmem>>, vector<32x128xf32>
    %46 = arith.truncf %45 : vector<32x128xf32> to vector<32x128xbf16>
    %c2_52 = arith.constant 2 : index
    %c0_53 = arith.constant 0 : index
    %c0_54 = arith.constant 0 : index
    %47 = vector.load %arg7[%c2_52, %c0_53, %c0_54] : memref<3x128x256xbf16, #tpu.memory_space<vmem>>, vector<1x128x256xbf16>
    %48 = vector.shape_cast %47 : vector<1x128x256xbf16> to vector<128x256xbf16>
    %cst_55 = arith.constant dense<0.000000e+00> : vector<32x256xf32>
    %49 = tpu.matmul %46, %48, %cst_55 {dimension_numbers = #tpu.dot_dimension_numbers<[1], [0], [0], [1], [0, 0, 1, 1], [], []>} : vector<32x128xbf16>, vector<128x256xbf16>, vector<32x256xf32> -> vector<32x256xf32>
    %50 = arith.addf %44, %49 : vector<32x256xf32>
    %c0_56 = arith.constant 0 : index
    %c0_57 = arith.constant 0 : index
    %51 = vector.load %arg8[%c0_56, %c0_57] : memref<1x256xf32, #tpu.memory_space<vmem>>, vector<1x256xf32>
    %52 = vector.broadcast %51 : vector<1x256xf32> to vector<32x256xf32>
    %53 = arith.addf %50, %52 : vector<32x256xf32>
    %cst_58 = arith.constant dense<0.000000e+00> : vector<256xf32>
    %54 = vector.multi_reduction <add>, %53, %cst_58 [0] : vector<32x256xf32> to vector<256xf32>
    %55 = vector.shape_cast %54 : vector<256xf32> to vector<1x256xf32>
    %56 = arith.mulf %53, %53 : vector<32x256xf32>
    %cst_59 = arith.constant dense<0.000000e+00> : vector<256xf32>
    %57 = vector.multi_reduction <add>, %56, %cst_59 [0] : vector<32x256xf32> to vector<256xf32>
    %58 = vector.shape_cast %57 : vector<256xf32> to vector<1x256xf32>
    %c0_60 = arith.constant 0 : index
    %c0_61 = arith.constant 0 : index
    %59 = vector.load %arg4[%c0_60, %c0_61] : memref<256x256xf32, #tpu.memory_space<vmem>>, vector<256x256xf32>
    %cst_62 = arith.constant dense<0.000000e+00> : vector<1x256xf32>
    %60 = tpu.matmul %55, %59, %cst_62 {dimension_numbers = #tpu.dot_dimension_numbers<[1], [0], [0], [1], [0, 0, 1, 1], [], []>} : vector<1x256xf32>, vector<256x256xf32>, vector<1x256xf32> -> vector<1x256xf32>
    %cst_63 = arith.constant 9.765625E-4 : f32
    %61 = vector.broadcast %cst_63 : f32 to vector<1x256xf32>
    %62 = arith.mulf %60, %61 : vector<1x256xf32>
    %c0_64 = arith.constant 0 : index
    %c0_65 = arith.constant 0 : index
    %63 = vector.load %arg4[%c0_64, %c0_65] : memref<256x256xf32, #tpu.memory_space<vmem>>, vector<256x256xf32>
    %cst_66 = arith.constant dense<0.000000e+00> : vector<1x256xf32>
    %64 = tpu.matmul %58, %63, %cst_66 {dimension_numbers = #tpu.dot_dimension_numbers<[1], [0], [0], [1], [0, 0, 1, 1], [], []>} : vector<1x256xf32>, vector<256x256xf32>, vector<1x256xf32> -> vector<1x256xf32>
    %cst_67 = arith.constant 9.765625E-4 : f32
    %65 = vector.broadcast %cst_67 : f32 to vector<1x256xf32>
    %66 = arith.mulf %64, %65 : vector<1x256xf32>
    %67 = arith.mulf %62, %62 : vector<1x256xf32>
    %68 = arith.subf %66, %67 : vector<1x256xf32>
    %cst_68 = arith.constant 0.000000e+00 : f32
    %69 = vector.broadcast %cst_68 : f32 to vector<1x256xf32>
    %70 = arith.maximumf %68, %69 : vector<1x256xf32>
    %71 = vector.broadcast %62 : vector<1x256xf32> to vector<32x256xf32>
    %72 = arith.subf %53, %71 : vector<32x256xf32>
    %cst_69 = arith.constant 9.99999974E-6 : f32
    %73 = vector.broadcast %cst_69 : f32 to vector<1x256xf32>
    %74 = arith.addf %70, %73 : vector<1x256xf32>
    %75 = math.rsqrt %74 : vector<1x256xf32>
    %76 = vector.broadcast %75 : vector<1x256xf32> to vector<32x256xf32>
    %77 = arith.mulf %72, %76 : vector<32x256xf32>
    %cst_70 = arith.constant 0.000000e+00 : f32
    %78 = vector.broadcast %cst_70 : f32 to vector<32x256xf32>
    %79 = arith.cmpf oge, %77, %78 : vector<32x256xf32>
    %cst_71 = arith.constant 2.000000e-01 : f32
    %80 = vector.broadcast %cst_71 : f32 to vector<32x256xf32>
    %81 = arith.mulf %80, %77 : vector<32x256xf32>
    %82 = arith.select %79, %77, %81 : vector<32x256xi1>, vector<32x256xf32>
    %cst_72 = arith.constant 0.000000e+00 : f32
    %83 = vector.broadcast %cst_72 : f32 to vector<1x256xf32>
    %c0_73 = arith.constant 0 : index
    %c0_74 = arith.constant 0 : index
    %84 = vector.load %arg16[%c0_73, %c0_74] : memref<34x256xf32, #tpu.memory_space<vmem>>, vector<1x256xf32>
    tpu.vector_store %arg16[%c0_73, %c0_74], %83 {strides = array<i32>} : memref<34x256xf32, #tpu.memory_space<vmem>>, vector<1x256xf32>,
    %c33_75 = arith.constant 33 : index
    %c0_76 = arith.constant 0 : index
    %85 = vector.load %arg16[%c33_75, %c0_76] : memref<34x256xf32, #tpu.memory_space<vmem>>, vector<1x256xf32>
    tpu.vector_store %arg16[%c33_75, %c0_76], %83 {strides = array<i32>} : memref<34x256xf32, #tpu.memory_space<vmem>>, vector<1x256xf32>,
    %c1_77 = arith.constant 1 : index
    %c0_78 = arith.constant 0 : index
    %86 = vector.load %arg16[%c1_77, %c0_78] : memref<34x256xf32, #tpu.memory_space<vmem>>, vector<32x256xf32>
    tpu.vector_store %arg16[%c1_77, %c0_78], %82 {strides = array<i32>} : memref<34x256xf32, #tpu.memory_space<vmem>>, vector<32x256xf32>,
    %c0_79 = arith.constant 0 : index
    %c0_80 = arith.constant 0 : index
    %87 = vector.load %arg16[%c0_79, %c0_80] : memref<34x256xf32, #tpu.memory_space<vmem>>, vector<32x256xf32>
    %88 = arith.truncf %87 : vector<32x256xf32> to vector<32x256xbf16>
    %c0_81 = arith.constant 0 : index
    %c0_82 = arith.constant 0 : index
    %c0_83 = arith.constant 0 : index
    %89 = vector.load %arg9[%c0_81, %c0_82, %c0_83] : memref<3x256x256xbf16, #tpu.memory_space<vmem>>, vector<1x256x256xbf16>
    %90 = vector.shape_cast %89 : vector<1x256x256xbf16> to vector<256x256xbf16>
    %cst_84 = arith.constant dense<0.000000e+00> : vector<32x256xf32>
    %91 = tpu.matmul %88, %90, %cst_84 {dimension_numbers = #tpu.dot_dimension_numbers<[1], [0], [0], [1], [0, 0, 1, 1], [], []>} : vector<32x256xbf16>, vector<256x256xbf16>, vector<32x256xf32> -> vector<32x256xf32>
    %c1_85 = arith.constant 1 : index
    %c0_86 = arith.constant 0 : index
    %92 = vector.load %arg16[%c1_85, %c0_86] : memref<34x256xf32, #tpu.memory_space<vmem>>, vector<32x256xf32>
    %93 = arith.truncf %92 : vector<32x256xf32> to vector<32x256xbf16>
    %c1_87 = arith.constant 1 : index
    %c0_88 = arith.constant 0 : index
    %c0_89 = arith.constant 0 : index
    %94 = vector.load %arg9[%c1_87, %c0_88, %c0_89] : memref<3x256x256xbf16, #tpu.memory_space<vmem>>, vector<1x256x256xbf16>
    %95 = vector.shape_cast %94 : vector<1x256x256xbf16> to vector<256x256xbf16>
    %cst_90 = arith.constant dense<0.000000e+00> : vector<32x256xf32>
    %96 = tpu.matmul %93, %95, %cst_90 {dimension_numbers = #tpu.dot_dimension_numbers<[1], [0], [0], [1], [0, 0, 1, 1], [], []>} : vector<32x256xbf16>, vector<256x256xbf16>, vector<32x256xf32> -> vector<32x256xf32>
    %97 = arith.addf %91, %96 : vector<32x256xf32>
    %c2_91 = arith.constant 2 : index
    %c0_92 = arith.constant 0 : index
    %98 = vector.load %arg16[%c2_91, %c0_92] : memref<34x256xf32, #tpu.memory_space<vmem>>, vector<32x256xf32>
    %99 = arith.truncf %98 : vector<32x256xf32> to vector<32x256xbf16>
    %c2_93 = arith.constant 2 : index
    %c0_94 = arith.constant 0 : index
    %c0_95 = arith.constant 0 : index
    %100 = vector.load %arg9[%c2_93, %c0_94, %c0_95] : memref<3x256x256xbf16, #tpu.memory_space<vmem>>, vector<1x256x256xbf16>
    %101 = vector.shape_cast %100 : vector<1x256x256xbf16> to vector<256x256xbf16>
    %cst_96 = arith.constant dense<0.000000e+00> : vector<32x256xf32>
    %102 = tpu.matmul %99, %101, %cst_96 {dimension_numbers = #tpu.dot_dimension_numbers<[1], [0], [0], [1], [0, 0, 1, 1], [], []>} : vector<32x256xbf16>, vector<256x256xbf16>, vector<32x256xf32> -> vector<32x256xf32>
    %103 = arith.addf %97, %102 : vector<32x256xf32>
    %c0_97 = arith.constant 0 : index
    %c0_98 = arith.constant 0 : index
    %104 = vector.load %arg10[%c0_97, %c0_98] : memref<1x256xf32, #tpu.memory_space<vmem>>, vector<1x256xf32>
    %105 = vector.broadcast %104 : vector<1x256xf32> to vector<32x256xf32>
    %106 = arith.addf %103, %105 : vector<32x256xf32>
    %cst_99 = arith.constant dense<0.000000e+00> : vector<256xf32>
    %107 = vector.multi_reduction <add>, %106, %cst_99 [0] : vector<32x256xf32> to vector<256xf32>
    %108 = vector.shape_cast %107 : vector<256xf32> to vector<1x256xf32>
    %109 = arith.mulf %106, %106 : vector<32x256xf32>
    %cst_100 = arith.constant dense<0.000000e+00> : vector<256xf32>
    %110 = vector.multi_reduction <add>, %109, %cst_100 [0] : vector<32x256xf32> to vector<256xf32>
    %111 = vector.shape_cast %110 : vector<256xf32> to vector<1x256xf32>
    %c0_101 = arith.constant 0 : index
    %c0_102 = arith.constant 0 : index
    %112 = vector.load %arg4[%c0_101, %c0_102] : memref<256x256xf32, #tpu.memory_space<vmem>>, vector<256x256xf32>
    %cst_103 = arith.constant dense<0.000000e+00> : vector<1x256xf32>
    %113 = tpu.matmul %108, %112, %cst_103 {dimension_numbers = #tpu.dot_dimension_numbers<[1], [0], [0], [1], [0, 0, 1, 1], [], []>} : vector<1x256xf32>, vector<256x256xf32>, vector<1x256xf32> -> vector<1x256xf32>
    %cst_104 = arith.constant 9.765625E-4 : f32
    %114 = vector.broadcast %cst_104 : f32 to vector<1x256xf32>
    %115 = arith.mulf %113, %114 : vector<1x256xf32>
    %c0_105 = arith.constant 0 : index
    %c0_106 = arith.constant 0 : index
    %116 = vector.load %arg4[%c0_105, %c0_106] : memref<256x256xf32, #tpu.memory_space<vmem>>, vector<256x256xf32>
    %cst_107 = arith.constant dense<0.000000e+00> : vector<1x256xf32>
    %117 = tpu.matmul %111, %116, %cst_107 {dimension_numbers = #tpu.dot_dimension_numbers<[1], [0], [0], [1], [0, 0, 1, 1], [], []>} : vector<1x256xf32>, vector<256x256xf32>, vector<1x256xf32> -> vector<1x256xf32>
    %cst_108 = arith.constant 9.765625E-4 : f32
    %118 = vector.broadcast %cst_108 : f32 to vector<1x256xf32>
    %119 = arith.mulf %117, %118 : vector<1x256xf32>
    %120 = arith.mulf %115, %115 : vector<1x256xf32>
    %121 = arith.subf %119, %120 : vector<1x256xf32>
    %cst_109 = arith.constant 0.000000e+00 : f32
    %122 = vector.broadcast %cst_109 : f32 to vector<1x256xf32>
    %123 = arith.maximumf %121, %122 : vector<1x256xf32>
    %124 = vector.broadcast %115 : vector<1x256xf32> to vector<32x256xf32>
    %125 = arith.subf %106, %124 : vector<32x256xf32>
    %cst_110 = arith.constant 9.99999974E-6 : f32
    %126 = vector.broadcast %cst_110 : f32 to vector<1x256xf32>
    %127 = arith.addf %123, %126 : vector<1x256xf32>
    %128 = math.rsqrt %127 : vector<1x256xf32>
    %129 = vector.broadcast %128 : vector<1x256xf32> to vector<32x256xf32>
    %130 = arith.mulf %125, %129 : vector<32x256xf32>
    %131 = arith.truncf %29 : vector<32x128xf32> to vector<32x128xbf16>
    %c0_111 = arith.constant 0 : index
    %c0_112 = arith.constant 0 : index
    %132 = vector.load %arg11[%c0_111, %c0_112] : memref<128x256xbf16, #tpu.memory_space<vmem>>, vector<128x256xbf16>
    %cst_113 = arith.constant dense<0.000000e+00> : vector<32x256xf32>
    %133 = tpu.matmul %131, %132, %cst_113 {dimension_numbers = #tpu.dot_dimension_numbers<[1], [0], [0], [1], [0, 0, 1, 1], [], []>} : vector<32x128xbf16>, vector<128x256xbf16>, vector<32x256xf32> -> vector<32x256xf32>
    %c0_114 = arith.constant 0 : index
    %c0_115 = arith.constant 0 : index
    %134 = vector.load %arg12[%c0_114, %c0_115] : memref<1x256xf32, #tpu.memory_space<vmem>>, vector<1x256xf32>
    %135 = vector.broadcast %134 : vector<1x256xf32> to vector<32x256xf32>
    %136 = arith.addf %133, %135 : vector<32x256xf32>
    %137 = arith.addf %130, %136 : vector<32x256xf32>
    %cst_116 = arith.constant 0.000000e+00 : f32
    %138 = vector.broadcast %cst_116 : f32 to vector<32x256xf32>
    %139 = arith.cmpf oge, %137, %138 : vector<32x256xf32>
    %cst_117 = arith.constant 2.000000e-01 : f32
    %140 = vector.broadcast %cst_117 : f32 to vector<32x256xf32>
    %141 = arith.mulf %140, %137 : vector<32x256xf32>
    %142 = arith.select %139, %137, %141 : vector<32x256xi1>, vector<32x256xf32>
    %c0_118 = arith.constant 0 : index
    %c0_119 = arith.constant 0 : index
    %c0_120 = arith.constant 0 : index
    %143 = vector.load %arg13[%c0_118, %c0_119, %c0_120] : memref<1x32x256xf32, #tpu.memory_space<vmem>>, vector<1x32x256xf32>
    %144 = vector.shape_cast %143 : vector<1x32x256xf32> to vector<32x256xf32>
    %145 = vector.shape_cast %142 : vector<32x256xf32> to vector<1x32x256xf32>
    tpu.vector_store %arg13[%c0_118, %c0_119, %c0_120], %145 {strides = array<i32>} : memref<1x32x256xf32, #tpu.memory_space<vmem>>, vector<1x32x256xf32>,
    return
  }
  func.func @transform_0(%arg0: i32) -> (i32, i32, i32) {
    %c0_i32 = arith.constant 0 : i32
    %c0_i32_0 = arith.constant 0 : i32
    %c0_i32_1 = arith.constant 0 : i32
    return %arg0, %c0_i32, %c0_i32_0 : i32, i32, i32
  }
  func.func @transform_1(%arg0: i32) -> (i32, i32) {
    %c0_i32 = arith.constant 0 : i32
    %c0_i32_0 = arith.constant 0 : i32
    %c0_i32_1 = arith.constant 0 : i32
    return %c0_i32, %c0_i32_0 : i32, i32
  }
  func.func @transform_2(%arg0: i32) -> (i32, i32) {
    %c0_i32 = arith.constant 0 : i32
    %c0_i32_0 = arith.constant 0 : i32
    %c0_i32_1 = arith.constant 0 : i32
    return %c0_i32, %c0_i32_0 : i32, i32
  }
  func.func @transform_3(%arg0: i32) -> (i32, i32) {
    %c0_i32 = arith.constant 0 : i32
    %c0_i32_0 = arith.constant 0 : i32
    %c0_i32_1 = arith.constant 0 : i32
    return %c0_i32, %c0_i32_0 : i32, i32
  }
  func.func @transform_4(%arg0: i32) -> (i32, i32, i32) {
    %c0_i32 = arith.constant 0 : i32
    %c0_i32_0 = arith.constant 0 : i32
    %c0_i32_1 = arith.constant 0 : i32
    %c0_i32_2 = arith.constant 0 : i32
    return %c0_i32, %c0_i32_0, %c0_i32_1 : i32, i32, i32
  }
  func.func @transform_5(%arg0: i32) -> (i32, i32) {
    %c0_i32 = arith.constant 0 : i32
    %c0_i32_0 = arith.constant 0 : i32
    %c0_i32_1 = arith.constant 0 : i32
    return %c0_i32, %c0_i32_0 : i32, i32
  }
  func.func @transform_6(%arg0: i32) -> (i32, i32, i32) {
    %c0_i32 = arith.constant 0 : i32
    %c0_i32_0 = arith.constant 0 : i32
    %c0_i32_1 = arith.constant 0 : i32
    %c0_i32_2 = arith.constant 0 : i32
    return %c0_i32, %c0_i32_0, %c0_i32_1 : i32, i32, i32
  }
  func.func @transform_7(%arg0: i32) -> (i32, i32) {
    %c0_i32 = arith.constant 0 : i32
    %c0_i32_0 = arith.constant 0 : i32
    %c0_i32_1 = arith.constant 0 : i32
    return %c0_i32, %c0_i32_0 : i32, i32
  }
  func.func @transform_8(%arg0: i32) -> (i32, i32, i32) {
    %c0_i32 = arith.constant 0 : i32
    %c0_i32_0 = arith.constant 0 : i32
    %c0_i32_1 = arith.constant 0 : i32
    %c0_i32_2 = arith.constant 0 : i32
    return %c0_i32, %c0_i32_0, %c0_i32_1 : i32, i32, i32
  }
  func.func @transform_9(%arg0: i32) -> (i32, i32) {
    %c0_i32 = arith.constant 0 : i32
    %c0_i32_0 = arith.constant 0 : i32
    %c0_i32_1 = arith.constant 0 : i32
    return %c0_i32, %c0_i32_0 : i32, i32
  }
  func.func @transform_10(%arg0: i32) -> (i32, i32) {
    %c0_i32 = arith.constant 0 : i32
    %c0_i32_0 = arith.constant 0 : i32
    %c0_i32_1 = arith.constant 0 : i32
    return %c0_i32, %c0_i32_0 : i32, i32
  }
  func.func @transform_11(%arg0: i32) -> (i32, i32) {
    %c0_i32 = arith.constant 0 : i32
    %c0_i32_0 = arith.constant 0 : i32
    %c0_i32_1 = arith.constant 0 : i32
    return %c0_i32, %c0_i32_0 : i32, i32
  }
  func.func @transform_12(%arg0: i32) -> (i32, i32, i32) {
    %c0_i32 = arith.constant 0 : i32
    %c0_i32_0 = arith.constant 0 : i32
    %c0_i32_1 = arith.constant 0 : i32
    return %arg0, %c0_i32, %c0_i32_0 : i32, i32, i32
  }
}

</mosaic_0001>

<llo_original>
// kernel: res_nn_up_forward.1
$region0: #{res_nn_up_forward.1}
  #allocation0 [shape = 'u32[]', space=smem, size = 0x4, offset = 0x4, fixed_abs, tag = 'smem constant byte address 0x4 - core index']
  #allocation1 [shape = 'u32[144,128]{1,0:T(1,128)}', space=vmem, size = 0x12000, scoped, tag = 'internal scratch']
  #allocation2 [shape = 'f32[34,128]{1,0:T(8,128)}', space=vmem, size = 0x5000, scoped, tag = 'scratch operand']
  #allocation3 [shape = 'f32[34,128]{1,0:T(8,128)}', space=vmem, size = 0x5000, scoped, tag = 'scratch operand']
  #allocation4 [shape = 'f32[34,256]{1,0:T(8,128)}', space=vmem, size = 0xa000, scoped, tag = 'scratch operand']
  %s0 = inlined_call_operand.vmem [shape: f32[2,16,64], index: 0, kind: input, shape index: {}]
  %s1 = inlined_call_operand.vmem [shape: f32[32,16], index: 1, kind: input, shape index: {}]
  %s2 = inlined_call_operand.vmem [shape: f32[64,128], index: 2, kind: input, shape index: {}]
  %s3 = inlined_call_operand.vmem [shape: f32[256,256], index: 3, kind: input, shape index: {}]
  %s4 = inlined_call_operand.vmem [shape: bf16[3,128,128], index: 4, kind: input, shape index: {}]
  %s5 = inlined_call_operand.vmem [shape: f32[1,128], index: 5, kind: input, shape index: {}]
  %s6 = inlined_call_operand.vmem [shape: bf16[3,128,256], index: 6, kind: input, shape index: {}]
  %s7 = inlined_call_operand.vmem [shape: f32[1,256], index: 7, kind: input, shape index: {}]
  %s8 = inlined_call_operand.vmem [shape: bf16[3,256,256], index: 8, kind: input, shape index: {}]
  %s9 = inlined_call_operand.vmem [shape: f32[1,256], index: 9, kind: input, shape index: {}]
  %s10 = inlined_call_operand.vmem [shape: bf16[128,256], index: 10, kind: input, shape index: {}]
  %s11 = inlined_call_operand.vmem [shape: f32[1,256], index: 11, kind: input, shape index: {}]
  %s12 = inlined_call_operand.vmem [shape: f32[2,32,256], index: 12, kind: output, shape index: {}]
  %s13 = sld [smem:[#allocation0]]
  $region81: #{res_nn_up_forward.1} parent=0
    _
  %s15 = ssub.s32 1, %s13
  %s16 = scalar_select 0, %s15, %s13
  loop: start=0, step=1, limit=4
  $region2: #{res_nn_up_forward.1} parent=0 // loop_pre_header
    _
  $region3: #{res_nn_up_forward.1} parent=0 // loop_header
    %s18 = sphi 0, %s22
    %p19 = scmp.ge.s32.totalorder %s18, 4
    %s28 = sphi 0, %s30
    %s31 = sphi 0, %s28
    %s32 = sphi 0, %s31
    %s48 = sphi 0, %s32
    %s52 = sphi 0, %s52
    %s54 = sphi 0, %s52
    %s55 = sphi 0, %s54
    %s69 = sphi 0, %s55
    %s73 = sphi 0, %s73
    %s75 = sphi 0, %s73
    %s76 = sphi 0, %s75
    %s90 = sphi 0, %s76
    %s94 = sphi 0, %s94
    %s96 = sphi 0, %s94
    %s97 = sphi 0, %s96
    %s111 = sphi 0, %s97
    %s115 = sphi 0, %s115
    %s117 = sphi 0, %s115
    %s118 = sphi 0, %s117
    %s132 = sphi 0, %s118
    %s136 = sphi 0, %s136
    %s138 = sphi 0, %s136
    %s139 = sphi 0, %s138
    %s153 = sphi 0, %s139
    %s157 = sphi 0, %s157
    %s159 = sphi 0, %s157
    %s160 = sphi 0, %s159
    %s174 = sphi 0, %s160
    %s178 = sphi 0, %s178
    %s180 = sphi 0, %s178
    %s181 = sphi 0, %s180
    %s195 = sphi 0, %s181
    %s199 = sphi 0, %s199
    %s201 = sphi 0, %s199
    %s202 = sphi 0, %s201
    %s216 = sphi 0, %s202
    %s220 = sphi 0, %s220
    %s222 = sphi 0, %s220
    %s223 = sphi 0, %s222
    %s237 = sphi 0, %s223
    %s241 = sphi 0, %s241
    %s243 = sphi 0, %s241
    %s244 = sphi 0, %s243
    %s258 = sphi 0, %s244
    %s262 = sphi 0, %s262
    %s264 = sphi 0, %s262
    %s265 = sphi 0, %s264
    %s279 = sphi 0, %s265
    %s285 = sphi 0, %s287
    %s288 = sphi 0, %s285
    %s289 = sphi 0, %s288
    %s305 = sphi 0, %s289
  $region4: #{res_nn_up_forward.1} parent=0 // loop_header_branch
    %21 = sbr.rel (%p19) target = $region8
  $region5: #{res_nn_up_forward.1} parent=0 // loop_body
    %s23 = ssub.s32 %s18, 1
    %s24 = ssub.s32 %s18, 2
    %s25 = sadd.s32 %s18, 1
    %s26 = ssub.s32 %s18, %s25
    %p27 = scmp.eq.s32.totalorder %s26, 0
    %s29 = sadd.s32 %s28, 1
    %s30 = scalar_select %p27, %s28, %s29
    %p33 = pneg %p27
    %p34 = scmp.eq.s32.totalorder %s18, 1
    %p35 = por %p33, %p34
    %p36 = scmp.ne.s32.totalorder %s28, %s31
    %p37 = scmp.eq.s32.totalorder %s18, 0
    %p38 = por %p36, %p37
    %p39 = scmp.ne.s32.totalorder %s28, %s31
    %p40 = scmp.eq.s32.totalorder %s23, 1
    %p41 = por %p39, %p40
    %p42 = scmp.ne.s32.totalorder %s31, %s32
    %p43 = scmp.eq.s32.totalorder %s23, 0
    %p44 = por %p42, %p43
    %p45 = scmp.ne.s32.totalorder %s31, %s32
    %p46 = scmp.eq.s32.totalorder %s24, 1
    %p47 = por %p45, %p46
    %p49 = scmp.ne.s32.totalorder %s32, %s48
    %p50 = scmp.eq.s32.totalorder %s24, 0
    %p51 = por %p49, %p50
    %s53 = sadd.s32 %s52, 1
    %p56 = scmp.eq.s32.totalorder %s18, 1
    %p57 = scmp.ne.s32.totalorder %s52, %s54
    %p58 = scmp.eq.s32.totalorder %s18, 0
    %p59 = por %p57, %p58
    %p60 = scmp.ne.s32.totalorder %s52, %s54
    %p61 = scmp.eq.s32.totalorder %s23, 1
    %p62 = por %p60, %p61
    %p63 = scmp.ne.s32.totalorder %s54, %s55
    %p64 = scmp.eq.s32.totalorder %s23, 0
    %p65 = por %p63, %p64
    %p66 = scmp.ne.s32.totalorder %s54, %s55
    %p67 = scmp.eq.s32.totalorder %s24, 1
    %p68 = por %p66, %p67
    %p70 = scmp.ne.s32.totalorder %s55, %s69
    %p71 = scmp.eq.s32.totalorder %s24, 0
    %p72 = por %p70, %p71
    %s74 = sadd.s32 %s73, 1
    %p77 = scmp.eq.s32.totalorder %s18, 1
    %p78 = scmp.ne.s32.totalorder %s73, %s75
    %p79 = scmp.eq.s32.totalorder %s18, 0
    %p80 = por %p78, %p79
    %p81 = scmp.ne.s32.totalorder %s73, %s75
    %p82 = scmp.eq.s32.totalorder %s23, 1
    %p83 = por %p81, %p82
    %p84 = scmp.ne.s32.totalorder %s75, %s76
    %p85 = scmp.eq.s32.totalorder %s23, 0
    %p86 = por %p84, %p85
    %p87 = scmp.ne.s32.totalorder %s75, %s76
    %p88 = scmp.eq.s32.totalorder %s24, 1
    %p89 = por %p87, %p88
    %p91 = scmp.ne.s32.totalorder %s76, %s90
    %p92 = scmp.eq.s32.totalorder %s24, 0
    %p93 = por %p91, %p92
    %s95 = sadd.s32 %s94, 1
    %p98 = scmp.eq.s32.totalorder %s18, 1
    %p99 = scmp.ne.s32.totalorder %s94, %s96
    %p100 = scmp.eq.s32.totalorder %s18, 0
    %p101 = por %p99, %p100
    %p102 = scmp.ne.s32.totalorder %s94, %s96
    %p103 = scmp.eq.s32.totalorder %s23, 1
    %p104 = por %p102, %p103
    %p105 = scmp.ne.s32.totalorder %s96, %s97
    %p106 = scmp.eq.s32.totalorder %s23, 0
    %p107 = por %p105, %p106
    %p108 = scmp.ne.s32.totalorder %s96, %s97
    %p109 = scmp.eq.s32.totalorder %s24, 1
    %p110 = por %p108, %p109
    %p112 = scmp.ne.s32.totalorder %s97, %s111
    %p113 = scmp.eq.s32.totalorder %s24, 0
    %p114 = por %p112, %p113
    %s116 = sadd.s32 %s115, 1
    %p119 = scmp.eq.s32.totalorder %s18, 1
    %p120 = scmp.ne.s32.totalorder %s115, %s117
    %p121 = scmp.eq.s32.totalorder %s18, 0
    %p122 = por %p120, %p121
    %p123 = scmp.ne.s32.totalorder %s115, %s117
    %p124 = scmp.eq.s32.totalorder %s23, 1
    %p125 = por %p123, %p124
    %p126 = scmp.ne.s32.totalorder %s117, %s118
    %p127 = scmp.eq.s32.totalorder %s23, 0
    %p128 = por %p126, %p127
    %p129 = scmp.ne.s32.totalorder %s117, %s118
    %p130 = scmp.eq.s32.totalorder %s24, 1
    %p131 = por %p129, %p130
    %p133 = scmp.ne.s32.totalorder %s118, %s132
    %p134 = scmp.eq.s32.totalorder %s24, 0
    %p135 = por %p133, %p134
    %s137 = sadd.s32 %s136, 1
    %p140 = scmp.eq.s32.totalorder %s18, 1
    %p141 = scmp.ne.s32.totalorder %s136, %s138
    %p142 = scmp.eq.s32.totalorder %s18, 0
    %p143 = por %p141, %p142
    %p144 = scmp.ne.s32.totalorder %s136, %s138
    %p145 = scmp.eq.s32.totalorder %s23, 1
    %p146 = por %p144, %p145
    %p147 = scmp.ne.s32.totalorder %s138, %s139
    %p148 = scmp.eq.s32.totalorder %s23, 0
    %p149 = por %p147, %p148
    %p150 = scmp.ne.s32.totalorder %s138, %s139
    %p151 = scmp.eq.s32.totalorder %s24, 1
    %p152 = por %p150, %p151
    %p154 = scmp.ne.s32.totalorder %s139, %s153
    %p155 = scmp.eq.s32.totalorder %s24, 0
    %p156 = por %p154, %p155
    %s158 = sadd.s32 %s157, 1
    %p161 = scmp.eq.s32.totalorder %s18, 1
    %p162 = scmp.ne.s32.totalorder %s157, %s159
    %p163 = scmp.eq.s32.totalorder %s18, 0
    %p164 = por %p162, %p163
    %p165 = scmp.ne.s32.totalorder %s157, %s159
    %p166 = scmp.eq.s32.totalorder %s23, 1
    %p167 = por %p165, %p166
    %p168 = scmp.ne.s32.totalorder %s159, %s160
    %p169 = scmp.eq.s32.totalorder %s23, 0
    %p170 = por %p168, %p169
    %p171 = scmp.ne.s32.totalorder %s159, %s160
    %p172 = scmp.eq.s32.totalorder %s24, 1
    %p173 = por %p171, %p172
    %p175 = scmp.ne.s32.totalorder %s160, %s174
    %p176 = scmp.eq.s32.totalorder %s24, 0
    %p177 = por %p175, %p176
    %s179 = sadd.s32 %s178, 1
    %p182 = scmp.eq.s32.totalorder %s18, 1
    %p183 = scmp.ne.s32.totalorder %s178, %s180
    %p184 = scmp.eq.s32.totalorder %s18, 0
    %p185 = por %p183, %p184
    %p186 = scmp.ne.s32.totalorder %s178, %s180
    %p187 = scmp.eq.s32.totalorder %s23, 1
    %p188 = por %p186, %p187
    %p189 = scmp.ne.s32.totalorder %s180, %s181
    %p190 = scmp.eq.s32.totalorder %s23, 0
    %p191 = por %p189, %p190
    %p192 = scmp.ne.s32.totalorder %s180, %s181
    %p193 = scmp.eq.s32.totalorder %s24, 1
    %p194 = por %p192, %p193
    %p196 = scmp.ne.s32.totalorder %s181, %s195
    %p197 = scmp.eq.s32.totalorder %s24, 0
    %p198 = por %p196, %p197
    %s200 = sadd.s32 %s199, 1
    %p203 = scmp.eq.s32.totalorder %s18, 1
    %p204 = scmp.ne.s32.totalorder %s199, %s201
    %p205 = scmp.eq.s32.totalorder %s18, 0
    %p206 = por %p204, %p205
    %p207 = scmp.ne.s32.totalorder %s199, %s201
    %p208 = scmp.eq.s32.totalorder %s23, 1
    %p209 = por %p207, %p208
    %p210 = scmp.ne.s32.totalorder %s201, %s202
    %p211 = scmp.eq.s32.totalorder %s23, 0
    %p212 = por %p210, %p211
    %p213 = scmp.ne.s32.totalorder %s201, %s202
    %p214 = scmp.eq.s32.totalorder %s24, 1
    %p215 = por %p213, %p214
    %p217 = scmp.ne.s32.totalorder %s202, %s216
    %p218 = scmp.eq.s32.totalorder %s24, 0
    %p219 = por %p217, %p218
    %s221 = sadd.s32 %s220, 1
    %p224 = scmp.eq.s32.totalorder %s18, 1
    %p225 = scmp.ne.s32.totalorder %s220, %s222
    %p226 = scmp.eq.s32.totalorder %s18, 0
    %p227 = por %p225, %p226
    %p228 = scmp.ne.s32.totalorder %s220, %s222
    %p229 = scmp.eq.s32.totalorder %s23, 1
    %p230 = por %p228, %p229
    %p231 = scmp.ne.s32.totalorder %s222, %s223
    %p232 = scmp.eq.s32.totalorder %s23, 0
    %p233 = por %p231, %p232
    %p234 = scmp.ne.s32.totalorder %s222, %s223
    %p235 = scmp.eq.s32.totalorder %s24, 1
    %p236 = por %p234, %p235
    %p238 = scmp.ne.s32.totalorder %s223, %s237
    %p239 = scmp.eq.s32.totalorder %s24, 0
    %p240 = por %p238, %p239
    %s242 = sadd.s32 %s241, 1
    %p245 = scmp.eq.s32.totalorder %s18, 1
    %p246 = scmp.ne.s32.totalorder %s241, %s243
    %p247 = scmp.eq.s32.totalorder %s18, 0
    %p248 = por %p246, %p247
    %p249 = scmp.ne.s32.totalorder %s241, %s243
    %p250 = scmp.eq.s32.totalorder %s23, 1
    %p251 = por %p249, %p250
    %p252 = scmp.ne.s32.totalorder %s243, %s244
    %p253 = scmp.eq.s32.totalorder %s23, 0
    %p254 = por %p252, %p253
    %p255 = scmp.ne.s32.totalorder %s243, %s244
    %p256 = scmp.eq.s32.totalorder %s24, 1
    %p257 = por %p255, %p256
    %p259 = scmp.ne.s32.totalorder %s244, %s258
    %p260 = scmp.eq.s32.totalorder %s24, 0
    %p261 = por %p259, %p260
    %s263 = sadd.s32 %s262, 1
    %p266 = scmp.eq.s32.totalorder %s18, 1
    %p267 = scmp.ne.s32.totalorder %s262, %s264
    %p268 = scmp.eq.s32.totalorder %s18, 0
    %p269 = por %p267, %p268
    %p270 = scmp.ne.s32.totalorder %s262, %s264
    %p271 = scmp.eq.s32.totalorder %s23, 1
    %p272 = por %p270, %p271
    %p273 = scmp.ne.s32.totalorder %s264, %s265
    %p274 = scmp.eq.s32.totalorder %s23, 0
    %p275 = por %p273, %p274
    %p276 = scmp.ne.s32.totalorder %s264, %s265
    %p277 = scmp.eq.s32.totalorder %s24, 1
    %p278 = por %p276, %p277
    %p280 = scmp.ne.s32.totalorder %s265, %s279
    %p281 = scmp.eq.s32.totalorder %s24, 0
    %p282 = por %p280, %p281
    %s283 = ssub.s32 %s18, %s25
    %p284 = scmp.eq.s32.totalorder %s283, 0
    %s286 = sadd.s32 %s285, 1
    %s287 = scalar_select %p284, %s285, %s286
    %p290 = pneg %p284
    %p291 = scmp.eq.s32.totalorder %s18, 1
    %p292 = por %p290, %p291
    %p293 = scmp.ne.s32.totalorder %s285, %s288
    %p294 = scmp.eq.s32.totalorder %s18, 0
    %p295 = por %p293, %p294
    %p296 = scmp.ne.s32.totalorder %s285, %s288
    %p297 = scmp.eq.s32.totalorder %s23, 1
    %p298 = por %p296, %p297
    %p299 = scmp.ne.s32.totalorder %s288, %s289
    %p300 = scmp.eq.s32.totalorder %s23, 0
    %p301 = por %p299, %p300
    %p302 = scmp.ne.s32.totalorder %s288, %s289
    %p303 = scmp.eq.s32.totalorder %s24, 1
    %p304 = por %p302, %p303
    %p306 = scmp.ne.s32.totalorder %s289, %s305
    %p307 = scmp.eq.s32.totalorder %s24, 0
    %p308 = por %p306, %p307
    %p309 = scmp.le.s32.totalorder 1, %s18
    %p310 = scmp.lt.s32.totalorder %s18, 3
    %p311 = pnand %p309, %p310
    %p312 = pneg %p311
    // Predicated region
    $region9: #{res_nn_up_forward.1} parent=5 // pred_check
      _
    $region10: #{res_nn_up_forward.1} parent=5 // pred_check_branch
      %314 = sbr.rel (%p311) target = $region12
    $region11: #{res_nn_up_forward.1} parent=5 // pred_region
      %s315 = ssub.s32 %s18, 1
      // Predicated region
      $region13: #{res_nn_up_forward.1} parent=11 // pred_check
        %p316 = pneg %p65
      $region14: #{res_nn_up_forward.1} parent=11 // pred_check_branch
        %318 = sbr.rel (%p316) target = $region16
      $region15: #{res_nn_up_forward.1} parent=11 // pred_region
        _
      $region16: #{res_nn_up_forward.1} parent=11 // pred_fallthru
        _
      // Predicated region
      $region17: #{res_nn_up_forward.1} parent=11 // pred_check
        %p319 = pneg %p86
      $region18: #{res_nn_up_forward.1} parent=11 // pred_check_branch
        %321 = sbr.rel (%p319) target = $region20
      $region19: #{res_nn_up_forward.1} parent=11 // pred_region
        _
      $region20: #{res_nn_up_forward.1} parent=11 // pred_fallthru
        _
      // Predicated region
      $region21: #{res_nn_up_forward.1} parent=11 // pred_check
        %p322 = pneg %p107
      $region22: #{res_nn_up_forward.1} parent=11 // pred_check_branch
        %324 = sbr.rel (%p322) target = $region24
      $region23: #{res_nn_up_forward.1} parent=11 // pred_region
        _
      $region24: #{res_nn_up_forward.1} parent=11 // pred_fallthru
        _
      // Predicated region
      $region25: #{res_nn_up_forward.1} parent=11 // pred_check
        %p325 = pneg %p128
      $region26: #{res_nn_up_forward.1} parent=11 // pred_check_branch
        %327 = sbr.rel (%p325) target = $region28
      $region27: #{res_nn_up_forward.1} parent=11 // pred_region
        _
      $region28: #{res_nn_up_forward.1} parent=11 // pred_fallthru
        _
      // Predicated region
      $region29: #{res_nn_up_forward.1} parent=11 // pred_check
        %p328 = pneg %p149
      $region30: #{res_nn_up_forward.1} parent=11 // pred_check_branch
        %330 = sbr.rel (%p328) target = $region32
      $region31: #{res_nn_up_forward.1} parent=11 // pred_region
        _
      $region32: #{res_nn_up_forward.1} parent=11 // pred_fallthru
        _
      // Predicated region
      $region33: #{res_nn_up_forward.1} parent=11 // pred_check
        %p331 = pneg %p170
      $region34: #{res_nn_up_forward.1} parent=11 // pred_check_branch
        %333 = sbr.rel (%p331) target = $region36
      $region35: #{res_nn_up_forward.1} parent=11 // pred_region
        _
      $region36: #{res_nn_up_forward.1} parent=11 // pred_fallthru
        _
      // Predicated region
      $region37: #{res_nn_up_forward.1} parent=11 // pred_check
        %p334 = pneg %p191
      $region38: #{res_nn_up_forward.1} parent=11 // pred_check_branch
        %336 = sbr.rel (%p334) target = $region40
      $region39: #{res_nn_up_forward.1} parent=11 // pred_region
        _
      $region40: #{res_nn_up_forward.1} parent=11 // pred_fallthru
        _
      // Predicated region
      $region41: #{res_nn_up_forward.1} parent=11 // pred_check
        %p337 = pneg %p212
      $region42: #{res_nn_up_forward.1} parent=11 // pred_check_branch
        %339 = sbr.rel (%p337) target = $region44
      $region43: #{res_nn_up_forward.1} parent=11 // pred_region
        _
      $region44: #{res_nn_up_forward.1} parent=11 // pred_fallthru
        _
      // Predicated region
      $region45: #{res_nn_up_forward.1} parent=11 // pred_check
        %p340 = pneg %p233
      $region46: #{res_nn_up_forward.1} parent=11 // pred_check_branch
        %342 = sbr.rel (%p340) target = $region48
      $region47: #{res_nn_up_forward.1} parent=11 // pred_region
        _
      $region48: #{res_nn_up_forward.1} parent=11 // pred_fallthru
        _
      // Predicated region
      $region49: #{res_nn_up_forward.1} parent=11 // pred_check
        %p343 = pneg %p254
      $region50: #{res_nn_up_forward.1} parent=11 // pred_check_branch
        %345 = sbr.rel (%p343) target = $region52
      $region51: #{res_nn_up_forward.1} parent=11 // pred_region
        _
      $region52: #{res_nn_up_forward.1} parent=11 // pred_fallthru
        _
      // Predicated region
      $region53: #{res_nn_up_forward.1} parent=11 // pred_check
        %p346 = pneg %p275
      $region54: #{res_nn_up_forward.1} parent=11 // pred_check_branch
        %348 = sbr.rel (%p346) target = $region56
      $region55: #{res_nn_up_forward.1} parent=11 // pred_region
        _
      $region56: #{res_nn_up_forward.1} parent=11 // pred_fallthru
        _
    $region12: #{res_nn_up_forward.1} parent=5 // pred_fallthru
      _
    %p349 = scmp.lt.s32.totalorder %s18, 2
    // Predicated region
    $region57: #{res_nn_up_forward.1} parent=5 // pred_check
      %p350 = pneg %p349
    $region58: #{res_nn_up_forward.1} parent=5 // pred_check_branch
      %352 = sbr.rel (%p350) target = $region60
    $region59: #{res_nn_up_forward.1} parent=5 // pred_region
      // Predicated region
      $region61: #{res_nn_up_forward.1} parent=59 // pred_check
        %p353 = pneg %p38
      $region62: #{res_nn_up_forward.1} parent=59 // pred_check_branch
        %355 = sbr.rel (%p353) target = $region64
      $region63: #{res_nn_up_forward.1} parent=59 // pred_region
        %p356 = scmp.lt.s32.totalorder %s18, 1
        %s357 = scalar_select %p356, %s18, 1
        %s358 = smul.addr %s357, 2
        %s359 = smul.addr %s358, 8
        %s360 = scalar_lea.vmem %s0, %s359
      $region64: #{res_nn_up_forward.1} parent=59 // pred_fallthru
        _
    $region60: #{res_nn_up_forward.1} parent=5 // pred_fallthru
      _
    %p361 = scmp.le.s32.totalorder 1, %s18
    %p362 = scmp.lt.s32.totalorder %s18, 3
    %p363 = pnand %p361, %p362
    %p364 = pneg %p363
    // Predicated region
    $region65: #{res_nn_up_forward.1} parent=5 // pred_check
      _
    $region66: #{res_nn_up_forward.1} parent=5 // pred_check_branch
      %366 = sbr.rel (%p363) target = $region68
    $region67: #{res_nn_up_forward.1} parent=5 // pred_region
      %s367 = ssub.s32 %s18, 1
      %p368 = scmp.lt.s32.totalorder %s23, 1
      %s369 = scalar_select %p368, %s23, 1
      %s370 = smul.addr %s369, 2
      %s371 = smul.addr %s370, 8
      %s372 = scalar_lea.vmem %s0, %s371
      %p373 = pneg %p44
      %p374 = pneg %p41
      %p375 = pneg %p65
      %p376 = pneg %p62
      %p377 = pneg %p86
      %p378 = pneg %p83
      %p379 = pneg %p107
      %p380 = pneg %p104
      %p381 = pneg %p128
      %p382 = pneg %p125
      %p383 = pneg %p149
      %p384 = pneg %p146
      %p385 = pneg %p170
      %p386 = pneg %p167
      %p387 = pneg %p191
      %p388 = pneg %p188
      %p389 = pneg %p212
      %p390 = pneg %p209
      %p391 = pneg %p233
      %p392 = pneg %p230
      %p393 = pneg %p254
      %p394 = pneg %p251
      %p395 = pneg %p275
      %p396 = pneg %p272
      %p397 = pneg %p301
      %p398 = pneg %p298
      %p399 = scmp.lt.s32.totalorder %s23, 1
      %s400 = scalar_select %p399, %s23, 1
      %s401 = smul.addr %s400, 8
      %s402 = smul.addr %s401, 8
      %s403 = scalar_lea.vmem %s12, %s402
      %p404 = scmp.lt.s32.totalorder %s23, 1
      %s405 = scalar_select %p404, %s23, 1
      %s406 = smul.addr %s405, 2
      %s407 = smul.addr %s406, 8
      %s408 = scalar_lea.vmem %s0, %s407
      %p409 = scmp.lt.s32.totalorder %s23, 1
      %s410 = scalar_select %p409, %s23, 1
      %s411 = smul.addr %s410, 8
      %s412 = smul.addr %s411, 8
      %s413 = scalar_lea.vmem %s12, %s412
      %v415 = vld [vmem:[%s408] sm:$0xff]
      %v416 = vld [vmem:[%s408 + $0x8] sm:$0xff]
      %v417 = vld [vmem:[%s2] sm:$0xff]
      %v418 = vld [vmem:[%s2 + $0x8] sm:$0xff]
      %v419 = vld [vmem:[%s2 + $0x10] sm:$0xff]
      %v420 = vld [vmem:[%s2 + $0x18] sm:$0xff]
      %v421 = vld [vmem:[%s2 + $0x20] sm:$0xff]
      %v422 = vld [vmem:[%s2 + $0x28] sm:$0xff]
      %v423 = vld [vmem:[%s2 + $0x30] sm:$0xff]
      %v424 = vld [vmem:[%s2 + $0x38] sm:$0xff]
      %vm425 = vcmask 523264
      %v427 = vsel %vm425, %v415, 0
      %v430 = vsel %vm425, %v416, 0
      %432 = vmatprep.subr.mxu0 0.0
      %433 = vmatpush1.msra.mxu0 %v417
      %434 = vmatprep.subr.mxu0 0.0
      %435 = vmatpush1.msra.mxu0 %v418
      %436 = vmatprep.subr.mxu0 0.0
      %437 = vmatpush1.msra.mxu0 %v419
      %438 = vmatprep.subr.mxu0 0.0
      %439 = vmatpush1.msra.mxu0 %v420
      %440 = vmatprep.subr.mxu0 0.0
      %441 = vmatpush1.msra.mxu0 %v421
      %442 = vmatprep.subr.mxu0 0.0
      %443 = vmatpush1.msra.mxu0 %v422
      %444 = vmatprep.subr.mxu0 0.0
      %445 = vmatpush1.msra.mxu0 %v423
      %446 = vmatprep.subr.mxu0 0.0
      %447 = vmatpush1.msra.mxu0 %v424
      %448 = vmatprep.subr.mxu0 0.0
      %449 = vmatpush1.msra.mxu0 0.0
      %450 = vmatprep.subr.mxu0 0.0
      %451 = vmatpush1.msra.mxu0 0.0
      %452 = vmatprep.subr.mxu0 0.0
      %453 = vmatpush1.msra.mxu0 0.0
      %454 = vmatprep.subr.mxu0 0.0
      %455 = vmatpush1.msra.mxu0 0.0
      %456 = vmatprep.subr.mxu0 0.0
      %457 = vmatpush1.msra.mxu0 0.0
      %458 = vmatprep.subr.mxu0 0.0
      %459 = vmatpush1.msra.mxu0 0.0
      %460 = vmatprep.subr.mxu0 0.0
      %461 = vmatpush1.msra.mxu0 0.0
      %462 = vmatprep.subr.mxu0 0.0
      %463 = vmatpush1.msra.mxu0 0.0
      %464 = vmatprep.subr.mxu0 0.0
      %465 = vmatpush1.msra.mxu0 0.0
      %466 = vmatprep.subr.mxu0 0.0
      %467 = vmatpush1.msra.mxu0 0.0
      %468 = vmatprep.subr.mxu0 0.0
      %469 = vmatpush1.msra.mxu0 0.0
      %470 = vmatprep.subr.mxu0 0.0
      %471 = vmatpush1.msra.mxu0 0.0
      %472 = vmatprep.subr.mxu0 0.0
      %473 = vmatpush1.msra.mxu0 0.0
      %474 = vmatprep.subr.mxu0 0.0
      %475 = vmatpush1.msra.mxu0 0.0
      %476 = vmatprep.subr.mxu0 0.0
      %477 = vmatpush1.msra.mxu0 0.0
      %478 = vmatprep.subr.mxu0 0.0
      %479 = vmatpush1.msra.mxu0 0.0
      %480 = vmatprep.subr.mxu0 0.0
      %481 = vmatpush1.msra.mxu0 0.0
      %482 = vmatprep.subr.mxu0 0.0
      %483 = vmatpush1.msra.mxu0 0.0
      %484 = vmatprep.subr.mxu0 0.0
      %485 = vmatpush1.msra.mxu0 0.0
      %486 = vmatprep.subr.mxu0 0.0
      %487 = vmatpush1.msra.mxu0 0.0
      %488 = vmatprep.subr.mxu0 0.0
      %489 = vmatpush1.msra.mxu0 0.0
      %490 = vmatprep.subr.mxu0 0.0
      %491 = vmatpush1.msra.mxu0 0.0
      %492 = vmatprep.subr.mxu0 0.0
      %493 = vmatpush1.msra.mxu0 0.0
      %494 = vmatprep.subr.mxu0 0.0
      %495 = vmatpush1.msra.mxu0 0.0
      %496 = vmatprep.mubr.f32.mxu0 0.0
      %497 = vmatmul.mubr.f32.gmra.mrb[0].mxu0 %v427
      %v498 = vpop.f32.mrb[0].mxu0
      %v499 = vadd.f32 0.0, %v498
      %v500 = vpop.f32.mrb[0].mxu0
      %501 = vmatprep.mubr.f32.mxu0 0.0
      %502 = vmatmul.mubr.f32.gmra.mrb[0].mxu0 %v430
      %v503 = vpop.f32.mrb[0].mxu0
      %v504 = vadd.f32 0.0, %v503
      %v505 = vpop.f32.mrb[0].mxu0
      %506 = vdwg.mxu0
      %v507 = vld [vmem:[%s1] sm:$0xff]
      %v508 = vld [vmem:[%s1 + $0x8] sm:$0xff]
      %v509 = vld [vmem:[%s1 + $0x10] sm:$0xff]
      %v510 = vld [vmem:[%s1 + $0x18] sm:$0xff]
      %vm511 = vcmask 130048
      %v513 = vsel %vm511, %v507, 0
      %v516 = vsel %vm511, %v508, 0
      %v519 = vsel %vm511, %v509, 0
      %v522 = vsel %vm511, %v510, 0
      %524 = vmatprep.subr.mxu0 0.0
      %525 = vmatpush1.msra.mxu0 %v499
      %526 = vmatprep.subr.mxu0 0.0
      %527 = vmatpush1.msra.mxu0 %v504
      %528 = vmatprep.subr.mxu0 0.0
      %529 = vmatpush1.msra.mxu0 0.0
      %530 = vmatprep.subr.mxu0 0.0
      %531 = vmatpush1.msra.mxu0 0.0
      %532 = vmatprep.subr.mxu0 0.0
      %533 = vmatpush1.msra.mxu0 0.0
      %534 = vmatprep.subr.mxu0 0.0
      %535 = vmatpush1.msra.mxu0 0.0
      %536 = vmatprep.subr.mxu0 0.0
      %537 = vmatpush1.msra.mxu0 0.0
      %538 = vmatprep.subr.mxu0 0.0
      %539 = vmatpush1.msra.mxu0 0.0
      %540 = vmatprep.subr.mxu0 0.0
      %541 = vmatpush1.msra.mxu0 0.0
      %542 = vmatprep.subr.mxu0 0.0
      %543 = vmatpush1.msra.mxu0 0.0
      %544 = vmatprep.subr.mxu0 0.0
      %545 = vmatpush1.msra.mxu0 0.0
      %546 = vmatprep.subr.mxu0 0.0
      %547 = vmatpush1.msra.mxu0 0.0
      %548 = vmatprep.subr.mxu0 0.0
      %549 = vmatpush1.msra.mxu0 0.0
      %550 = vmatprep.subr.mxu0 0.0
      %551 = vmatpush1.msra.mxu0 0.0
      %552 = vmatprep.subr.mxu0 0.0
      %553 = vmatpush1.msra.mxu0 0.0
      %554 = vmatprep.subr.mxu0 0.0
      %555 = vmatpush1.msra.mxu0 0.0
      %556 = vmatprep.subr.mxu0 0.0
      %557 = vmatpush1.msra.mxu0 0.0
      %558 = vmatprep.subr.mxu0 0.0
      %559 = vmatpush1.msra.mxu0 0.0
      %560 = vmatprep.subr.mxu0 0.0
      %561 = vmatpush1.msra.mxu0 0.0
      %562 = vmatprep.subr.mxu0 0.0
      %563 = vmatpush1.msra.mxu0 0.0
      %564 = vmatprep.subr.mxu0 0.0
      %565 = vmatpush1.msra.mxu0 0.0
      %566 = vmatprep.subr.mxu0 0.0
      %567 = vmatpush1.msra.mxu0 0.0
      %568 = vmatprep.subr.mxu0 0.0
      %569 = vmatpush1.msra.mxu0 0.0
      %570 = vmatprep.subr.mxu0 0.0
      %571 = vmatpush1.msra.mxu0 0.0
      %572 = vmatprep.subr.mxu0 0.0
      %573 = vmatpush1.msra.mxu0 0.0
      %574 = vmatprep.subr.mxu0 0.0
      %575 = vmatpush1.msra.mxu0 0.0
      %576 = vmatprep.subr.mxu0 0.0
      %577 = vmatpush1.msra.mxu0 0.0
      %578 = vmatprep.subr.mxu0 0.0
      %579 = vmatpush1.msra.mxu0 0.0
      %580 = vmatprep.subr.mxu0 0.0
      %581 = vmatpush1.msra.mxu0 0.0
      %582 = vmatprep.subr.mxu0 0.0
      %583 = vmatpush1.msra.mxu0 0.0
      %584 = vmatprep.subr.mxu0 0.0
      %585 = vmatpush1.msra.mxu0 0.0
      %586 = vmatprep.subr.mxu0 0.0
      %587 = vmatpush1.msra.mxu0 0.0
      %588 = vmatprep.mubr.f32.mxu0 0.0
      %589 = vmatmul.mubr.f32.gmra.mrb[0].mxu0 %v513
      %v590 = vpop.f32.mrb[0].mxu0
      %v591 = vadd.f32 0.0, %v590
      %v592 = vpop.f32.mrb[0].mxu0
      %593 = vmatprep.mubr.f32.mxu0 0.0
      %594 = vmatmul.mubr.f32.gmra.mrb[0].mxu0 %v516
      %v595 = vpop.f32.mrb[0].mxu0
      %v596 = vadd.f32 0.0, %v595
      %v597 = vpop.f32.mrb[0].mxu0
      %598 = vmatprep.mubr.f32.mxu0 0.0
      %599 = vmatmul.mubr.f32.gmra.mrb[0].mxu0 %v519
      %v600 = vpop.f32.mrb[0].mxu0
      %v601 = vadd.f32 0.0, %v600
      %v602 = vpop.f32.mrb[0].mxu0
      %603 = vmatprep.mubr.f32.mxu0 0.0
      %604 = vmatmul.mubr.f32.gmra.mrb[0].mxu0 %v522
      %v605 = vpop.f32.mrb[0].mxu0
      %v606 = vadd.f32 0.0, %v605
      %v607 = vpop.f32.mrb[0].mxu0
      %608 = vdwg.mxu0
      %609 = vst [vmem:[#allocation2] sm:$0x1] 0.0
      %610 = vst [vmem:[#allocation2 + $0x21] sm:$0x1] 0.0
      %611 = vst [vmem:[#allocation2 + $0x1] sm:$0xff] %v591
      %612 = vst [vmem:[#allocation2 + $0x9] sm:$0xff] %v596
      %613 = vst [vmem:[#allocation2 + $0x11] sm:$0xff] %v601
      %614 = vst [vmem:[#allocation2 + $0x19] sm:$0xff] %v606
      %v615 = vld [vmem:[#allocation2] sm:$0xff]
      %v616 = vld [vmem:[#allocation2 + $0x8] sm:$0xff]
      %v617 = vld [vmem:[#allocation2 + $0x10] sm:$0xff]
      %v618 = vld [vmem:[#allocation2 + $0x18] sm:$0xff]
      %v619 = vpack.c.bf16 %v616, %v615
      %v620 = vpack.c.bf16 %v618, %v617
      %v621 = vld [vmem:[%s4] sm:$0xf]
      %v622 = vld [vmem:[%s4 + $0x4] sm:$0xf]
      %v623 = vld [vmem:[%s4 + $0x8] sm:$0xf]
      %v624 = vld [vmem:[%s4 + $0xc] sm:$0xf]
      %v625 = vld [vmem:[%s4 + $0x10] sm:$0xf]
      %v626 = vld [vmem:[%s4 + $0x14] sm:$0xf]
      %v627 = vld [vmem:[%s4 + $0x18] sm:$0xf]
      %v628 = vld [vmem:[%s4 + $0x1c] sm:$0xf]
      %v629 = vld [vmem:[%s4 + $0x20] sm:$0xf]
      %v630 = vld [vmem:[%s4 + $0x24] sm:$0xf]
      %v631 = vld [vmem:[%s4 + $0x28] sm:$0xf]
      %v632 = vld [vmem:[%s4 + $0x2c] sm:$0xf]
      %v633 = vld [vmem:[%s4 + $0x30] sm:$0xf]
      %v634 = vld [vmem:[%s4 + $0x34] sm:$0xf]
      %v635 = vld [vmem:[%s4 + $0x38] sm:$0xf]
      %v636 = vld [vmem:[%s4 + $0x3c] sm:$0xf]
      %v637 = vld [vmem:[#allocation2 + $0x1] sm:$0xff]
      %v638 = vld [vmem:[#allocation2 + $0x9] sm:$0xff]
      %v639 = vld [vmem:[#allocation2 + $0x11] sm:$0xff]
      %v640 = vld [vmem:[#allocation2 + $0x19] sm:$0xff]
      %v641 = vpack.c.bf16 %v638, %v637
      %v642 = vpack.c.bf16 %v640, %v639
      %s643 = scalar_lea.vmem %s4, 64
      %v644 = vld [vmem:[%s643] sm:$0xf]
      %v645 = vld [vmem:[%s643 + $0x4] sm:$0xf]
      %v646 = vld [vmem:[%s643 + $0x8] sm:$0xf]
      %v647 = vld [vmem:[%s643 + $0xc] sm:$0xf]
      %v648 = vld [vmem:[%s643 + $0x10] sm:$0xf]
      %v649 = vld [vmem:[%s643 + $0x14] sm:$0xf]
      %v650 = vld [vmem:[%s643 + $0x18] sm:$0xf]
      %v651 = vld [vmem:[%s643 + $0x1c] sm:$0xf]
      %v652 = vld [vmem:[%s643 + $0x20] sm:$0xf]
      %v653 = vld [vmem:[%s643 + $0x24] sm:$0xf]
      %v654 = vld [vmem:[%s643 + $0x28] sm:$0xf]
      %v655 = vld [vmem:[%s643 + $0x2c] sm:$0xf]
      %v656 = vld [vmem:[%s643 + $0x30] sm:$0xf]
      %v657 = vld [vmem:[%s643 + $0x34] sm:$0xf]
      %v658 = vld [vmem:[%s643 + $0x38] sm:$0xf]
      %v659 = vld [vmem:[%s643 + $0x3c] sm:$0xf]
      %v676 = vunpack.c.l.b16 %v644
      %v677 = vunpack.c.l.b16 %v645
      %v678 = vunpack.c.l.b16 %v646
      %v679 = vunpack.c.l.b16 %v647
      %v680 = vunpack.c.l.b16 %v648
      %v681 = vunpack.c.l.b16 %v649
      %v682 = vunpack.c.l.b16 %v650
      %v683 = vunpack.c.l.b16 %v651
      %v684 = vunpack.c.l.b16 %v652
      %v685 = vunpack.c.l.b16 %v653
      %v686 = vunpack.c.l.b16 %v654
      %v687 = vunpack.c.l.b16 %v655
      %v688 = vunpack.c.l.b16 %v656
      %v689 = vunpack.c.l.b16 %v657
      %v690 = vunpack.c.l.b16 %v658
      %v691 = vunpack.c.l.b16 %v659
      %v692 = vpack.c.b16 %v677, %v676
      %v693 = vpack.c.b16 %v679, %v678
      %v694 = vpack.c.b16 %v681, %v680
      %v695 = vpack.c.b16 %v683, %v682
      %v696 = vpack.c.b16 %v685, %v684
      %v697 = vpack.c.b16 %v687, %v686
      %v698 = vpack.c.b16 %v689, %v688
      %v699 = vpack.c.b16 %v691, %v690
      %708 = vmatprep.subr.bf16.mxu0 0
      %709 = vmatpush1.bf16.msra.mxu0 %v692
      %710 = vmatprep.subr.bf16.mxu0 0
      %711 = vmatpush1.bf16.msra.mxu0 %v693
      %712 = vmatprep.subr.bf16.mxu0 0
      %713 = vmatpush1.bf16.msra.mxu0 %v694
      %714 = vmatprep.subr.bf16.mxu0 0
      %715 = vmatpush1.bf16.msra.mxu0 %v695
      %716 = vmatprep.subr.bf16.mxu0 0
      %717 = vmatpush1.bf16.msra.mxu0 %v696
      %718 = vmatprep.subr.bf16.mxu0 0
      %719 = vmatpush1.bf16.msra.mxu0 %v697
      %720 = vmatprep.subr.bf16.mxu0 0
      %721 = vmatpush1.bf16.msra.mxu0 %v698
      %722 = vmatprep.subr.bf16.mxu0 0
      %723 = vmatpush1.bf16.msra.mxu0 %v699
      %724 = vmatprep.subr.bf16.mxu0 0
      %725 = vmatpush1.bf16.msra.mxu0 0
      %726 = vmatprep.subr.bf16.mxu0 0
      %727 = vmatpush1.bf16.msra.mxu0 0
      %728 = vmatprep.subr.bf16.mxu0 0
      %729 = vmatpush1.bf16.msra.mxu0 0
      %730 = vmatprep.subr.bf16.mxu0 0
      %731 = vmatpush1.bf16.msra.mxu0 0
      %732 = vmatprep.subr.bf16.mxu0 0
      %733 = vmatpush1.bf16.msra.mxu0 0
      %734 = vmatprep.subr.bf16.mxu0 0
      %735 = vmatpush1.bf16.msra.mxu0 0
      %736 = vmatprep.subr.bf16.mxu0 0
      %737 = vmatpush1.bf16.msra.mxu0 0
      %738 = vmatprep.subr.bf16.mxu0 0
      %739 = vmatpush1.bf16.msra.mxu0 0
      %740 = vmatprep.mubr.bf16.mxu0 0
      %741 = vmatmul.mubr.bf16.gmra.mrb[0].mxu0 %v641
      %v742 = vpop.f32.mrb[0].mxu0
      %v743 = vadd.f32 0.0, %v742
      %v744 = vpop.f32.mrb[0].mxu0
      %v745 = vpop.f32.mrb[0].mxu0
      %v746 = vadd.f32 0.0, %v745
      %v747 = vpop.f32.mrb[0].mxu0
      %748 = vmatprep.mubr.bf16.mxu0 0
      %749 = vmatmul.mubr.bf16.gmra.mrb[0].mxu0 %v642
      %v750 = vpop.f32.mrb[0].mxu0
      %v751 = vadd.f32 0.0, %v750
      %v752 = vpop.f32.mrb[0].mxu0
      %v753 = vpop.f32.mrb[0].mxu0
      %v754 = vadd.f32 0.0, %v753
      %v755 = vpop.f32.mrb[0].mxu0
      %756 = vdwg.mxu0
      %v773 = vunpack.c.l.b16 %v621
      %v774 = vunpack.c.l.b16 %v622
      %v775 = vunpack.c.l.b16 %v623
      %v776 = vunpack.c.l.b16 %v624
      %v777 = vunpack.c.l.b16 %v625
      %v778 = vunpack.c.l.b16 %v626
      %v779 = vunpack.c.l.b16 %v627
      %v780 = vunpack.c.l.b16 %v628
      %v781 = vunpack.c.l.b16 %v629
      %v782 = vunpack.c.l.b16 %v630
      %v783 = vunpack.c.l.b16 %v631
      %v784 = vunpack.c.l.b16 %v632
      %v785 = vunpack.c.l.b16 %v633
      %v786 = vunpack.c.l.b16 %v634
      %v787 = vunpack.c.l.b16 %v635
      %v788 = vunpack.c.l.b16 %v636
      %v789 = vpack.c.b16 %v774, %v773
      %v790 = vpack.c.b16 %v776, %v775
      %v791 = vpack.c.b16 %v778, %v777
      %v792 = vpack.c.b16 %v780, %v779
      %v793 = vpack.c.b16 %v782, %v781
      %v794 = vpack.c.b16 %v784, %v783
      %v795 = vpack.c.b16 %v786, %v785
      %v796 = vpack.c.b16 %v788, %v787
      %805 = vmatprep.subr.bf16.mxu0 0
      %806 = vmatpush1.bf16.msra.mxu0 %v789
      %807 = vmatprep.subr.bf16.mxu0 0
      %808 = vmatpush1.bf16.msra.mxu0 %v790
      %809 = vmatprep.subr.bf16.mxu0 0
      %810 = vmatpush1.bf16.msra.mxu0 %v791
      %811 = vmatprep.subr.bf16.mxu0 0
      %812 = vmatpush1.bf16.msra.mxu0 %v792
      %813 = vmatprep.subr.bf16.mxu0 0
      %814 = vmatpush1.bf16.msra.mxu0 %v793
      %815 = vmatprep.subr.bf16.mxu0 0
      %816 = vmatpush1.bf16.msra.mxu0 %v794
      %817 = vmatprep.subr.bf16.mxu0 0
      %818 = vmatpush1.bf16.msra.mxu0 %v795
      %819 = vmatprep.subr.bf16.mxu0 0
      %820 = vmatpush1.bf16.msra.mxu0 %v796
      %821 = vmatprep.subr.bf16.mxu0 0
      %822 = vmatpush1.bf16.msra.mxu0 0
      %823 = vmatprep.subr.bf16.mxu0 0
      %824 = vmatpush1.bf16.msra.mxu0 0
      %825 = vmatprep.subr.bf16.mxu0 0
      %826 = vmatpush1.bf16.msra.mxu0 0
      %827 = vmatprep.subr.bf16.mxu0 0
      %828 = vmatpush1.bf16.msra.mxu0 0
      %829 = vmatprep.subr.bf16.mxu0 0
      %830 = vmatpush1.bf16.msra.mxu0 0
      %831 = vmatprep.subr.bf16.mxu0 0
      %832 = vmatpush1.bf16.msra.mxu0 0
      %833 = vmatprep.subr.bf16.mxu0 0
      %834 = vmatpush1.bf16.msra.mxu0 0
      %835 = vmatprep.subr.bf16.mxu0 0
      %836 = vmatpush1.bf16.msra.mxu0 0
      %837 = vmatprep.mubr.bf16.mxu0 0
      %838 = vmatmul.mubr.bf16.gmra.mrb[0].mxu0 %v619
      %v839 = vpop.f32.mrb[0].mxu0
      %v840 = vadd.f32 %v743, %v839
      %v841 = vpop.f32.mrb[0].mxu0
      %v842 = vpop.f32.mrb[0].mxu0
      %v843 = vadd.f32 %v746, %v842
      %v844 = vpop.f32.mrb[0].mxu0
      %845 = vmatprep.mubr.bf16.mxu0 0
      %846 = vmatmul.mubr.bf16.gmra.mrb[0].mxu0 %v620
      %v847 = vpop.f32.mrb[0].mxu0
      %v848 = vadd.f32 %v751, %v847
      %v849 = vpop.f32.mrb[0].mxu0
      %v850 = vpop.f32.mrb[0].mxu0
      %v851 = vadd.f32 %v754, %v850
      %v852 = vpop.f32.mrb[0].mxu0
      %853 = vdwg.mxu0
      %v854 = vld [vmem:[#allocation2 + $0x2] sm:$0xff]
      %v855 = vld [vmem:[#allocation2 + $0xa] sm:$0xff]
      %v856 = vld [vmem:[#allocation2 + $0x12] sm:$0xff]
      %v857 = vld [vmem:[#allocation2 + $0x1a] sm:$0xff]
      %v858 = vpack.c.bf16 %v855, %v854
      %v859 = vpack.c.bf16 %v857, %v856
      %s860 = scalar_lea.vmem %s4, 128
      %v861 = vld [vmem:[%s860] sm:$0xf]
      %v862 = vld [vmem:[%s860 + $0x4] sm:$0xf]
      %v863 = vld [vmem:[%s860 + $0x8] sm:$0xf]
      %v864 = vld [vmem:[%s860 + $0xc] sm:$0xf]
      %v865 = vld [vmem:[%s860 + $0x10] sm:$0xf]
      %v866 = vld [vmem:[%s860 + $0x14] sm:$0xf]
      %v867 = vld [vmem:[%s860 + $0x18] sm:$0xf]
      %v868 = vld [vmem:[%s860 + $0x1c] sm:$0xf]
      %v869 = vld [vmem:[%s860 + $0x20] sm:$0xf]
      %v870 = vld [vmem:[%s860 + $0x24] sm:$0xf]
      %v871 = vld [vmem:[%s860 + $0x28] sm:$0xf]
      %v872 = vld [vmem:[%s860 + $0x2c] sm:$0xf]
      %v873 = vld [vmem:[%s860 + $0x30] sm:$0xf]
      %v874 = vld [vmem:[%s860 + $0x34] sm:$0xf]
      %v875 = vld [vmem:[%s860 + $0x38] sm:$0xf]
      %v876 = vld [vmem:[%s860 + $0x3c] sm:$0xf]
      %v893 = vunpack.c.l.b16 %v861
      %v894 = vunpack.c.l.b16 %v862
      %v895 = vunpack.c.l.b16 %v863
      %v896 = vunpack.c.l.b16 %v864
      %v897 = vunpack.c.l.b16 %v865
      %v898 = vunpack.c.l.b16 %v866
      %v899 = vunpack.c.l.b16 %v867
      %v900 = vunpack.c.l.b16 %v868
      %v901 = vunpack.c.l.b16 %v869
      %v902 = vunpack.c.l.b16 %v870
      %v903 = vunpack.c.l.b16 %v871
      %v904 = vunpack.c.l.b16 %v872
      %v905 = vunpack.c.l.b16 %v873
      %v906 = vunpack.c.l.b16 %v874
      %v907 = vunpack.c.l.b16 %v875
      %v908 = vunpack.c.l.b16 %v876
      %v909 = vpack.c.b16 %v894, %v893
      %v910 = vpack.c.b16 %v896, %v895
      %v911 = vpack.c.b16 %v898, %v897
      %v912 = vpack.c.b16 %v900, %v899
      %v913 = vpack.c.b16 %v902, %v901
      %v914 = vpack.c.b16 %v904, %v903
      %v915 = vpack.c.b16 %v906, %v905
      %v916 = vpack.c.b16 %v908, %v907
      %925 = vmatprep.subr.bf16.mxu0 0
      %926 = vmatpush1.bf16.msra.mxu0 %v909
      %927 = vmatprep.subr.bf16.mxu0 0
      %928 = vmatpush1.bf16.msra.mxu0 %v910
      %929 = vmatprep.subr.bf16.mxu0 0
      %930 = vmatpush1.bf16.msra.mxu0 %v911
      %931 = vmatprep.subr.bf16.mxu0 0
      %932 = vmatpush1.bf16.msra.mxu0 %v912
      %933 = vmatprep.subr.bf16.mxu0 0
      %934 = vmatpush1.bf16.msra.mxu0 %v913
      %935 = vmatprep.subr.bf16.mxu0 0
      %936 = vmatpush1.bf16.msra.mxu0 %v914
      %937 = vmatprep.subr.bf16.mxu0 0
      %938 = vmatpush1.bf16.msra.mxu0 %v915
      %939 = vmatprep.subr.bf16.mxu0 0
      %940 = vmatpush1.bf16.msra.mxu0 %v916
      %941 = vmatprep.subr.bf16.mxu0 0
      %942 = vmatpush1.bf16.msra.mxu0 0
      %943 = vmatprep.subr.bf16.mxu0 0
      %944 = vmatpush1.bf16.msra.mxu0 0
      %945 = vmatprep.subr.bf16.mxu0 0
      %946 = vmatpush1.bf16.msra.mxu0 0
      %947 = vmatprep.subr.bf16.mxu0 0
      %948 = vmatpush1.bf16.msra.mxu0 0
      %949 = vmatprep.subr.bf16.mxu0 0
      %950 = vmatpush1.bf16.msra.mxu0 0
      %951 = vmatprep.subr.bf16.mxu0 0
      %952 = vmatpush1.bf16.msra.mxu0 0
      %953 = vmatprep.subr.bf16.mxu0 0
      %954 = vmatpush1.bf16.msra.mxu0 0
      %955 = vmatprep.subr.bf16.mxu0 0
      %956 = vmatpush1.bf16.msra.mxu0 0
      %957 = vmatprep.mubr.bf16.mxu0 0
      %958 = vmatmul.mubr.bf16.gmra.mrb[0].mxu0 %v858
      %v959 = vpop.f32.mrb[0].mxu0
      %v960 = vadd.f32 0.0, %v959
      %v961 = vpop.f32.mrb[0].mxu0
      %v962 = vpop.f32.mrb[0].mxu0
      %v963 = vadd.f32 0.0, %v962
      %v964 = vpop.f32.mrb[0].mxu0
      %965 = vmatprep.mubr.bf16.mxu0 0
      %966 = vmatmul.mubr.bf16.gmra.mrb[0].mxu0 %v859
      %v967 = vpop.f32.mrb[0].mxu0
      %v968 = vadd.f32 0.0, %v967
      %v969 = vpop.f32.mrb[0].mxu0
      %v970 = vpop.f32.mrb[0].mxu0
      %v971 = vadd.f32 0.0, %v970
      %v972 = vpop.f32.mrb[0].mxu0
      %973 = vdwg.mxu0
      %v974 = vadd.f32 %v840, %v960
      %v975 = vadd.f32 %v843, %v963
      %v976 = vadd.f32 %v848, %v968
      %v977 = vadd.f32 %v851, %v971
      %v978 = vld [vmem:[%s5] sm:$0x1]
      %v980 = vlaneseq
      %v981 = vshrl.u32 %v980, 7
      %v982 = vsub.s32 0, %v981
      %v983 = vrot.slane %v978, %v982
      %v985 = vadd.f32 %v974, %v983
      %v986 = vadd.f32 %v975, %v983
      %v987 = vadd.f32 %v976, %v983
      %v988 = vadd.f32 %v977, %v983
      %989 = vst [vmem:[#allocation3] sm:$0x1] 0.0
      %990 = vst [vmem:[#allocation3 + $0x21] sm:$0x1] 0.0
      %991 = vst [vmem:[#allocation3 + $0x1] sm:$0xff] %v985
      %992 = vst [vmem:[#allocation3 + $0x9] sm:$0xff] %v986
      %993 = vst [vmem:[#allocation3 + $0x11] sm:$0xff] %v987
      %994 = vst [vmem:[#allocation3 + $0x19] sm:$0xff] %v988
      %v995 = vld [vmem:[#allocation3] sm:$0xff]
      %v996 = vld [vmem:[#allocation3 + $0x8] sm:$0xff]
      %v997 = vld [vmem:[#allocation3 + $0x10] sm:$0xff]
      %v998 = vld [vmem:[#allocation3 + $0x18] sm:$0xff]
      %v999 = vpack.c.bf16 %v996, %v995
      %v1000 = vpack.c.bf16 %v998, %v997
      %v1001 = vld [vmem:[%s6] sm:$0xff]
      %v1002 = vld [vmem:[%s6 + $0x8] sm:$0xff]
      %v1003 = vld [vmem:[%s6 + $0x10] sm:$0xff]
      %v1004 = vld [vmem:[%s6 + $0x18] sm:$0xff]
      %v1005 = vld [vmem:[%s6 + $0x20] sm:$0xff]
      %v1006 = vld [vmem:[%s6 + $0x28] sm:$0xff]
      %v1007 = vld [vmem:[%s6 + $0x30] sm:$0xff]
      %v1008 = vld [vmem:[%s6 + $0x38] sm:$0xff]
      %v1009 = vld [vmem:[%s6 + $0x40] sm:$0xff]
      %v1010 = vld [vmem:[%s6 + $0x48] sm:$0xff]
      %v1011 = vld [vmem:[%s6 + $0x50] sm:$0xff]
      %v1012 = vld [vmem:[%s6 + $0x58] sm:$0xff]
      %v1013 = vld [vmem:[%s6 + $0x60] sm:$0xff]
      %v1014 = vld [vmem:[%s6 + $0x68] sm:$0xff]
      %v1015 = vld [vmem:[%s6 + $0x70] sm:$0xff]
      %v1016 = vld [vmem:[%s6 + $0x78] sm:$0xff]
      %v1017 = vld [vmem:[#allocation3 + $0x1] sm:$0xff]
      %v1018 = vld [vmem:[#allocation3 + $0x9] sm:$0xff]
      %v1019 = vld [vmem:[#allocation3 + $0x11] sm:$0xff]
      %v1020 = vld [vmem:[#allocation3 + $0x19] sm:$0xff]
      %v1021 = vpack.c.bf16 %v1018, %v1017
      %v1022 = vpack.c.bf16 %v1020, %v1019
      %s1023 = scalar_lea.vmem %s6, 128
      %v1024 = vld [vmem:[%s1023] sm:$0xff]
      %v1025 = vld [vmem:[%s1023 + $0x8] sm:$0xff]
      %v1026 = vld [vmem:[%s1023 + $0x10] sm:$0xff]
      %v1027 = vld [vmem:[%s1023 + $0x18] sm:$0xff]
      %v1028 = vld [vmem:[%s1023 + $0x20] sm:$0xff]
      %v1029 = vld [vmem:[%s1023 + $0x28] sm:$0xff]
      %v1030 = vld [vmem:[%s1023 + $0x30] sm:$0xff]
      %v1031 = vld [vmem:[%s1023 + $0x38] sm:$0xff]
      %v1032 = vld [vmem:[%s1023 + $0x40] sm:$0xff]
      %v1033 = vld [vmem:[%s1023 + $0x48] sm:$0xff]
      %v1034 = vld [vmem:[%s1023 + $0x50] sm:$0xff]
      %v1035 = vld [vmem:[%s1023 + $0x58] sm:$0xff]
      %v1036 = vld [vmem:[%s1023 + $0x60] sm:$0xff]
      %v1037 = vld [vmem:[%s1023 + $0x68] sm:$0xff]
      %v1038 = vld [vmem:[%s1023 + $0x70] sm:$0xff]
      %v1039 = vld [vmem:[%s1023 + $0x78] sm:$0xff]
      %v1056 = vunpack.c.l.b16 %v1024
      %v1057 = vunpack.c.h.b16 %v1024
      %v1058 = vunpack.c.l.b16 %v1025
      %v1059 = vunpack.c.h.b16 %v1025
      %v1060 = vunpack.c.l.b16 %v1026
      %v1061 = vunpack.c.h.b16 %v1026
      %v1062 = vunpack.c.l.b16 %v1027
      %v1063 = vunpack.c.h.b16 %v1027
      %v1064 = vunpack.c.l.b16 %v1028
      %v1065 = vunpack.c.h.b16 %v1028
      %v1066 = vunpack.c.l.b16 %v1029
      %v1067 = vunpack.c.h.b16 %v1029
      %v1068 = vunpack.c.l.b16 %v1030
      %v1069 = vunpack.c.h.b16 %v1030
      %v1070 = vunpack.c.l.b16 %v1031
      %v1071 = vunpack.c.h.b16 %v1031
      %v1072 = vunpack.c.l.b16 %v1032
      %v1073 = vunpack.c.h.b16 %v1032
      %v1074 = vunpack.c.l.b16 %v1033
      %v1075 = vunpack.c.h.b16 %v1033
      %v1076 = vunpack.c.l.b16 %v1034
      %v1077 = vunpack.c.h.b16 %v1034
      %v1078 = vunpack.c.l.b16 %v1035
      %v1079 = vunpack.c.h.b16 %v1035
      %v1080 = vunpack.c.l.b16 %v1036
      %v1081 = vunpack.c.h.b16 %v1036
      %v1082 = vunpack.c.l.b16 %v1037
      %v1083 = vunpack.c.h.b16 %v1037
      %v1084 = vunpack.c.l.b16 %v1038
      %v1085 = vunpack.c.h.b16 %v1038
      %v1086 = vunpack.c.l.b16 %v1039
      %v1087 = vunpack.c.h.b16 %v1039
      %v1088 = vpack.c.b16 %v1058, %v1056
      %v1089 = vpack.c.b16 %v1059, %v1057
      %v1090 = vpack.c.b16 %v1062, %v1060
      %v1091 = vpack.c.b16 %v1063, %v1061
      %v1092 = vpack.c.b16 %v1066, %v1064
      %v1093 = vpack.c.b16 %v1067, %v1065
      %v1094 = vpack.c.b16 %v1070, %v1068
      %v1095 = vpack.c.b16 %v1071, %v1069
      %v1096 = vpack.c.b16 %v1074, %v1072
      %v1097 = vpack.c.b16 %v1075, %v1073
      %v1098 = vpack.c.b16 %v1078, %v1076
      %v1099 = vpack.c.b16 %v1079, %v1077
      %v1100 = vpack.c.b16 %v1082, %v1080
      %v1101 = vpack.c.b16 %v1083, %v1081
      %v1102 = vpack.c.b16 %v1086, %v1084
      %v1103 = vpack.c.b16 %v1087, %v1085
      %1120 = vmatprep.subr.bf16.mxu0 %v1089
      %1121 = vmatpush1.bf16.msra.mxu0 %v1088
      %1122 = vmatprep.subr.bf16.mxu0 %v1091
      %1123 = vmatpush1.bf16.msra.mxu0 %v1090
      %1124 = vmatprep.subr.bf16.mxu0 %v1093
      %1125 = vmatpush1.bf16.msra.mxu0 %v1092
      %1126 = vmatprep.subr.bf16.mxu0 %v1095
      %1127 = vmatpush1.bf16.msra.mxu0 %v1094
      %1128 = vmatprep.subr.bf16.mxu0 %v1097
      %1129 = vmatpush1.bf16.msra.mxu0 %v1096
      %1130 = vmatprep.subr.bf16.mxu0 %v1099
      %1131 = vmatpush1.bf16.msra.mxu0 %v1098
      %1132 = vmatprep.subr.bf16.mxu0 %v1101
      %1133 = vmatpush1.bf16.msra.mxu0 %v1100
      %1134 = vmatprep.subr.bf16.mxu0 %v1103
      %1135 = vmatpush1.bf16.msra.mxu0 %v1102
      %1136 = vmatprep.subr.bf16.mxu0 0
      %1137 = vmatpush1.bf16.msra.mxu0 0
      %1138 = vmatprep.subr.bf16.mxu0 0
      %1139 = vmatpush1.bf16.msra.mxu0 0
      %1140 = vmatprep.subr.bf16.mxu0 0
      %1141 = vmatpush1.bf16.msra.mxu0 0
      %1142 = vmatprep.subr.bf16.mxu0 0
      %1143 = vmatpush1.bf16.msra.mxu0 0
      %1144 = vmatprep.subr.bf16.mxu0 0
      %1145 = vmatpush1.bf16.msra.mxu0 0
      %1146 = vmatprep.subr.bf16.mxu0 0
      %1147 = vmatpush1.bf16.msra.mxu0 0
      %1148 = vmatprep.subr.bf16.mxu0 0
      %1149 = vmatpush1.bf16.msra.mxu0 0
      %1150 = vmatprep.subr.bf16.mxu0 0
      %1151 = vmatpush1.bf16.msra.mxu0 0
      %1152 = vmatprep.mubr.bf16.mxu0 0
      %1153 = vmatmul.mubr.bf16.gmra.mrb[0].mxu0 %v1021
      %v1154 = vpop.f32.mrb[0].mxu0
      %v1155 = vadd.f32 0.0, %v1154
      %v1156 = vpop.f32.mrb[0].mxu0
      %v1157 = vadd.f32 0.0, %v1156
      %v1158 = vpop.f32.mrb[0].mxu0
      %v1159 = vadd.f32 0.0, %v1158
      %v1160 = vpop.f32.mrb[0].mxu0
      %v1161 = vadd.f32 0.0, %v1160
      %1162 = vmatprep.mubr.bf16.mxu0 0
      %1163 = vmatmul.mubr.bf16.gmra.mrb[0].mxu0 %v1022
      %v1164 = vpop.f32.mrb[0].mxu0
      %v1165 = vadd.f32 0.0, %v1164
      %v1166 = vpop.f32.mrb[0].mxu0
      %v1167 = vadd.f32 0.0, %v1166
      %v1168 = vpop.f32.mrb[0].mxu0
      %v1169 = vadd.f32 0.0, %v1168
      %v1170 = vpop.f32.mrb[0].mxu0
      %v1171 = vadd.f32 0.0, %v1170
      %1172 = vdwg.mxu0
      %v1189 = vunpack.c.l.b16 %v1001
      %v1190 = vunpack.c.h.b16 %v1001
      %v1191 = vunpack.c.l.b16 %v1002
      %v1192 = vunpack.c.h.b16 %v1002
      %v1193 = vunpack.c.l.b16 %v1003
      %v1194 = vunpack.c.h.b16 %v1003
      %v1195 = vunpack.c.l.b16 %v1004
      %v1196 = vunpack.c.h.b16 %v1004
      %v1197 = vunpack.c.l.b16 %v1005
      %v1198 = vunpack.c.h.b16 %v1005
      %v1199 = vunpack.c.l.b16 %v1006
      %v1200 = vunpack.c.h.b16 %v1006
      %v1201 = vunpack.c.l.b16 %v1007
      %v1202 = vunpack.c.h.b16 %v1007
      %v1203 = vunpack.c.l.b16 %v1008
      %v1204 = vunpack.c.h.b16 %v1008
      %v1205 = vunpack.c.l.b16 %v1009
      %v1206 = vunpack.c.h.b16 %v1009
      %v1207 = vunpack.c.l.b16 %v1010
      %v1208 = vunpack.c.h.b16 %v1010
      %v1209 = vunpack.c.l.b16 %v1011
      %v1210 = vunpack.c.h.b16 %v1011
      %v1211 = vunpack.c.l.b16 %v1012
      %v1212 = vunpack.c.h.b16 %v1012
      %v1213 = vunpack.c.l.b16 %v1013
      %v1214 = vunpack.c.h.b16 %v1013
      %v1215 = vunpack.c.l.b16 %v1014
      %v1216 = vunpack.c.h.b16 %v1014
      %v1217 = vunpack.c.l.b16 %v1015
      %v1218 = vunpack.c.h.b16 %v1015
      %v1219 = vunpack.c.l.b16 %v1016
      %v1220 = vunpack.c.h.b16 %v1016
      %v1221 = vpack.c.b16 %v1191, %v1189
      %v1222 = vpack.c.b16 %v1192, %v1190
      %v1223 = vpack.c.b16 %v1195, %v1193
      %v1224 = vpack.c.b16 %v1196, %v1194
      %v1225 = vpack.c.b16 %v1199, %v1197
      %v1226 = vpack.c.b16 %v1200, %v1198
      %v1227 = vpack.c.b16 %v1203, %v1201
      %v1228 = vpack.c.b16 %v1204, %v1202
      %v1229 = vpack.c.b16 %v1207, %v1205
      %v1230 = vpack.c.b16 %v1208, %v1206
      %v1231 = vpack.c.b16 %v1211, %v1209
      %v1232 = vpack.c.b16 %v1212, %v1210
      %v1233 = vpack.c.b16 %v1215, %v1213
      %v1234 = vpack.c.b16 %v1216, %v1214
      %v1235 = vpack.c.b16 %v1219, %v1217
      %v1236 = vpack.c.b16 %v1220, %v1218
      %1253 = vmatprep.subr.bf16.mxu0 %v1222
      %1254 = vmatpush1.bf16.msra.mxu0 %v1221
      %1255 = vmatprep.subr.bf16.mxu0 %v1224
      %1256 = vmatpush1.bf16.msra.mxu0 %v1223
      %1257 = vmatprep.subr.bf16.mxu0 %v1226
      %1258 = vmatpush1.bf16.msra.mxu0 %v1225
      %1259 = vmatprep.subr.bf16.mxu0 %v1228
      %1260 = vmatpush1.bf16.msra.mxu0 %v1227
      %1261 = vmatprep.subr.bf16.mxu0 %v1230
      %1262 = vmatpush1.bf16.msra.mxu0 %v1229
      %1263 = vmatprep.subr.bf16.mxu0 %v1232
      %1264 = vmatpush1.bf16.msra.mxu0 %v1231
      %1265 = vmatprep.subr.bf16.mxu0 %v1234
      %1266 = vmatpush1.bf16.msra.mxu0 %v1233
      %1267 = vmatprep.subr.bf16.mxu0 %v1236
      %1268 = vmatpush1.bf16.msra.mxu0 %v1235
      %1269 = vmatprep.subr.bf16.mxu0 0
      %1270 = vmatpush1.bf16.msra.mxu0 0
      %1271 = vmatprep.subr.bf16.mxu0 0
      %1272 = vmatpush1.bf16.msra.mxu0 0
      %1273 = vmatprep.subr.bf16.mxu0 0
      %1274 = vmatpush1.bf16.msra.mxu0 0
      %1275 = vmatprep.subr.bf16.mxu0 0
      %1276 = vmatpush1.bf16.msra.mxu0 0
      %1277 = vmatprep.subr.bf16.mxu0 0
      %1278 = vmatpush1.bf16.msra.mxu0 0
      %1279 = vmatprep.subr.bf16.mxu0 0
      %1280 = vmatpush1.bf16.msra.mxu0 0
      %1281 = vmatprep.subr.bf16.mxu0 0
      %1282 = vmatpush1.bf16.msra.mxu0 0
      %1283 = vmatprep.subr.bf16.mxu0 0
      %1284 = vmatpush1.bf16.msra.mxu0 0
      %1285 = vmatprep.mubr.bf16.mxu0 0
      %1286 = vmatmul.mubr.bf16.gmra.mrb[0].mxu0 %v999
      %v1287 = vpop.f32.mrb[0].mxu0
      %v1288 = vadd.f32 %v1155, %v1287
      %v1289 = vpop.f32.mrb[0].mxu0
      %v1290 = vadd.f32 %v1157, %v1289
      %v1291 = vpop.f32.mrb[0].mxu0
      %v1292 = vadd.f32 %v1159, %v1291
      %v1293 = vpop.f32.mrb[0].mxu0
      %v1294 = vadd.f32 %v1161, %v1293
      %1295 = vmatprep.mubr.bf16.mxu0 0
      %1296 = vmatmul.mubr.bf16.gmra.mrb[0].mxu0 %v1000
      %v1297 = vpop.f32.mrb[0].mxu0
      %v1298 = vadd.f32 %v1165, %v1297
      %v1299 = vpop.f32.mrb[0].mxu0
      %v1300 = vadd.f32 %v1167, %v1299
      %v1301 = vpop.f32.mrb[0].mxu0
      %v1302 = vadd.f32 %v1169, %v1301
      %v1303 = vpop.f32.mrb[0].mxu0
      %v1304 = vadd.f32 %v1171, %v1303
      %1305 = vdwg.mxu0
      %v1306 = vld [vmem:[#allocation3 + $0x2] sm:$0xff]
      %v1307 = vld [vmem:[#allocation3 + $0xa] sm:$0xff]
      %v1308 = vld [vmem:[#allocation3 + $0x12] sm:$0xff]
      %v1309 = vld [vmem:[#allocation3 + $0x1a] sm:$0xff]
      %v1310 = vpack.c.bf16 %v1307, %v1306
      %v1311 = vpack.c.bf16 %v1309, %v1308
      %s1312 = scalar_lea.vmem %s6, 256
      %v1313 = vld [vmem:[%s1312] sm:$0xff]
      %v1314 = vld [vmem:[%s1312 + $0x8] sm:$0xff]
      %v1315 = vld [vmem:[%s1312 + $0x10] sm:$0xff]
      %v1316 = vld [vmem:[%s1312 + $0x18] sm:$0xff]
      %v1317 = vld [vmem:[%s1312 + $0x20] sm:$0xff]
      %v1318 = vld [vmem:[%s1312 + $0x28] sm:$0xff]
      %v1319 = vld [vmem:[%s1312 + $0x30] sm:$0xff]
      %v1320 = vld [vmem:[%s1312 + $0x38] sm:$0xff]
      %v1321 = vld [vmem:[%s1312 + $0x40] sm:$0xff]
      %v1322 = vld [vmem:[%s1312 + $0x48] sm:$0xff]
      %v1323 = vld [vmem:[%s1312 + $0x50] sm:$0xff]
      %v1324 = vld [vmem:[%s1312 + $0x58] sm:$0xff]
      %v1325 = vld [vmem:[%s1312 + $0x60] sm:$0xff]
      %v1326 = vld [vmem:[%s1312 + $0x68] sm:$0xff]
      %v1327 = vld [vmem:[%s1312 + $0x70] sm:$0xff]
      %v1328 = vld [vmem:[%s1312 + $0x78] sm:$0xff]
      %v1345 = vunpack.c.l.b16 %v1313
      %v1346 = vunpack.c.h.b16 %v1313
      %v1347 = vunpack.c.l.b16 %v1314
      %v1348 = vunpack.c.h.b16 %v1314
      %v1349 = vunpack.c.l.b16 %v1315
      %v1350 = vunpack.c.h.b16 %v1315
      %v1351 = vunpack.c.l.b16 %v1316
      %v1352 = vunpack.c.h.b16 %v1316
      %v1353 = vunpack.c.l.b16 %v1317
      %v1354 = vunpack.c.h.b16 %v1317
      %v1355 = vunpack.c.l.b16 %v1318
      %v1356 = vunpack.c.h.b16 %v1318
      %v1357 = vunpack.c.l.b16 %v1319
      %v1358 = vunpack.c.h.b16 %v1319
      %v1359 = vunpack.c.l.b16 %v1320
      %v1360 = vunpack.c.h.b16 %v1320
      %v1361 = vunpack.c.l.b16 %v1321
      %v1362 = vunpack.c.h.b16 %v1321
      %v1363 = vunpack.c.l.b16 %v1322
      %v1364 = vunpack.c.h.b16 %v1322
      %v1365 = vunpack.c.l.b16 %v1323
      %v1366 = vunpack.c.h.b16 %v1323
      %v1367 = vunpack.c.l.b16 %v1324
      %v1368 = vunpack.c.h.b16 %v1324
      %v1369 = vunpack.c.l.b16 %v1325
      %v1370 = vunpack.c.h.b16 %v1325
      %v1371 = vunpack.c.l.b16 %v1326
      %v1372 = vunpack.c.h.b16 %v1326
      %v1373 = vunpack.c.l.b16 %v1327
      %v1374 = vunpack.c.h.b16 %v1327
      %v1375 = vunpack.c.l.b16 %v1328
      %v1376 = vunpack.c.h.b16 %v1328
      %v1377 = vpack.c.b16 %v1347, %v1345
      %v1378 = vpack.c.b16 %v1348, %v1346
      %v1379 = vpack.c.b16 %v1351, %v1349
      %v1380 = vpack.c.b16 %v1352, %v1350
      %v1381 = vpack.c.b16 %v1355, %v1353
      %v1382 = vpack.c.b16 %v1356, %v1354
      %v1383 = vpack.c.b16 %v1359, %v1357
      %v1384 = vpack.c.b16 %v1360, %v1358
      %v1385 = vpack.c.b16 %v1363, %v1361
      %v1386 = vpack.c.b16 %v1364, %v1362
      %v1387 = vpack.c.b16 %v1367, %v1365
      %v1388 = vpack.c.b16 %v1368, %v1366
      %v1389 = vpack.c.b16 %v1371, %v1369
      %v1390 = vpack.c.b16 %v1372, %v1370
      %v1391 = vpack.c.b16 %v1375, %v1373
      %v1392 = vpack.c.b16 %v1376, %v1374
      %1409 = vmatprep.subr.bf16.mxu0 %v1378
      %1410 = vmatpush1.bf16.msra.mxu0 %v1377
      %1411 = vmatprep.subr.bf16.mxu0 %v1380
      %1412 = vmatpush1.bf16.msra.mxu0 %v1379
      %1413 = vmatprep.subr.bf16.mxu0 %v1382
      %1414 = vmatpush1.bf16.msra.mxu0 %v1381
      %1415 = vmatprep.subr.bf16.mxu0 %v1384
      %1416 = vmatpush1.bf16.msra.mxu0 %v1383
      %1417 = vmatprep.subr.bf16.mxu0 %v1386
      %1418 = vmatpush1.bf16.msra.mxu0 %v1385
      %1419 = vmatprep.subr.bf16.mxu0 %v1388
      %1420 = vmatpush1.bf16.msra.mxu0 %v1387
      %1421 = vmatprep.subr.bf16.mxu0 %v1390
      %1422 = vmatpush1.bf16.msra.mxu0 %v1389
      %1423 = vmatprep.subr.bf16.mxu0 %v1392
      %1424 = vmatpush1.bf16.msra.mxu0 %v1391
      %1425 = vmatprep.subr.bf16.mxu0 0
      %1426 = vmatpush1.bf16.msra.mxu0 0
      %1427 = vmatprep.subr.bf16.mxu0 0
      %1428 = vmatpush1.bf16.msra.mxu0 0
      %1429 = vmatprep.subr.bf16.mxu0 0
      %1430 = vmatpush1.bf16.msra.mxu0 0
      %1431 = vmatprep.subr.bf16.mxu0 0
      %1432 = vmatpush1.bf16.msra.mxu0 0
      %1433 = vmatprep.subr.bf16.mxu0 0
      %1434 = vmatpush1.bf16.msra.mxu0 0
      %1435 = vmatprep.subr.bf16.mxu0 0
      %1436 = vmatpush1.bf16.msra.mxu0 0
      %1437 = vmatprep.subr.bf16.mxu0 0
      %1438 = vmatpush1.bf16.msra.mxu0 0
      %1439 = vmatprep.subr.bf16.mxu0 0
      %1440 = vmatpush1.bf16.msra.mxu0 0
      %1441 = vmatprep.mubr.bf16.mxu0 0
      %1442 = vmatmul.mubr.bf16.gmra.mrb[0].mxu0 %v1310
      %v1443 = vpop.f32.mrb[0].mxu0
      %v1444 = vadd.f32 0.0, %v1443
      %v1445 = vpop.f32.mrb[0].mxu0
      %v1446 = vadd.f32 0.0, %v1445
      %v1447 = vpop.f32.mrb[0].mxu0
      %v1448 = vadd.f32 0.0, %v1447
      %v1449 = vpop.f32.mrb[0].mxu0
      %v1450 = vadd.f32 0.0, %v1449
      %1451 = vmatprep.mubr.bf16.mxu0 0
      %1452 = vmatmul.mubr.bf16.gmra.mrb[0].mxu0 %v1311
      %v1453 = vpop.f32.mrb[0].mxu0
      %v1454 = vadd.f32 0.0, %v1453
      %v1455 = vpop.f32.mrb[0].mxu0
      %v1456 = vadd.f32 0.0, %v1455
      %v1457 = vpop.f32.mrb[0].mxu0
      %v1458 = vadd.f32 0.0, %v1457
      %v1459 = vpop.f32.mrb[0].mxu0
      %v1460 = vadd.f32 0.0, %v1459
      %1461 = vdwg.mxu0
      %v1462 = vadd.f32 %v1288, %v1444
      %v1463 = vadd.f32 %v1290, %v1446
      %v1464 = vadd.f32 %v1292, %v1448
      %v1465 = vadd.f32 %v1294, %v1450
      %v1466 = vadd.f32 %v1298, %v1454
      %v1467 = vadd.f32 %v1300, %v1456
      %v1468 = vadd.f32 %v1302, %v1458
      %v1469 = vadd.f32 %v1304, %v1460
      %v1470 = vld [vmem:[%s7] sm:$0x3]
      %v1472 = vlaneseq
      %v1473 = vshrl.u32 %v1472, 7
      %v1474 = vsub.s32 0, %v1473
      %v1475 = vrot.slane %v1470, %v1474
      %v1476 = vlaneseq
      %v1477 = vshrl.u32 %v1476, 7
      %v1478 = vsub.s32 1, %v1477
      %v1479 = vrot.slane %v1470, %v1478
      %v1482 = vadd.f32 %v1462, %v1475
      %v1483 = vadd.f32 %v1463, %v1479
      %v1484 = vadd.f32 %v1464, %v1475
      %v1485 = vadd.f32 %v1465, %v1479
      %v1486 = vadd.f32 %v1466, %v1475
      %v1487 = vadd.f32 %v1467, %v1479
      %v1488 = vadd.f32 %v1468, %v1475
      %v1489 = vadd.f32 %v1469, %v1479
      %v1490 = vadd.f32 %v1482, %v1484
      %v1491 = vadd.f32 %v1490, %v1486
      %v1492 = vadd.f32 %v1491, %v1488
      %v1493 = vrot.slane %v1492, 4
      %v1494 = vadd.f32 %v1492, %v1493
      %v1495 = vrot.slane %v1494, 2
      %v1496 = vadd.f32 %v1494, %v1495
      %v1497 = vrot.slane %v1496, 1
      %v1498 = vadd.f32 %v1496, %v1497
      %v1499 = vadd.f32 %v1483, %v1485
      %v1500 = vadd.f32 %v1499, %v1487
      %v1501 = vadd.f32 %v1500, %v1489
      %v1502 = vrot.slane %v1501, 4
      %v1503 = vadd.f32 %v1501, %v1502
      %v1504 = vrot.slane %v1503, 2
      %v1505 = vadd.f32 %v1503, %v1504
      %v1506 = vrot.slane %v1505, 1
      %v1507 = vadd.f32 %v1505, %v1506
      %v1508 = vmul.f32 %v1482, %v1482
      %v1509 = vmul.f32 %v1483, %v1483
      %v1510 = vmul.f32 %v1484, %v1484
      %v1511 = vmul.f32 %v1485, %v1485
      %v1512 = vmul.f32 %v1486, %v1486
      %v1513 = vmul.f32 %v1487, %v1487
      %v1514 = vmul.f32 %v1488, %v1488
      %v1515 = vmul.f32 %v1489, %v1489
      %v1516 = vadd.f32 %v1508, %v1510
      %v1517 = vadd.f32 %v1516, %v1512
      %v1518 = vadd.f32 %v1517, %v1514
      %v1519 = vrot.slane %v1518, 4
      %v1520 = vadd.f32 %v1518, %v1519
      %v1521 = vrot.slane %v1520, 2
      %v1522 = vadd.f32 %v1520, %v1521
      %v1523 = vrot.slane %v1522, 1
      %v1524 = vadd.f32 %v1522, %v1523
      %v1525 = vadd.f32 %v1509, %v1511
      %v1526 = vadd.f32 %v1525, %v1513
      %v1527 = vadd.f32 %v1526, %v1515
      %v1528 = vrot.slane %v1527, 4
      %v1529 = vadd.f32 %v1527, %v1528
      %v1530 = vrot.slane %v1529, 2
      %v1531 = vadd.f32 %v1529, %v1530
      %v1532 = vrot.slane %v1531, 1
      %v1533 = vadd.f32 %v1531, %v1532
      %v1534 = vld [vmem:[%s3] sm:$0xff]
      %v1535 = vld [vmem:[%s3 + $0x8] sm:$0xff]
      %v1536 = vld [vmem:[%s3 + $0x10] sm:$0xff]
      %v1537 = vld [vmem:[%s3 + $0x18] sm:$0xff]
      %v1538 = vld [vmem:[%s3 + $0x20] sm:$0xff]
      %v1539 = vld [vmem:[%s3 + $0x28] sm:$0xff]
      %v1540 = vld [vmem:[%s3 + $0x30] sm:$0xff]
      %v1541 = vld [vmem:[%s3 + $0x38] sm:$0xff]
      %v1542 = vld [vmem:[%s3 + $0x40] sm:$0xff]
      %v1543 = vld [vmem:[%s3 + $0x48] sm:$0xff]
      %v1544 = vld [vmem:[%s3 + $0x50] sm:$0xff]
      %v1545 = vld [vmem:[%s3 + $0x58] sm:$0xff]
      %v1546 = vld [vmem:[%s3 + $0x60] sm:$0xff]
      %v1547 = vld [vmem:[%s3 + $0x68] sm:$0xff]
      %v1548 = vld [vmem:[%s3 + $0x70] sm:$0xff]
      %v1549 = vld [vmem:[%s3 + $0x78] sm:$0xff]
      %v1550 = vld [vmem:[%s3 + $0x80] sm:$0xff]
      %v1551 = vld [vmem:[%s3 + $0x88] sm:$0xff]
      %v1552 = vld [vmem:[%s3 + $0x90] sm:$0xff]
      %v1553 = vld [vmem:[%s3 + $0x98] sm:$0xff]
      %v1554 = vld [vmem:[%s3 + $0xa0] sm:$0xff]
      %v1555 = vld [vmem:[%s3 + $0xa8] sm:$0xff]
      %v1556 = vld [vmem:[%s3 + $0xb0] sm:$0xff]
      %v1557 = vld [vmem:[%s3 + $0xb8] sm:$0xff]
      %v1558 = vld [vmem:[%s3 + $0xc0] sm:$0xff]
      %v1559 = vld [vmem:[%s3 + $0xc8] sm:$0xff]
      %v1560 = vld [vmem:[%s3 + $0xd0] sm:$0xff]
      %v1561 = vld [vmem:[%s3 + $0xd8] sm:$0xff]
      %v1562 = vld [vmem:[%s3 + $0xe0] sm:$0xff]
      %v1563 = vld [vmem:[%s3 + $0xe8] sm:$0xff]
      %v1564 = vld [vmem:[%s3 + $0xf0] sm:$0xff]
      %v1565 = vld [vmem:[%s3 + $0xf8] sm:$0xff]
      %v1566 = vld [vmem:[%s3 + $0x100] sm:$0xff]
      %v1567 = vld [vmem:[%s3 + $0x108] sm:$0xff]
      %v1568 = vld [vmem:[%s3 + $0x110] sm:$0xff]
      %v1569 = vld [vmem:[%s3 + $0x118] sm:$0xff]
      %v1570 = vld [vmem:[%s3 + $0x120] sm:$0xff]
      %v1571 = vld [vmem:[%s3 + $0x128] sm:$0xff]
      %v1572 = vld [vmem:[%s3 + $0x130] sm:$0xff]
      %v1573 = vld [vmem:[%s3 + $0x138] sm:$0xff]
      %v1574 = vld [vmem:[%s3 + $0x140] sm:$0xff]
      %v1575 = vld [vmem:[%s3 + $0x148] sm:$0xff]
      %v1576 = vld [vmem:[%s3 + $0x150] sm:$0xff]
      %v1577 = vld [vmem:[%s3 + $0x158] sm:$0xff]
      %v1578 = vld [vmem:[%s3 + $0x160] sm:$0xff]
      %v1579 = vld [vmem:[%s3 + $0x168] sm:$0xff]
      %v1580 = vld [vmem:[%s3 + $0x170] sm:$0xff]
      %v1581 = vld [vmem:[%s3 + $0x178] sm:$0xff]
      %v1582 = vld [vmem:[%s3 + $0x180] sm:$0xff]
      %v1583 = vld [vmem:[%s3 + $0x188] sm:$0xff]
      %v1584 = vld [vmem:[%s3 + $0x190] sm:$0xff]
      %v1585 = vld [vmem:[%s3 + $0x198] sm:$0xff]
      %v1586 = vld [vmem:[%s3 + $0x1a0] sm:$0xff]
      %v1587 = vld [vmem:[%s3 + $0x1a8] sm:$0xff]
      %v1588 = vld [vmem:[%s3 + $0x1b0] sm:$0xff]
      %v1589 = vld [vmem:[%s3 + $0x1b8] sm:$0xff]
      %v1590 = vld [vmem:[%s3 + $0x1c0] sm:$0xff]
      %v1591 = vld [vmem:[%s3 + $0x1c8] sm:$0xff]
      %v1592 = vld [vmem:[%s3 + $0x1d0] sm:$0xff]
      %v1593 = vld [vmem:[%s3 + $0x1d8] sm:$0xff]
      %v1594 = vld [vmem:[%s3 + $0x1e0] sm:$0xff]
      %v1595 = vld [vmem:[%s3 + $0x1e8] sm:$0xff]
      %v1596 = vld [vmem:[%s3 + $0x1f0] sm:$0xff]
      %v1597 = vld [vmem:[%s3 + $0x1f8] sm:$0xff]
      %1598 = vmatprep.subr.mxu0 %v1535
      %1599 = vmatpush1.msra.mxu0 %v1534
      %1600 = vmatprep.subr.mxu0 %v1537
      %1601 = vmatpush1.msra.mxu0 %v1536
      %1602 = vmatprep.subr.mxu0 %v1539
      %1603 = vmatpush1.msra.mxu0 %v1538
      %1604 = vmatprep.subr.mxu0 %v1541
      %1605 = vmatpush1.msra.mxu0 %v1540
      %1606 = vmatprep.subr.mxu0 %v1543
      %1607 = vmatpush1.msra.mxu0 %v1542
      %1608 = vmatprep.subr.mxu0 %v1545
      %1609 = vmatpush1.msra.mxu0 %v1544
      %1610 = vmatprep.subr.mxu0 %v1547
      %1611 = vmatpush1.msra.mxu0 %v1546
      %1612 = vmatprep.subr.mxu0 %v1549
      %1613 = vmatpush1.msra.mxu0 %v1548
      %1614 = vmatprep.subr.mxu0 %v1551
      %1615 = vmatpush1.msra.mxu0 %v1550
      %1616 = vmatprep.subr.mxu0 %v1553
      %1617 = vmatpush1.msra.mxu0 %v1552
      %1618 = vmatprep.subr.mxu0 %v1555
      %1619 = vmatpush1.msra.mxu0 %v1554
      %1620 = vmatprep.subr.mxu0 %v1557
      %1621 = vmatpush1.msra.mxu0 %v1556
      %1622 = vmatprep.subr.mxu0 %v1559
      %1623 = vmatpush1.msra.mxu0 %v1558
      %1624 = vmatprep.subr.mxu0 %v1561
      %1625 = vmatpush1.msra.mxu0 %v1560
      %1626 = vmatprep.subr.mxu0 %v1563
      %1627 = vmatpush1.msra.mxu0 %v1562
      %1628 = vmatprep.subr.mxu0 %v1565
      %1629 = vmatpush1.msra.mxu0 %v1564
      %1630 = vmatprep.subr.mxu0 %v1567
      %1631 = vmatpush1.msra.mxu0 %v1566
      %1632 = vmatprep.subr.mxu0 %v1569
      %1633 = vmatpush1.msra.mxu0 %v1568
      %1634 = vmatprep.subr.mxu0 %v1571
      %1635 = vmatpush1.msra.mxu0 %v1570
      %1636 = vmatprep.subr.mxu0 %v1573
      %1637 = vmatpush1.msra.mxu0 %v1572
      %1638 = vmatprep.subr.mxu0 %v1575
      %1639 = vmatpush1.msra.mxu0 %v1574
      %1640 = vmatprep.subr.mxu0 %v1577
      %1641 = vmatpush1.msra.mxu0 %v1576
      %1642 = vmatprep.subr.mxu0 %v1579
      %1643 = vmatpush1.msra.mxu0 %v1578
      %1644 = vmatprep.subr.mxu0 %v1581
      %1645 = vmatpush1.msra.mxu0 %v1580
      %1646 = vmatprep.subr.mxu0 %v1583
      %1647 = vmatpush1.msra.mxu0 %v1582
      %1648 = vmatprep.subr.mxu0 %v1585
      %1649 = vmatpush1.msra.mxu0 %v1584
      %1650 = vmatprep.subr.mxu0 %v1587
      %1651 = vmatpush1.msra.mxu0 %v1586
      %1652 = vmatprep.subr.mxu0 %v1589
      %1653 = vmatpush1.msra.mxu0 %v1588
      %1654 = vmatprep.subr.mxu0 %v1591
      %1655 = vmatpush1.msra.mxu0 %v1590
      %1656 = vmatprep.subr.mxu0 %v1593
      %1657 = vmatpush1.msra.mxu0 %v1592
      %1658 = vmatprep.subr.mxu0 %v1595
      %1659 = vmatpush1.msra.mxu0 %v1594
      %1660 = vmatprep.subr.mxu0 %v1597
      %1661 = vmatpush1.msra.mxu0 %v1596
      %1662 = vmatprep.mubr.f32.mxu0 %v1507
      %1663 = vmatmul.mubr.f32.gmra.mrb[0].mxu0 %v1498
      %v1664 = vpop.f32.mrb[0].mxu0
      %v1665 = vadd.f32 0.0, %v1664
      %v1666 = vpop.f32.mrb[0].mxu0
      %v1667 = vadd.f32 0.0, %v1666
      %1668 = vdwg.mxu0
      %v1669 = vmul.f32 %v1665, 0.0009765625
      %v1670 = vmul.f32 %v1667, 0.0009765625
      %1671 = vmatprep.subr.mxu0 %v1535
      %1672 = vmatpush1.msra.mxu0 %v1534
      %1673 = vmatprep.subr.mxu0 %v1537
      %1674 = vmatpush1.msra.mxu0 %v1536
      %1675 = vmatprep.subr.mxu0 %v1539
      %1676 = vmatpush1.msra.mxu0 %v1538
      %1677 = vmatprep.subr.mxu0 %v1541
      %1678 = vmatpush1.msra.mxu0 %v1540
      %1679 = vmatprep.subr.mxu0 %v1543
      %1680 = vmatpush1.msra.mxu0 %v1542
      %1681 = vmatprep.subr.mxu0 %v1545
      %1682 = vmatpush1.msra.mxu0 %v1544
      %1683 = vmatprep.subr.mxu0 %v1547
      %1684 = vmatpush1.msra.mxu0 %v1546
      %1685 = vmatprep.subr.mxu0 %v1549
      %1686 = vmatpush1.msra.mxu0 %v1548
      %1687 = vmatprep.subr.mxu0 %v1551
      %1688 = vmatpush1.msra.mxu0 %v1550
      %1689 = vmatprep.subr.mxu0 %v1553
      %1690 = vmatpush1.msra.mxu0 %v1552
      %1691 = vmatprep.subr.mxu0 %v1555
      %1692 = vmatpush1.msra.mxu0 %v1554
      %1693 = vmatprep.subr.mxu0 %v1557
      %1694 = vmatpush1.msra.mxu0 %v1556
      %1695 = vmatprep.subr.mxu0 %v1559
      %1696 = vmatpush1.msra.mxu0 %v1558
      %1697 = vmatprep.subr.mxu0 %v1561
      %1698 = vmatpush1.msra.mxu0 %v1560
      %1699 = vmatprep.subr.mxu0 %v1563
      %1700 = vmatpush1.msra.mxu0 %v1562
      %1701 = vmatprep.subr.mxu0 %v1565
      %1702 = vmatpush1.msra.mxu0 %v1564
      %1703 = vmatprep.subr.mxu0 %v1567
      %1704 = vmatpush1.msra.mxu0 %v1566
      %1705 = vmatprep.subr.mxu0 %v1569
      %1706 = vmatpush1.msra.mxu0 %v1568
      %1707 = vmatprep.subr.mxu0 %v1571
      %1708 = vmatpush1.msra.mxu0 %v1570
      %1709 = vmatprep.subr.mxu0 %v1573
      %1710 = vmatpush1.msra.mxu0 %v1572
      %1711 = vmatprep.subr.mxu0 %v1575
      %1712 = vmatpush1.msra.mxu0 %v1574
      %1713 = vmatprep.subr.mxu0 %v1577
      %1714 = vmatpush1.msra.mxu0 %v1576
      %1715 = vmatprep.subr.mxu0 %v1579
      %1716 = vmatpush1.msra.mxu0 %v1578
      %1717 = vmatprep.subr.mxu0 %v1581
      %1718 = vmatpush1.msra.mxu0 %v1580
      %1719 = vmatprep.subr.mxu0 %v1583
      %1720 = vmatpush1.msra.mxu0 %v1582
      %1721 = vmatprep.subr.mxu0 %v1585
      %1722 = vmatpush1.msra.mxu0 %v1584
      %1723 = vmatprep.subr.mxu0 %v1587
      %1724 = vmatpush1.msra.mxu0 %v1586
      %1725 = vmatprep.subr.mxu0 %v1589
      %1726 = vmatpush1.msra.mxu0 %v1588
      %1727 = vmatprep.subr.mxu0 %v1591
      %1728 = vmatpush1.msra.mxu0 %v1590
      %1729 = vmatprep.subr.mxu0 %v1593
      %1730 = vmatpush1.msra.mxu0 %v1592
      %1731 = vmatprep.subr.mxu0 %v1595
      %1732 = vmatpush1.msra.mxu0 %v1594
      %1733 = vmatprep.subr.mxu0 %v1597
      %1734 = vmatpush1.msra.mxu0 %v1596
      %1735 = vmatprep.mubr.f32.mxu0 %v1533
      %1736 = vmatmul.mubr.f32.gmra.mrb[0].mxu0 %v1524
      %v1737 = vpop.f32.mrb[0].mxu0
      %v1738 = vadd.f32 0.0, %v1737
      %v1739 = vpop.f32.mrb[0].mxu0
      %v1740 = vadd.f32 0.0, %v1739
      %1741 = vdwg.mxu0
      %v1742 = vmul.f32 %v1738, 0.0009765625
      %v1743 = vmul.f32 %v1740, 0.0009765625
      %v1744 = vmul.f32 %v1669, %v1669
      %v1745 = vmul.f32 %v1670, %v1670
      %v1746 = vsub.f32 %v1742, %v1744
      %v1747 = vsub.f32 %v1743, %v1745
      %v1748 = vmax.f32 %v1746, 0.0
      %v1749 = vmax.f32 %v1747, 0.0
      %v1750 = vlaneseq
      %v1751 = vshrl.u32 %v1750, 7
      %v1752 = vsub.s32 0, %v1751
      %v1753 = vrot.slane %v1669, %v1752
      %v1754 = vlaneseq
      %v1755 = vshrl.u32 %v1754, 7
      %v1756 = vsub.s32 0, %v1755
      %v1757 = vrot.slane %v1670, %v1756
      %v1758 = vsub.f32 %v1482, %v1753
      %v1759 = vsub.f32 %v1483, %v1757
      %v1760 = vsub.f32 %v1484, %v1753
      %v1761 = vsub.f32 %v1485, %v1757
      %v1762 = vsub.f32 %v1486, %v1753
      %v1763 = vsub.f32 %v1487, %v1757
      %v1764 = vsub.f32 %v1488, %v1753
      %v1765 = vsub.f32 %v1489, %v1757
      %v1766 = vadd.f32 %v1748, 1e-05
      %v1767 = vadd.f32 %v1749, 1e-05
      %v1768 = vrsqrt.pop %v1766
      %v1769 = vrsqrt.pop %v1767
      %v1770 = vlaneseq
      %v1771 = vshrl.u32 %v1770, 7
      %v1772 = vsub.s32 0, %v1771
      %v1773 = vrot.slane %v1768, %v1772
      %v1774 = vlaneseq
      %v1775 = vshrl.u32 %v1774, 7
      %v1776 = vsub.s32 0, %v1775
      %v1777 = vrot.slane %v1769, %v1776
      %v1778 = vmul.f32 %v1758, %v1773
      %v1779 = vmul.f32 %v1759, %v1777
      %v1780 = vmul.f32 %v1760, %v1773
      %v1781 = vmul.f32 %v1761, %v1777
      %v1782 = vmul.f32 %v1762, %v1773
      %v1783 = vmul.f32 %v1763, %v1777
      %v1784 = vmul.f32 %v1764, %v1773
      %v1785 = vmul.f32 %v1765, %v1777
      %vm1786 = vcmp.ge.f32.partialorder %v1778, 0.0
      %vm1787 = vcmp.ge.f32.partialorder %v1779, 0.0
      %vm1788 = vcmp.ge.f32.partialorder %v1780, 0.0
      %vm1789 = vcmp.ge.f32.partialorder %v1781, 0.0
      %vm1790 = vcmp.ge.f32.partialorder %v1782, 0.0
      %vm1791 = vcmp.ge.f32.partialorder %v1783, 0.0
      %vm1792 = vcmp.ge.f32.partialorder %v1784, 0.0
      %vm1793 = vcmp.ge.f32.partialorder %v1785, 0.0
      %v1794 = vmul.f32 %v1778, 0.2
      %v1795 = vmul.f32 %v1779, 0.2
      %v1796 = vmul.f32 %v1780, 0.2
      %v1797 = vmul.f32 %v1781, 0.2
      %v1798 = vmul.f32 %v1782, 0.2
      %v1799 = vmul.f32 %v1783, 0.2
      %v1800 = vmul.f32 %v1784, 0.2
      %v1801 = vmul.f32 %v1785, 0.2
      %v1802 = vsel %vm1786, %v1778, %v1794
      %v1803 = vsel %vm1787, %v1779, %v1795
      %v1804 = vsel %vm1788, %v1780, %v1796
      %v1805 = vsel %vm1789, %v1781, %v1797
      %v1806 = vsel %vm1790, %v1782, %v1798
      %v1807 = vsel %vm1791, %v1783, %v1799
      %v1808 = vsel %vm1792, %v1784, %v1800
      %v1809 = vsel %vm1793, %v1785, %v1801
      %v1810 = vlaneseq
      %vm1811 = vcmp.ge.s32.totalorder %v1810, 0
      %vm1812 = vcmp.lt.s32.totalorder %v1810, 256
      %vm1813 = vmand %vm1811, %vm1812
      %1814 = vst.msk [vmem:[#allocation4] ss:$8 sm:$0x3] %vm1813, 0.0
      %1815 = vst.msk [vmem:[#allocation4] ss:$8 sm:$0x0] %vm1813, 0.0
      %s1816 = scalar_lea.vmem [#allocation4], 65
      %1817 = vst.msk [vmem:[%s1816] ss:$8 sm:$0x3] %vm1813, 0.0
      %1818 = vst.msk [vmem:[%s1816] ss:$8 sm:$0x0] %vm1813, 0.0
      %vm1827 = vcmask 1040384
      %v1828 = vrot.slane %v1802, 7
      %v1829 = vrot.slane %v1803, 7
      %v1830 = vrot.slane %v1804, 7
      %v1831 = vsel %vm1827, %v1828, %v1830
      %v1832 = vrot.slane %v1805, 7
      %v1833 = vsel %vm1827, %v1829, %v1832
      %v1834 = vrot.slane %v1806, 7
      %v1835 = vsel %vm1827, %v1830, %v1834
      %v1836 = vrot.slane %v1807, 7
      %v1837 = vsel %vm1827, %v1832, %v1836
      %v1838 = vrot.slane %v1808, 7
      %v1839 = vsel %vm1827, %v1834, %v1838
      %v1840 = vrot.slane %v1809, 7
      %v1841 = vsel %vm1827, %v1836, %v1840
      %1852 = vst [vmem:[#allocation4] sm:$0xfe] %v1828
      %1853 = vst [vmem:[#allocation4 + $0x8] sm:$0xfe] %v1829
      %1854 = vst [vmem:[#allocation4 + $0x10] sm:$0xff] %v1831
      %1855 = vst [vmem:[#allocation4 + $0x18] sm:$0xff] %v1833
      %1856 = vst [vmem:[#allocation4 + $0x20] sm:$0xff] %v1835
      %1857 = vst [vmem:[#allocation4 + $0x28] sm:$0xff] %v1837
      %1858 = vst [vmem:[#allocation4 + $0x30] sm:$0xff] %v1839
      %1859 = vst [vmem:[#allocation4 + $0x38] sm:$0xff] %v1841
      %1860 = vst [vmem:[#allocation4 + $0x40] sm:$0x1] %v1838
      %1861 = vst [vmem:[#allocation4 + $0x48] sm:$0x1] %v1840
      %v1862 = vld [vmem:[#allocation4] sm:$0xff]
      %v1863 = vld [vmem:[#allocation4 + $0x8] sm:$0xff]
      %v1864 = vld [vmem:[#allocation4 + $0x10] sm:$0xff]
      %v1865 = vld [vmem:[#allocation4 + $0x18] sm:$0xff]
      %v1866 = vld [vmem:[#allocation4 + $0x20] sm:$0xff]
      %v1867 = vld [vmem:[#allocation4 + $0x28] sm:$0xff]
      %v1868 = vld [vmem:[#allocation4 + $0x30] sm:$0xff]
      %v1869 = vld [vmem:[#allocation4 + $0x38] sm:$0xff]
      %v1870 = vpack.c.bf16 %v1864, %v1862
      %v1871 = vpack.c.bf16 %v1865, %v1863
      %v1872 = vpack.c.bf16 %v1868, %v1866
      %v1873 = vpack.c.bf16 %v1869, %v1867
      %v1874 = vld [vmem:[%s8] sm:$0xff]
      %v1875 = vld [vmem:[%s8 + $0x8] sm:$0xff]
      %v1876 = vld [vmem:[%s8 + $0x10] sm:$0xff]
      %v1877 = vld [vmem:[%s8 + $0x18] sm:$0xff]
      %v1878 = vld [vmem:[%s8 + $0x20] sm:$0xff]
      %v1879 = vld [vmem:[%s8 + $0x28] sm:$0xff]
      %v1880 = vld [vmem:[%s8 + $0x30] sm:$0xff]
      %v1881 = vld [vmem:[%s8 + $0x38] sm:$0xff]
      %v1882 = vld [vmem:[%s8 + $0x40] sm:$0xff]
      %v1883 = vld [vmem:[%s8 + $0x48] sm:$0xff]
      %v1884 = vld [vmem:[%s8 + $0x50] sm:$0xff]
      %v1885 = vld [vmem:[%s8 + $0x58] sm:$0xff]
      %v1886 = vld [vmem:[%s8 + $0x60] sm:$0xff]
      %v1887 = vld [vmem:[%s8 + $0x68] sm:$0xff]
      %v1888 = vld [vmem:[%s8 + $0x70] sm:$0xff]
      %v1889 = vld [vmem:[%s8 + $0x78] sm:$0xff]
      %v1890 = vld [vmem:[%s8 + $0x80] sm:$0xff]
      %v1891 = vld [vmem:[%s8 + $0x88] sm:$0xff]
      %v1892 = vld [vmem:[%s8 + $0x90] sm:$0xff]
      %v1893 = vld [vmem:[%s8 + $0x98] sm:$0xff]
      %v1894 = vld [vmem:[%s8 + $0xa0] sm:$0xff]
      %v1895 = vld [vmem:[%s8 + $0xa8] sm:$0xff]
      %v1896 = vld [vmem:[%s8 + $0xb0] sm:$0xff]
      %v1897 = vld [vmem:[%s8 + $0xb8] sm:$0xff]
      %v1898 = vld [vmem:[%s8 + $0xc0] sm:$0xff]
      %v1899 = vld [vmem:[%s8 + $0xc8] sm:$0xff]
      %v1900 = vld [vmem:[%s8 + $0xd0] sm:$0xff]
      %v1901 = vld [vmem:[%s8 + $0xd8] sm:$0xff]
      %v1902 = vld [vmem:[%s8 + $0xe0] sm:$0xff]
      %v1903 = vld [vmem:[%s8 + $0xe8] sm:$0xff]
      %v1904 = vld [vmem:[%s8 + $0xf0] sm:$0xff]
      %v1905 = vld [vmem:[%s8 + $0xf8] sm:$0xff]
      %v1906 = vld [vmem:[#allocation4] sm:$0xfe]
      %v1907 = vld [vmem:[#allocation4 + $0x8] sm:$0xfe]
      %v1908 = vld [vmem:[#allocation4 + $0x40] sm:$0x1]
      %v1909 = vld [vmem:[#allocation4 + $0x48] sm:$0x1]
      %v1910 = vpack.c.bf16 %v1864, %v1906
      %v1911 = vpack.c.bf16 %v1865, %v1907
      %v1912 = vpack.c.bf16 %v1908, %v1908
      %v1913 = vpack.c.bf16 %v1909, %v1909
      %s1914 = scalar_lea.vmem %s8, 256
      %v1915 = vld [vmem:[%s1914] sm:$0xff]
      %v1916 = vld [vmem:[%s1914 + $0x8] sm:$0xff]
      %v1917 = vld [vmem:[%s1914 + $0x10] sm:$0xff]
      %v1918 = vld [vmem:[%s1914 + $0x18] sm:$0xff]
      %v1919 = vld [vmem:[%s1914 + $0x20] sm:$0xff]
      %v1920 = vld [vmem:[%s1914 + $0x28] sm:$0xff]
      %v1921 = vld [vmem:[%s1914 + $0x30] sm:$0xff]
      %v1922 = vld [vmem:[%s1914 + $0x38] sm:$0xff]
      %v1923 = vld [vmem:[%s1914 + $0x40] sm:$0xff]
      %v1924 = vld [vmem:[%s1914 + $0x48] sm:$0xff]
      %v1925 = vld [vmem:[%s1914 + $0x50] sm:$0xff]
      %v1926 = vld [vmem:[%s1914 + $0x58] sm:$0xff]
      %v1927 = vld [vmem:[%s1914 + $0x60] sm:$0xff]
      %v1928 = vld [vmem:[%s1914 + $0x68] sm:$0xff]
      %v1929 = vld [vmem:[%s1914 + $0x70] sm:$0xff]
      %v1930 = vld [vmem:[%s1914 + $0x78] sm:$0xff]
      %v1931 = vld [vmem:[%s1914 + $0x80] sm:$0xff]
      %v1932 = vld [vmem:[%s1914 + $0x88] sm:$0xff]
      %v1933 = vld [vmem:[%s1914 + $0x90] sm:$0xff]
      %v1934 = vld [vmem:[%s1914 + $0x98] sm:$0xff]
      %v1935 = vld [vmem:[%s1914 + $0xa0] sm:$0xff]
      %v1936 = vld [vmem:[%s1914 + $0xa8] sm:$0xff]
      %v1937 = vld [vmem:[%s1914 + $0xb0] sm:$0xff]
      %v1938 = vld [vmem:[%s1914 + $0xb8] sm:$0xff]
      %v1939 = vld [vmem:[%s1914 + $0xc0] sm:$0xff]
      %v1940 = vld [vmem:[%s1914 + $0xc8] sm:$0xff]
      %v1941 = vld [vmem:[%s1914 + $0xd0] sm:$0xff]
      %v1942 = vld [vmem:[%s1914 + $0xd8] sm:$0xff]
      %v1943 = vld [vmem:[%s1914 + $0xe0] sm:$0xff]
      %v1944 = vld [vmem:[%s1914 + $0xe8] sm:$0xff]
      %v1945 = vld [vmem:[%s1914 + $0xf0] sm:$0xff]
      %v1946 = vld [vmem:[%s1914 + $0xf8] sm:$0xff]
      %vm1947 = vsmask.f32 7424
      %v1949 = vshrl.u32 %v1910, 16
      %v1951 = vshll.u32 %v1910, 16
      %v1953 = vrot.slane %v1951, 1
      %v1954 = vor.u32 %v1949, %v1953
      %v1956 = vshll.u32 %v1872, 16
      %v1958 = vrot.slane %v1956, 1
      %v1959 = vsel %vm1947, %v1954, %v1958
      %v1961 = vshrl.u32 %v1911, 16
      %v1963 = vshll.u32 %v1911, 16
      %v1965 = vrot.slane %v1963, 1
      %v1966 = vor.u32 %v1961, %v1965
      %v1968 = vshll.u32 %v1873, 16
      %v1970 = vrot.slane %v1968, 1
      %v1971 = vsel %vm1947, %v1966, %v1970
      %v1972 = vshrl.u32 %v1872, 16
      %v1974 = vor.u32 %v1972, %v1958
      %v1976 = vshll.u32 %v1912, 16
      %v1978 = vrot.slane %v1976, 1
      %v1979 = vsel %vm1947, %v1974, %v1978
      %v1980 = vshrl.u32 %v1873, 16
      %v1982 = vor.u32 %v1980, %v1970
      %v1984 = vshll.u32 %v1913, 16
      %v1986 = vrot.slane %v1984, 1
      %v1987 = vsel %vm1947, %v1982, %v1986
      %v2024 = vunpack.c.l.b16 %v1915
      %v2025 = vunpack.c.h.b16 %v1915
      %v2026 = vunpack.c.l.b16 %v1916
      %v2027 = vunpack.c.h.b16 %v1916
      %v2028 = vunpack.c.l.b16 %v1917
      %v2029 = vunpack.c.h.b16 %v1917
      %v2030 = vunpack.c.l.b16 %v1918
      %v2031 = vunpack.c.h.b16 %v1918
      %v2032 = vunpack.c.l.b16 %v1919
      %v2033 = vunpack.c.h.b16 %v1919
      %v2034 = vunpack.c.l.b16 %v1920
      %v2035 = vunpack.c.h.b16 %v1920
      %v2036 = vunpack.c.l.b16 %v1921
      %v2037 = vunpack.c.h.b16 %v1921
      %v2038 = vunpack.c.l.b16 %v1922
      %v2039 = vunpack.c.h.b16 %v1922
      %v2040 = vunpack.c.l.b16 %v1923
      %v2041 = vunpack.c.h.b16 %v1923
      %v2042 = vunpack.c.l.b16 %v1924
      %v2043 = vunpack.c.h.b16 %v1924
      %v2044 = vunpack.c.l.b16 %v1925
      %v2045 = vunpack.c.h.b16 %v1925
      %v2046 = vunpack.c.l.b16 %v1926
      %v2047 = vunpack.c.h.b16 %v1926
      %v2048 = vunpack.c.l.b16 %v1927
      %v2049 = vunpack.c.h.b16 %v1927
      %v2050 = vunpack.c.l.b16 %v1928
      %v2051 = vunpack.c.h.b16 %v1928
      %v2052 = vunpack.c.l.b16 %v1929
      %v2053 = vunpack.c.h.b16 %v1929
      %v2054 = vunpack.c.l.b16 %v1930
      %v2055 = vunpack.c.h.b16 %v1930
      %v2056 = vunpack.c.l.b16 %v1931
      %v2057 = vunpack.c.h.b16 %v1931
      %v2058 = vunpack.c.l.b16 %v1932
      %v2059 = vunpack.c.h.b16 %v1932
      %v2060 = vunpack.c.l.b16 %v1933
      %v2061 = vunpack.c.h.b16 %v1933
      %v2062 = vunpack.c.l.b16 %v1934
      %v2063 = vunpack.c.h.b16 %v1934
      %v2064 = vunpack.c.l.b16 %v1935
      %v2065 = vunpack.c.h.b16 %v1935
      %v2066 = vunpack.c.l.b16 %v1936
      %v2067 = vunpack.c.h.b16 %v1936
      %v2068 = vunpack.c.l.b16 %v1937
      %v2069 = vunpack.c.h.b16 %v1937
      %v2070 = vunpack.c.l.b16 %v1938
      %v2071 = vunpack.c.h.b16 %v1938
      %v2072 = vunpack.c.l.b16 %v1939
      %v2073 = vunpack.c.h.b16 %v1939
      %v2074 = vunpack.c.l.b16 %v1940
      %v2075 = vunpack.c.h.b16 %v1940
      %v2076 = vunpack.c.l.b16 %v1941
      %v2077 = vunpack.c.h.b16 %v1941
      %v2078 = vunpack.c.l.b16 %v1942
      %v2079 = vunpack.c.h.b16 %v1942
      %v2080 = vunpack.c.l.b16 %v1943
      %v2081 = vunpack.c.h.b16 %v1943
      %v2082 = vunpack.c.l.b16 %v1944
      %v2083 = vunpack.c.h.b16 %v1944
      %v2084 = vunpack.c.l.b16 %v1945
      %v2085 = vunpack.c.h.b16 %v1945
      %v2086 = vunpack.c.l.b16 %v1946
      %v2087 = vunpack.c.h.b16 %v1946
      %v2088 = vpack.c.b16 %v2026, %v2024
      %v2089 = vpack.c.b16 %v2027, %v2025
      %v2090 = vpack.c.b16 %v2030, %v2028
      %v2091 = vpack.c.b16 %v2031, %v2029
      %v2092 = vpack.c.b16 %v2034, %v2032
      %v2093 = vpack.c.b16 %v2035, %v2033
      %v2094 = vpack.c.b16 %v2038, %v2036
      %v2095 = vpack.c.b16 %v2039, %v2037
      %v2096 = vpack.c.b16 %v2042, %v2040
      %v2097 = vpack.c.b16 %v2043, %v2041
      %v2098 = vpack.c.b16 %v2046, %v2044
      %v2099 = vpack.c.b16 %v2047, %v2045
      %v2100 = vpack.c.b16 %v2050, %v2048
      %v2101 = vpack.c.b16 %v2051, %v2049
      %v2102 = vpack.c.b16 %v2054, %v2052
      %v2103 = vpack.c.b16 %v2055, %v2053
      %v2104 = vpack.c.b16 %v2058, %v2056
      %v2105 = vpack.c.b16 %v2059, %v2057
      %v2106 = vpack.c.b16 %v2062, %v2060
      %v2107 = vpack.c.b16 %v2063, %v2061
      %v2108 = vpack.c.b16 %v2066, %v2064
      %v2109 = vpack.c.b16 %v2067, %v2065
      %v2110 = vpack.c.b16 %v2070, %v2068
      %v2111 = vpack.c.b16 %v2071, %v2069
      %v2112 = vpack.c.b16 %v2074, %v2072
      %v2113 = vpack.c.b16 %v2075, %v2073
      %v2114 = vpack.c.b16 %v2078, %v2076
      %v2115 = vpack.c.b16 %v2079, %v2077
      %v2116 = vpack.c.b16 %v2082, %v2080
      %v2117 = vpack.c.b16 %v2083, %v2081
      %v2118 = vpack.c.b16 %v2086, %v2084
      %v2119 = vpack.c.b16 %v2087, %v2085
      %2152 = vmatprep.subr.bf16.mxu0 %v2089
      %2153 = vmatpush1.bf16.msra.mxu0 %v2088
      %2154 = vmatprep.subr.bf16.mxu0 %v2091
      %2155 = vmatpush1.bf16.msra.mxu0 %v2090
      %2156 = vmatprep.subr.bf16.mxu0 %v2093
      %2157 = vmatpush1.bf16.msra.mxu0 %v2092
      %2158 = vmatprep.subr.bf16.mxu0 %v2095
      %2159 = vmatpush1.bf16.msra.mxu0 %v2094
      %2160 = vmatprep.subr.bf16.mxu0 %v2097
      %2161 = vmatpush1.bf16.msra.mxu0 %v2096
      %2162 = vmatprep.subr.bf16.mxu0 %v2099
      %2163 = vmatpush1.bf16.msra.mxu0 %v2098
      %2164 = vmatprep.subr.bf16.mxu0 %v2101
      %2165 = vmatpush1.bf16.msra.mxu0 %v2100
      %2166 = vmatprep.subr.bf16.mxu0 %v2103
      %2167 = vmatpush1.bf16.msra.mxu0 %v2102
      %2168 = vmatprep.subr.bf16.mxu0 %v2105
      %2169 = vmatpush1.bf16.msra.mxu0 %v2104
      %2170 = vmatprep.subr.bf16.mxu0 %v2107
      %2171 = vmatpush1.bf16.msra.mxu0 %v2106
      %2172 = vmatprep.subr.bf16.mxu0 %v2109
      %2173 = vmatpush1.bf16.msra.mxu0 %v2108
      %2174 = vmatprep.subr.bf16.mxu0 %v2111
      %2175 = vmatpush1.bf16.msra.mxu0 %v2110
      %2176 = vmatprep.subr.bf16.mxu0 %v2113
      %2177 = vmatpush1.bf16.msra.mxu0 %v2112
      %2178 = vmatprep.subr.bf16.mxu0 %v2115
      %2179 = vmatpush1.bf16.msra.mxu0 %v2114
      %2180 = vmatprep.subr.bf16.mxu0 %v2117
      %2181 = vmatpush1.bf16.msra.mxu0 %v2116
      %2182 = vmatprep.subr.bf16.mxu0 %v2119
      %2183 = vmatpush1.bf16.msra.mxu0 %v2118
      %2184 = vmatprep.mubr.bf16.mxu0 %v1971
      %2185 = vmatmul.mubr.bf16.gmra.mrb[0].mxu0 %v1959
      %v2186 = vpop.f32.mrb[0].mxu0
      %v2187 = vadd.f32 0.0, %v2186
      %v2188 = vpop.f32.mrb[0].mxu0
      %v2189 = vadd.f32 0.0, %v2188
      %v2190 = vpop.f32.mrb[0].mxu0
      %v2191 = vadd.f32 0.0, %v2190
      %v2192 = vpop.f32.mrb[0].mxu0
      %v2193 = vadd.f32 0.0, %v2192
      %2194 = vmatprep.mubr.bf16.mxu0 %v1987
      %2195 = vmatmul.mubr.bf16.gmra.mrb[0].mxu0 %v1979
      %v2196 = vpop.f32.mrb[0].mxu0
      %v2197 = vadd.f32 0.0, %v2196
      %v2198 = vpop.f32.mrb[0].mxu0
      %v2199 = vadd.f32 0.0, %v2198
      %v2200 = vpop.f32.mrb[0].mxu0
      %v2201 = vadd.f32 0.0, %v2200
      %v2202 = vpop.f32.mrb[0].mxu0
      %v2203 = vadd.f32 0.0, %v2202
      %2204 = vdwg.mxu0
      %v2237 = vunpack.c.l.b16 %v1874
      %v2238 = vunpack.c.h.b16 %v1874
      %v2239 = vunpack.c.l.b16 %v1875
      %v2240 = vunpack.c.h.b16 %v1875
      %v2241 = vunpack.c.l.b16 %v1876
      %v2242 = vunpack.c.h.b16 %v1876
      %v2243 = vunpack.c.l.b16 %v1877
      %v2244 = vunpack.c.h.b16 %v1877
      %v2245 = vunpack.c.l.b16 %v1878
      %v2246 = vunpack.c.h.b16 %v1878
      %v2247 = vunpack.c.l.b16 %v1879
      %v2248 = vunpack.c.h.b16 %v1879
      %v2249 = vunpack.c.l.b16 %v1880
      %v2250 = vunpack.c.h.b16 %v1880
      %v2251 = vunpack.c.l.b16 %v1881
      %v2252 = vunpack.c.h.b16 %v1881
      %v2253 = vunpack.c.l.b16 %v1882
      %v2254 = vunpack.c.h.b16 %v1882
      %v2255 = vunpack.c.l.b16 %v1883
      %v2256 = vunpack.c.h.b16 %v1883
      %v2257 = vunpack.c.l.b16 %v1884
      %v2258 = vunpack.c.h.b16 %v1884
      %v2259 = vunpack.c.l.b16 %v1885
      %v2260 = vunpack.c.h.b16 %v1885
      %v2261 = vunpack.c.l.b16 %v1886
      %v2262 = vunpack.c.h.b16 %v1886
      %v2263 = vunpack.c.l.b16 %v1887
      %v2264 = vunpack.c.h.b16 %v1887
      %v2265 = vunpack.c.l.b16 %v1888
      %v2266 = vunpack.c.h.b16 %v1888
      %v2267 = vunpack.c.l.b16 %v1889
      %v2268 = vunpack.c.h.b16 %v1889
      %v2269 = vunpack.c.l.b16 %v1890
      %v2270 = vunpack.c.h.b16 %v1890
      %v2271 = vunpack.c.l.b16 %v1891
      %v2272 = vunpack.c.h.b16 %v1891
      %v2273 = vunpack.c.l.b16 %v1892
      %v2274 = vunpack.c.h.b16 %v1892
      %v2275 = vunpack.c.l.b16 %v1893
      %v2276 = vunpack.c.h.b16 %v1893
      %v2277 = vunpack.c.l.b16 %v1894
      %v2278 = vunpack.c.h.b16 %v1894
      %v2279 = vunpack.c.l.b16 %v1895
      %v2280 = vunpack.c.h.b16 %v1895
      %v2281 = vunpack.c.l.b16 %v1896
      %v2282 = vunpack.c.h.b16 %v1896
      %v2283 = vunpack.c.l.b16 %v1897
      %v2284 = vunpack.c.h.b16 %v1897
      %v2285 = vunpack.c.l.b16 %v1898
      %v2286 = vunpack.c.h.b16 %v1898
      %v2287 = vunpack.c.l.b16 %v1899
      %v2288 = vunpack.c.h.b16 %v1899
      %v2289 = vunpack.c.l.b16 %v1900
      %v2290 = vunpack.c.h.b16 %v1900
      %v2291 = vunpack.c.l.b16 %v1901
      %v2292 = vunpack.c.h.b16 %v1901
      %v2293 = vunpack.c.l.b16 %v1902
      %v2294 = vunpack.c.h.b16 %v1902
      %v2295 = vunpack.c.l.b16 %v1903
      %v2296 = vunpack.c.h.b16 %v1903
      %v2297 = vunpack.c.l.b16 %v1904
      %v2298 = vunpack.c.h.b16 %v1904
      %v2299 = vunpack.c.l.b16 %v1905
      %v2300 = vunpack.c.h.b16 %v1905
      %v2301 = vpack.c.b16 %v2239, %v2237
      %v2302 = vpack.c.b16 %v2240, %v2238
      %v2303 = vpack.c.b16 %v2243, %v2241
      %v2304 = vpack.c.b16 %v2244, %v2242
      %v2305 = vpack.c.b16 %v2247, %v2245
      %v2306 = vpack.c.b16 %v2248, %v2246
      %v2307 = vpack.c.b16 %v2251, %v2249
      %v2308 = vpack.c.b16 %v2252, %v2250
      %v2309 = vpack.c.b16 %v2255, %v2253
      %v2310 = vpack.c.b16 %v2256, %v2254
      %v2311 = vpack.c.b16 %v2259, %v2257
      %v2312 = vpack.c.b16 %v2260, %v2258
      %v2313 = vpack.c.b16 %v2263, %v2261
      %v2314 = vpack.c.b16 %v2264, %v2262
      %v2315 = vpack.c.b16 %v2267, %v2265
      %v2316 = vpack.c.b16 %v2268, %v2266
      %v2317 = vpack.c.b16 %v2271, %v2269
      %v2318 = vpack.c.b16 %v2272, %v2270
      %v2319 = vpack.c.b16 %v2275, %v2273
      %v2320 = vpack.c.b16 %v2276, %v2274
      %v2321 = vpack.c.b16 %v2279, %v2277
      %v2322 = vpack.c.b16 %v2280, %v2278
      %v2323 = vpack.c.b16 %v2283, %v2281
      %v2324 = vpack.c.b16 %v2284, %v2282
      %v2325 = vpack.c.b16 %v2287, %v2285
      %v2326 = vpack.c.b16 %v2288, %v2286
      %v2327 = vpack.c.b16 %v2291, %v2289
      %v2328 = vpack.c.b16 %v2292, %v2290
      %v2329 = vpack.c.b16 %v2295, %v2293
      %v2330 = vpack.c.b16 %v2296, %v2294
      %v2331 = vpack.c.b16 %v2299, %v2297
      %v2332 = vpack.c.b16 %v2300, %v2298
      %2365 = vmatprep.subr.bf16.mxu0 %v2302
      %2366 = vmatpush1.bf16.msra.mxu0 %v2301
      %2367 = vmatprep.subr.bf16.mxu0 %v2304
      %2368 = vmatpush1.bf16.msra.mxu0 %v2303
      %2369 = vmatprep.subr.bf16.mxu0 %v2306
      %2370 = vmatpush1.bf16.msra.mxu0 %v2305
      %2371 = vmatprep.subr.bf16.mxu0 %v2308
      %2372 = vmatpush1.bf16.msra.mxu0 %v2307
      %2373 = vmatprep.subr.bf16.mxu0 %v2310
      %2374 = vmatpush1.bf16.msra.mxu0 %v2309
      %2375 = vmatprep.subr.bf16.mxu0 %v2312
      %2376 = vmatpush1.bf16.msra.mxu0 %v2311
      %2377 = vmatprep.subr.bf16.mxu0 %v2314
      %2378 = vmatpush1.bf16.msra.mxu0 %v2313
      %2379 = vmatprep.subr.bf16.mxu0 %v2316
      %2380 = vmatpush1.bf16.msra.mxu0 %v2315
      %2381 = vmatprep.subr.bf16.mxu0 %v2318
      %2382 = vmatpush1.bf16.msra.mxu0 %v2317
      %2383 = vmatprep.subr.bf16.mxu0 %v2320
      %2384 = vmatpush1.bf16.msra.mxu0 %v2319
      %2385 = vmatprep.subr.bf16.mxu0 %v2322
      %2386 = vmatpush1.bf16.msra.mxu0 %v2321
      %2387 = vmatprep.subr.bf16.mxu0 %v2324
      %2388 = vmatpush1.bf16.msra.mxu0 %v2323
      %2389 = vmatprep.subr.bf16.mxu0 %v2326
      %2390 = vmatpush1.bf16.msra.mxu0 %v2325
      %2391 = vmatprep.subr.bf16.mxu0 %v2328
      %2392 = vmatpush1.bf16.msra.mxu0 %v2327
      %2393 = vmatprep.subr.bf16.mxu0 %v2330
      %2394 = vmatpush1.bf16.msra.mxu0 %v2329
      %2395 = vmatprep.subr.bf16.mxu0 %v2332
      %2396 = vmatpush1.bf16.msra.mxu0 %v2331
      %2397 = vmatprep.mubr.bf16.mxu0 %v1871
      %2398 = vmatmul.mubr.bf16.gmra.mrb[0].mxu0 %v1870
      %v2399 = vpop.f32.mrb[0].mxu0
      %v2400 = vadd.f32 %v2187, %v2399
      %v2401 = vpop.f32.mrb[0].mxu0
      %v2402 = vadd.f32 %v2189, %v2401
      %v2403 = vpop.f32.mrb[0].mxu0
      %v2404 = vadd.f32 %v2191, %v2403
      %v2405 = vpop.f32.mrb[0].mxu0
      %v2406 = vadd.f32 %v2193, %v2405
      %2407 = vmatprep.mubr.bf16.mxu0 %v1873
      %2408 = vmatmul.mubr.bf16.gmra.mrb[0].mxu0 %v1872
      %v2409 = vpop.f32.mrb[0].mxu0
      %v2410 = vadd.f32 %v2197, %v2409
      %v2411 = vpop.f32.mrb[0].mxu0
      %v2412 = vadd.f32 %v2199, %v2411
      %v2413 = vpop.f32.mrb[0].mxu0
      %v2414 = vadd.f32 %v2201, %v2413
      %v2415 = vpop.f32.mrb[0].mxu0
      %v2416 = vadd.f32 %v2203, %v2415
      %2417 = vdwg.mxu0
      %v2418 = vld [vmem:[#allocation4] sm:$0xfc]
      %v2419 = vld [vmem:[#allocation4 + $0x8] sm:$0xfc]
      %v2420 = vld [vmem:[#allocation4 + $0x40] sm:$0x3]
      %v2421 = vld [vmem:[#allocation4 + $0x48] sm:$0x3]
      %v2422 = vpack.c.bf16 %v1864, %v2418
      %v2423 = vpack.c.bf16 %v1865, %v2419
      %v2424 = vpack.c.bf16 %v2420, %v2420
      %v2425 = vpack.c.bf16 %v2421, %v2421
      %s2426 = scalar_lea.vmem %s8, 512
      %v2427 = vld [vmem:[%s2426] sm:$0xff]
      %v2428 = vld [vmem:[%s2426 + $0x8] sm:$0xff]
      %v2429 = vld [vmem:[%s2426 + $0x10] sm:$0xff]
      %v2430 = vld [vmem:[%s2426 + $0x18] sm:$0xff]
      %v2431 = vld [vmem:[%s2426 + $0x20] sm:$0xff]
      %v2432 = vld [vmem:[%s2426 + $0x28] sm:$0xff]
      %v2433 = vld [vmem:[%s2426 + $0x30] sm:$0xff]
      %v2434 = vld [vmem:[%s2426 + $0x38] sm:$0xff]
      %v2435 = vld [vmem:[%s2426 + $0x40] sm:$0xff]
      %v2436 = vld [vmem:[%s2426 + $0x48] sm:$0xff]
      %v2437 = vld [vmem:[%s2426 + $0x50] sm:$0xff]
      %v2438 = vld [vmem:[%s2426 + $0x58] sm:$0xff]
      %v2439 = vld [vmem:[%s2426 + $0x60] sm:$0xff]
      %v2440 = vld [vmem:[%s2426 + $0x68] sm:$0xff]
      %v2441 = vld [vmem:[%s2426 + $0x70] sm:$0xff]
      %v2442 = vld [vmem:[%s2426 + $0x78] sm:$0xff]
      %v2443 = vld [vmem:[%s2426 + $0x80] sm:$0xff]
      %v2444 = vld [vmem:[%s2426 + $0x88] sm:$0xff]
      %v2445 = vld [vmem:[%s2426 + $0x90] sm:$0xff]
      %v2446 = vld [vmem:[%s2426 + $0x98] sm:$0xff]
      %v2447 = vld [vmem:[%s2426 + $0xa0] sm:$0xff]
      %v2448 = vld [vmem:[%s2426 + $0xa8] sm:$0xff]
      %v2449 = vld [vmem:[%s2426 + $0xb0] sm:$0xff]
      %v2450 = vld [vmem:[%s2426 + $0xb8] sm:$0xff]
      %v2451 = vld [vmem:[%s2426 + $0xc0] sm:$0xff]
      %v2452 = vld [vmem:[%s2426 + $0xc8] sm:$0xff]
      %v2453 = vld [vmem:[%s2426 + $0xd0] sm:$0xff]
      %v2454 = vld [vmem:[%s2426 + $0xd8] sm:$0xff]
      %v2455 = vld [vmem:[%s2426 + $0xe0] sm:$0xff]
      %v2456 = vld [vmem:[%s2426 + $0xe8] sm:$0xff]
      %v2457 = vld [vmem:[%s2426 + $0xf0] sm:$0xff]
      %v2458 = vld [vmem:[%s2426 + $0xf8] sm:$0xff]
      %vm2465 = vcmask 1046528
      %v2466 = vrot.slane %v2422, 1
      %v2467 = vrot.slane %v1872, 1
      %v2468 = vsel %vm2465, %v2466, %v2467
      %v2469 = vrot.slane %v2423, 1
      %v2470 = vrot.slane %v1873, 1
      %v2471 = vsel %vm2465, %v2469, %v2470
      %v2472 = vrot.slane %v2424, 1
      %v2473 = vsel %vm2465, %v2467, %v2472
      %v2474 = vrot.slane %v2425, 1
      %v2475 = vsel %vm2465, %v2470, %v2474
      %v2512 = vunpack.c.l.b16 %v2427
      %v2513 = vunpack.c.h.b16 %v2427
      %v2514 = vunpack.c.l.b16 %v2428
      %v2515 = vunpack.c.h.b16 %v2428
      %v2516 = vunpack.c.l.b16 %v2429
      %v2517 = vunpack.c.h.b16 %v2429
      %v2518 = vunpack.c.l.b16 %v2430
      %v2519 = vunpack.c.h.b16 %v2430
      %v2520 = vunpack.c.l.b16 %v2431
      %v2521 = vunpack.c.h.b16 %v2431
      %v2522 = vunpack.c.l.b16 %v2432
      %v2523 = vunpack.c.h.b16 %v2432
      %v2524 = vunpack.c.l.b16 %v2433
      %v2525 = vunpack.c.h.b16 %v2433
      %v2526 = vunpack.c.l.b16 %v2434
      %v2527 = vunpack.c.h.b16 %v2434
      %v2528 = vunpack.c.l.b16 %v2435
      %v2529 = vunpack.c.h.b16 %v2435
      %v2530 = vunpack.c.l.b16 %v2436
      %v2531 = vunpack.c.h.b16 %v2436
      %v2532 = vunpack.c.l.b16 %v2437
      %v2533 = vunpack.c.h.b16 %v2437
      %v2534 = vunpack.c.l.b16 %v2438
      %v2535 = vunpack.c.h.b16 %v2438
      %v2536 = vunpack.c.l.b16 %v2439
      %v2537 = vunpack.c.h.b16 %v2439
      %v2538 = vunpack.c.l.b16 %v2440
      %v2539 = vunpack.c.h.b16 %v2440
      %v2540 = vunpack.c.l.b16 %v2441
      %v2541 = vunpack.c.h.b16 %v2441
      %v2542 = vunpack.c.l.b16 %v2442
      %v2543 = vunpack.c.h.b16 %v2442
      %v2544 = vunpack.c.l.b16 %v2443
      %v2545 = vunpack.c.h.b16 %v2443
      %v2546 = vunpack.c.l.b16 %v2444
      %v2547 = vunpack.c.h.b16 %v2444
      %v2548 = vunpack.c.l.b16 %v2445
      %v2549 = vunpack.c.h.b16 %v2445
      %v2550 = vunpack.c.l.b16 %v2446
      %v2551 = vunpack.c.h.b16 %v2446
      %v2552 = vunpack.c.l.b16 %v2447
      %v2553 = vunpack.c.h.b16 %v2447
      %v2554 = vunpack.c.l.b16 %v2448
      %v2555 = vunpack.c.h.b16 %v2448
      %v2556 = vunpack.c.l.b16 %v2449
      %v2557 = vunpack.c.h.b16 %v2449
      %v2558 = vunpack.c.l.b16 %v2450
      %v2559 = vunpack.c.h.b16 %v2450
      %v2560 = vunpack.c.l.b16 %v2451
      %v2561 = vunpack.c.h.b16 %v2451
      %v2562 = vunpack.c.l.b16 %v2452
      %v2563 = vunpack.c.h.b16 %v2452
      %v2564 = vunpack.c.l.b16 %v2453
      %v2565 = vunpack.c.h.b16 %v2453
      %v2566 = vunpack.c.l.b16 %v2454
      %v2567 = vunpack.c.h.b16 %v2454
      %v2568 = vunpack.c.l.b16 %v2455
      %v2569 = vunpack.c.h.b16 %v2455
      %v2570 = vunpack.c.l.b16 %v2456
      %v2571 = vunpack.c.h.b16 %v2456
      %v2572 = vunpack.c.l.b16 %v2457
      %v2573 = vunpack.c.h.b16 %v2457
      %v2574 = vunpack.c.l.b16 %v2458
      %v2575 = vunpack.c.h.b16 %v2458
      %v2576 = vpack.c.b16 %v2514, %v2512
      %v2577 = vpack.c.b16 %v2515, %v2513
      %v2578 = vpack.c.b16 %v2518, %v2516
      %v2579 = vpack.c.b16 %v2519, %v2517
      %v2580 = vpack.c.b16 %v2522, %v2520
      %v2581 = vpack.c.b16 %v2523, %v2521
      %v2582 = vpack.c.b16 %v2526, %v2524
      %v2583 = vpack.c.b16 %v2527, %v2525
      %v2584 = vpack.c.b16 %v2530, %v2528
      %v2585 = vpack.c.b16 %v2531, %v2529
      %v2586 = vpack.c.b16 %v2534, %v2532
      %v2587 = vpack.c.b16 %v2535, %v2533
      %v2588 = vpack.c.b16 %v2538, %v2536
      %v2589 = vpack.c.b16 %v2539, %v2537
      %v2590 = vpack.c.b16 %v2542, %v2540
      %v2591 = vpack.c.b16 %v2543, %v2541
      %v2592 = vpack.c.b16 %v2546, %v2544
      %v2593 = vpack.c.b16 %v2547, %v2545
      %v2594 = vpack.c.b16 %v2550, %v2548
      %v2595 = vpack.c.b16 %v2551, %v2549
      %v2596 = vpack.c.b16 %v2554, %v2552
      %v2597 = vpack.c.b16 %v2555, %v2553
      %v2598 = vpack.c.b16 %v2558, %v2556
      %v2599 = vpack.c.b16 %v2559, %v2557
      %v2600 = vpack.c.b16 %v2562, %v2560
      %v2601 = vpack.c.b16 %v2563, %v2561
      %v2602 = vpack.c.b16 %v2566, %v2564
      %v2603 = vpack.c.b16 %v2567, %v2565
      %v2604 = vpack.c.b16 %v2570, %v2568
      %v2605 = vpack.c.b16 %v2571, %v2569
      %v2606 = vpack.c.b16 %v2574, %v2572
      %v2607 = vpack.c.b16 %v2575, %v2573
      %2640 = vmatprep.subr.bf16.mxu0 %v2577
      %2641 = vmatpush1.bf16.msra.mxu0 %v2576
      %2642 = vmatprep.subr.bf16.mxu0 %v2579
      %2643 = vmatpush1.bf16.msra.mxu0 %v2578
      %2644 = vmatprep.subr.bf16.mxu0 %v2581
      %2645 = vmatpush1.bf16.msra.mxu0 %v2580
      %2646 = vmatprep.subr.bf16.mxu0 %v2583
      %2647 = vmatpush1.bf16.msra.mxu0 %v2582
      %2648 = vmatprep.subr.bf16.mxu0 %v2585
      %2649 = vmatpush1.bf16.msra.mxu0 %v2584
      %2650 = vmatprep.subr.bf16.mxu0 %v2587
      %2651 = vmatpush1.bf16.msra.mxu0 %v2586
      %2652 = vmatprep.subr.bf16.mxu0 %v2589
      %2653 = vmatpush1.bf16.msra.mxu0 %v2588
      %2654 = vmatprep.subr.bf16.mxu0 %v2591
      %2655 = vmatpush1.bf16.msra.mxu0 %v2590
      %2656 = vmatprep.subr.bf16.mxu0 %v2593
      %2657 = vmatpush1.bf16.msra.mxu0 %v2592
      %2658 = vmatprep.subr.bf16.mxu0 %v2595
      %2659 = vmatpush1.bf16.msra.mxu0 %v2594
      %2660 = vmatprep.subr.bf16.mxu0 %v2597
      %2661 = vmatpush1.bf16.msra.mxu0 %v2596
      %2662 = vmatprep.subr.bf16.mxu0 %v2599
      %2663 = vmatpush1.bf16.msra.mxu0 %v2598
      %2664 = vmatprep.subr.bf16.mxu0 %v2601
      %2665 = vmatpush1.bf16.msra.mxu0 %v2600
      %2666 = vmatprep.subr.bf16.mxu0 %v2603
      %2667 = vmatpush1.bf16.msra.mxu0 %v2602
      %2668 = vmatprep.subr.bf16.mxu0 %v2605
      %2669 = vmatpush1.bf16.msra.mxu0 %v2604
      %2670 = vmatprep.subr.bf16.mxu0 %v2607
      %2671 = vmatpush1.bf16.msra.mxu0 %v2606
      %2672 = vmatprep.mubr.bf16.mxu0 %v2471
      %2673 = vmatmul.mubr.bf16.gmra.mrb[0].mxu0 %v2468
      %v2674 = vpop.f32.mrb[0].mxu0
      %v2675 = vadd.f32 0.0, %v2674
      %v2676 = vpop.f32.mrb[0].mxu0
      %v2677 = vadd.f32 0.0, %v2676
      %v2678 = vpop.f32.mrb[0].mxu0
      %v2679 = vadd.f32 0.0, %v2678
      %v2680 = vpop.f32.mrb[0].mxu0
      %v2681 = vadd.f32 0.0, %v2680
      %2682 = vmatprep.mubr.bf16.mxu0 %v2475
      %2683 = vmatmul.mubr.bf16.gmra.mrb[0].mxu0 %v2473
      %v2684 = vpop.f32.mrb[0].mxu0
      %v2685 = vadd.f32 0.0, %v2684
      %v2686 = vpop.f32.mrb[0].mxu0
      %v2687 = vadd.f32 0.0, %v2686
      %v2688 = vpop.f32.mrb[0].mxu0
      %v2689 = vadd.f32 0.0, %v2688
      %v2690 = vpop.f32.mrb[0].mxu0
      %v2691 = vadd.f32 0.0, %v2690
      %2692 = vdwg.mxu0
      %v2693 = vadd.f32 %v2400, %v2675
      %v2694 = vadd.f32 %v2402, %v2677
      %v2695 = vadd.f32 %v2404, %v2679
      %v2696 = vadd.f32 %v2406, %v2681
      %v2697 = vadd.f32 %v2410, %v2685
      %v2698 = vadd.f32 %v2412, %v2687
      %v2699 = vadd.f32 %v2414, %v2689
      %v2700 = vadd.f32 %v2416, %v2691
      %v2701 = vld [vmem:[%s9] sm:$0x3]
      %v2703 = vlaneseq
      %v2704 = vshrl.u32 %v2703, 7
      %v2705 = vsub.s32 0, %v2704
      %v2706 = vrot.slane %v2701, %v2705
      %v2707 = vlaneseq
      %v2708 = vshrl.u32 %v2707, 7
      %v2709 = vsub.s32 1, %v2708
      %v2710 = vrot.slane %v2701, %v2709
      %v2713 = vadd.f32 %v2693, %v2706
      %v2714 = vadd.f32 %v2694, %v2710
      %v2715 = vadd.f32 %v2695, %v2706
      %v2716 = vadd.f32 %v2696, %v2710
      %v2717 = vadd.f32 %v2697, %v2706
      %v2718 = vadd.f32 %v2698, %v2710
      %v2719 = vadd.f32 %v2699, %v2706
      %v2720 = vadd.f32 %v2700, %v2710
      %v2721 = vadd.f32 %v2713, %v2715
      %v2722 = vadd.f32 %v2721, %v2717
      %v2723 = vadd.f32 %v2722, %v2719
      %v2724 = vrot.slane %v2723, 4
      %v2725 = vadd.f32 %v2723, %v2724
      %v2726 = vrot.slane %v2725, 2
      %v2727 = vadd.f32 %v2725, %v2726
      %v2728 = vrot.slane %v2727, 1
      %v2729 = vadd.f32 %v2727, %v2728
      %v2730 = vadd.f32 %v2714, %v2716
      %v2731 = vadd.f32 %v2730, %v2718
      %v2732 = vadd.f32 %v2731, %v2720
      %v2733 = vrot.slane %v2732, 4
      %v2734 = vadd.f32 %v2732, %v2733
      %v2735 = vrot.slane %v2734, 2
      %v2736 = vadd.f32 %v2734, %v2735
      %v2737 = vrot.slane %v2736, 1
      %v2738 = vadd.f32 %v2736, %v2737
      %v2739 = vmul.f32 %v2713, %v2713
      %v2740 = vmul.f32 %v2714, %v2714
      %v2741 = vmul.f32 %v2715, %v2715
      %v2742 = vmul.f32 %v2716, %v2716
      %v2743 = vmul.f32 %v2717, %v2717
      %v2744 = vmul.f32 %v2718, %v2718
      %v2745 = vmul.f32 %v2719, %v2719
      %v2746 = vmul.f32 %v2720, %v2720
      %v2747 = vadd.f32 %v2739, %v2741
      %v2748 = vadd.f32 %v2747, %v2743
      %v2749 = vadd.f32 %v2748, %v2745
      %v2750 = vrot.slane %v2749, 4
      %v2751 = vadd.f32 %v2749, %v2750
      %v2752 = vrot.slane %v2751, 2
      %v2753 = vadd.f32 %v2751, %v2752
      %v2754 = vrot.slane %v2753, 1
      %v2755 = vadd.f32 %v2753, %v2754
      %v2756 = vadd.f32 %v2740, %v2742
      %v2757 = vadd.f32 %v2756, %v2744
      %v2758 = vadd.f32 %v2757, %v2746
      %v2759 = vrot.slane %v2758, 4
      %v2760 = vadd.f32 %v2758, %v2759
      %v2761 = vrot.slane %v2760, 2
      %v2762 = vadd.f32 %v2760, %v2761
      %v2763 = vrot.slane %v2762, 1
      %v2764 = vadd.f32 %v2762, %v2763
      %v2765 = vld [vmem:[%s3] sm:$0xff]
      %v2766 = vld [vmem:[%s3 + $0x8] sm:$0xff]
      %v2767 = vld [vmem:[%s3 + $0x10] sm:$0xff]
      %v2768 = vld [vmem:[%s3 + $0x18] sm:$0xff]
      %v2769 = vld [vmem:[%s3 + $0x20] sm:$0xff]
      %v2770 = vld [vmem:[%s3 + $0x28] sm:$0xff]
      %v2771 = vld [vmem:[%s3 + $0x30] sm:$0xff]
      %v2772 = vld [vmem:[%s3 + $0x38] sm:$0xff]
      %v2773 = vld [vmem:[%s3 + $0x40] sm:$0xff]
      %v2774 = vld [vmem:[%s3 + $0x48] sm:$0xff]
      %v2775 = vld [vmem:[%s3 + $0x50] sm:$0xff]
      %v2776 = vld [vmem:[%s3 + $0x58] sm:$0xff]
      %v2777 = vld [vmem:[%s3 + $0x60] sm:$0xff]
      %v2778 = vld [vmem:[%s3 + $0x68] sm:$0xff]
      %v2779 = vld [vmem:[%s3 + $0x70] sm:$0xff]
      %v2780 = vld [vmem:[%s3 + $0x78] sm:$0xff]
      %v2781 = vld [vmem:[%s3 + $0x80] sm:$0xff]
      %v2782 = vld [vmem:[%s3 + $0x88] sm:$0xff]
      %v2783 = vld [vmem:[%s3 + $0x90] sm:$0xff]
      %v2784 = vld [vmem:[%s3 + $0x98] sm:$0xff]
      %v2785 = vld [vmem:[%s3 + $0xa0] sm:$0xff]
      %v2786 = vld [vmem:[%s3 + $0xa8] sm:$0xff]
      %v2787 = vld [vmem:[%s3 + $0xb0] sm:$0xff]
      %v2788 = vld [vmem:[%s3 + $0xb8] sm:$0xff]
      %v2789 = vld [vmem:[%s3 + $0xc0] sm:$0xff]
      %v2790 = vld [vmem:[%s3 + $0xc8] sm:$0xff]
      %v2791 = vld [vmem:[%s3 + $0xd0] sm:$0xff]
      %v2792 = vld [vmem:[%s3 + $0xd8] sm:$0xff]
      %v2793 = vld [vmem:[%s3 + $0xe0] sm:$0xff]
      %v2794 = vld [vmem:[%s3 + $0xe8] sm:$0xff]
      %v2795 = vld [vmem:[%s3 + $0xf0] sm:$0xff]
      %v2796 = vld [vmem:[%s3 + $0xf8] sm:$0xff]
      %v2797 = vld [vmem:[%s3 + $0x100] sm:$0xff]
      %v2798 = vld [vmem:[%s3 + $0x108] sm:$0xff]
      %v2799 = vld [vmem:[%s3 + $0x110] sm:$0xff]
      %v2800 = vld [vmem:[%s3 + $0x118] sm:$0xff]
      %v2801 = vld [vmem:[%s3 + $0x120] sm:$0xff]
      %v2802 = vld [vmem:[%s3 + $0x128] sm:$0xff]
      %v2803 = vld [vmem:[%s3 + $0x130] sm:$0xff]
      %v2804 = vld [vmem:[%s3 + $0x138] sm:$0xff]
      %v2805 = vld [vmem:[%s3 + $0x140] sm:$0xff]
      %v2806 = vld [vmem:[%s3 + $0x148] sm:$0xff]
      %v2807 = vld [vmem:[%s3 + $0x150] sm:$0xff]
      %v2808 = vld [vmem:[%s3 + $0x158] sm:$0xff]
      %v2809 = vld [vmem:[%s3 + $0x160] sm:$0xff]
      %v2810 = vld [vmem:[%s3 + $0x168] sm:$0xff]
      %v2811 = vld [vmem:[%s3 + $0x170] sm:$0xff]
      %v2812 = vld [vmem:[%s3 + $0x178] sm:$0xff]
      %v2813 = vld [vmem:[%s3 + $0x180] sm:$0xff]
      %v2814 = vld [vmem:[%s3 + $0x188] sm:$0xff]
      %v2815 = vld [vmem:[%s3 + $0x190] sm:$0xff]
      %v2816 = vld [vmem:[%s3 + $0x198] sm:$0xff]
      %v2817 = vld [vmem:[%s3 + $0x1a0] sm:$0xff]
      %v2818 = vld [vmem:[%s3 + $0x1a8] sm:$0xff]
      %v2819 = vld [vmem:[%s3 + $0x1b0] sm:$0xff]
      %v2820 = vld [vmem:[%s3 + $0x1b8] sm:$0xff]
      %v2821 = vld [vmem:[%s3 + $0x1c0] sm:$0xff]
      %v2822 = vld [vmem:[%s3 + $0x1c8] sm:$0xff]
      %v2823 = vld [vmem:[%s3 + $0x1d0] sm:$0xff]
      %v2824 = vld [vmem:[%s3 + $0x1d8] sm:$0xff]
      %v2825 = vld [vmem:[%s3 + $0x1e0] sm:$0xff]
      %v2826 = vld [vmem:[%s3 + $0x1e8] sm:$0xff]
      %v2827 = vld [vmem:[%s3 + $0x1f0] sm:$0xff]
      %v2828 = vld [vmem:[%s3 + $0x1f8] sm:$0xff]
      %2829 = vmatprep.subr.mxu0 %v2766
      %2830 = vmatpush1.msra.mxu0 %v2765
      %2831 = vmatprep.subr.mxu0 %v2768
      %2832 = vmatpush1.msra.mxu0 %v2767
      %2833 = vmatprep.subr.mxu0 %v2770
      %2834 = vmatpush1.msra.mxu0 %v2769
      %2835 = vmatprep.subr.mxu0 %v2772
      %2836 = vmatpush1.msra.mxu0 %v2771
      %2837 = vmatprep.subr.mxu0 %v2774
      %2838 = vmatpush1.msra.mxu0 %v2773
      %2839 = vmatprep.subr.mxu0 %v2776
      %2840 = vmatpush1.msra.mxu0 %v2775
      %2841 = vmatprep.subr.mxu0 %v2778
      %2842 = vmatpush1.msra.mxu0 %v2777
      %2843 = vmatprep.subr.mxu0 %v2780
      %2844 = vmatpush1.msra.mxu0 %v2779
      %2845 = vmatprep.subr.mxu0 %v2782
      %2846 = vmatpush1.msra.mxu0 %v2781
      %2847 = vmatprep.subr.mxu0 %v2784
      %2848 = vmatpush1.msra.mxu0 %v2783
      %2849 = vmatprep.subr.mxu0 %v2786
      %2850 = vmatpush1.msra.mxu0 %v2785
      %2851 = vmatprep.subr.mxu0 %v2788
      %2852 = vmatpush1.msra.mxu0 %v2787
      %2853 = vmatprep.subr.mxu0 %v2790
      %2854 = vmatpush1.msra.mxu0 %v2789
      %2855 = vmatprep.subr.mxu0 %v2792
      %2856 = vmatpush1.msra.mxu0 %v2791
      %2857 = vmatprep.subr.mxu0 %v2794
      %2858 = vmatpush1.msra.mxu0 %v2793
      %2859 = vmatprep.subr.mxu0 %v2796
      %2860 = vmatpush1.msra.mxu0 %v2795
      %2861 = vmatprep.subr.mxu0 %v2798
      %2862 = vmatpush1.msra.mxu0 %v2797
      %2863 = vmatprep.subr.mxu0 %v2800
      %2864 = vmatpush1.msra.mxu0 %v2799
      %2865 = vmatprep.subr.mxu0 %v2802
      %2866 = vmatpush1.msra.mxu0 %v2801
      %2867 = vmatprep.subr.mxu0 %v2804
      %2868 = vmatpush1.msra.mxu0 %v2803
      %2869 = vmatprep.subr.mxu0 %v2806
      %2870 = vmatpush1.msra.mxu0 %v2805
      %2871 = vmatprep.subr.mxu0 %v2808
      %2872 = vmatpush1.msra.mxu0 %v2807
      %2873 = vmatprep.subr.mxu0 %v2810
      %2874 = vmatpush1.msra.mxu0 %v2809
      %2875 = vmatprep.subr.mxu0 %v2812
      %2876 = vmatpush1.msra.mxu0 %v2811
      %2877 = vmatprep.subr.mxu0 %v2814
      %2878 = vmatpush1.msra.mxu0 %v2813
      %2879 = vmatprep.subr.mxu0 %v2816
      %2880 = vmatpush1.msra.mxu0 %v2815
      %2881 = vmatprep.subr.mxu0 %v2818
      %2882 = vmatpush1.msra.mxu0 %v2817
      %2883 = vmatprep.subr.mxu0 %v2820
      %2884 = vmatpush1.msra.mxu0 %v2819
      %2885 = vmatprep.subr.mxu0 %v2822
      %2886 = vmatpush1.msra.mxu0 %v2821
      %2887 = vmatprep.subr.mxu0 %v2824
      %2888 = vmatpush1.msra.mxu0 %v2823
      %2889 = vmatprep.subr.mxu0 %v2826
      %2890 = vmatpush1.msra.mxu0 %v2825
      %2891 = vmatprep.subr.mxu0 %v2828
      %2892 = vmatpush1.msra.mxu0 %v2827
      %2893 = vmatprep.mubr.f32.mxu0 %v2738
      %2894 = vmatmul.mubr.f32.gmra.mrb[0].mxu0 %v2729
      %v2895 = vpop.f32.mrb[0].mxu0
      %v2896 = vadd.f32 0.0, %v2895
      %v2897 = vpop.f32.mrb[0].mxu0
      %v2898 = vadd.f32 0.0, %v2897
      %2899 = vdwg.mxu0
      %v2900 = vmul.f32 %v2896, 0.0009765625
      %v2901 = vmul.f32 %v2898, 0.0009765625
      %2902 = vmatprep.subr.mxu0 %v2766
      %2903 = vmatpush1.msra.mxu0 %v2765
      %2904 = vmatprep.subr.mxu0 %v2768
      %2905 = vmatpush1.msra.mxu0 %v2767
      %2906 = vmatprep.subr.mxu0 %v2770
      %2907 = vmatpush1.msra.mxu0 %v2769
      %2908 = vmatprep.subr.mxu0 %v2772
      %2909 = vmatpush1.msra.mxu0 %v2771
      %2910 = vmatprep.subr.mxu0 %v2774
      %2911 = vmatpush1.msra.mxu0 %v2773
      %2912 = vmatprep.subr.mxu0 %v2776
      %2913 = vmatpush1.msra.mxu0 %v2775
      %2914 = vmatprep.subr.mxu0 %v2778
      %2915 = vmatpush1.msra.mxu0 %v2777
      %2916 = vmatprep.subr.mxu0 %v2780
      %2917 = vmatpush1.msra.mxu0 %v2779
      %2918 = vmatprep.subr.mxu0 %v2782
      %2919 = vmatpush1.msra.mxu0 %v2781
      %2920 = vmatprep.subr.mxu0 %v2784
      %2921 = vmatpush1.msra.mxu0 %v2783
      %2922 = vmatprep.subr.mxu0 %v2786
      %2923 = vmatpush1.msra.mxu0 %v2785
      %2924 = vmatprep.subr.mxu0 %v2788
      %2925 = vmatpush1.msra.mxu0 %v2787
      %2926 = vmatprep.subr.mxu0 %v2790
      %2927 = vmatpush1.msra.mxu0 %v2789
      %2928 = vmatprep.subr.mxu0 %v2792
      %2929 = vmatpush1.msra.mxu0 %v2791
      %2930 = vmatprep.subr.mxu0 %v2794
      %2931 = vmatpush1.msra.mxu0 %v2793
      %2932 = vmatprep.subr.mxu0 %v2796
      %2933 = vmatpush1.msra.mxu0 %v2795
      %2934 = vmatprep.subr.mxu0 %v2798
      %2935 = vmatpush1.msra.mxu0 %v2797
      %2936 = vmatprep.subr.mxu0 %v2800
      %2937 = vmatpush1.msra.mxu0 %v2799
      %2938 = vmatprep.subr.mxu0 %v2802
      %2939 = vmatpush1.msra.mxu0 %v2801
      %2940 = vmatprep.subr.mxu0 %v2804
      %2941 = vmatpush1.msra.mxu0 %v2803
      %2942 = vmatprep.subr.mxu0 %v2806
      %2943 = vmatpush1.msra.mxu0 %v2805
      %2944 = vmatprep.subr.mxu0 %v2808
      %2945 = vmatpush1.msra.mxu0 %v2807
      %2946 = vmatprep.subr.mxu0 %v2810
      %2947 = vmatpush1.msra.mxu0 %v2809
      %2948 = vmatprep.subr.mxu0 %v2812
      %2949 = vmatpush1.msra.mxu0 %v2811
      %2950 = vmatprep.subr.mxu0 %v2814
      %2951 = vmatpush1.msra.mxu0 %v2813
      %2952 = vmatprep.subr.mxu0 %v2816
      %2953 = vmatpush1.msra.mxu0 %v2815
      %2954 = vmatprep.subr.mxu0 %v2818
      %2955 = vmatpush1.msra.mxu0 %v2817
      %2956 = vmatprep.subr.mxu0 %v2820
      %2957 = vmatpush1.msra.mxu0 %v2819
      %2958 = vmatprep.subr.mxu0 %v2822
      %2959 = vmatpush1.msra.mxu0 %v2821
      %2960 = vmatprep.subr.mxu0 %v2824
      %2961 = vmatpush1.msra.mxu0 %v2823
      %2962 = vmatprep.subr.mxu0 %v2826
      %2963 = vmatpush1.msra.mxu0 %v2825
      %2964 = vmatprep.subr.mxu0 %v2828
      %2965 = vmatpush1.msra.mxu0 %v2827
      %2966 = vmatprep.mubr.f32.mxu0 %v2764
      %2967 = vmatmul.mubr.f32.gmra.mrb[0].mxu0 %v2755
      %v2968 = vpop.f32.mrb[0].mxu0
      %v2969 = vadd.f32 0.0, %v2968
      %v2970 = vpop.f32.mrb[0].mxu0
      %v2971 = vadd.f32 0.0, %v2970
      %2972 = vdwg.mxu0
      %v2973 = vmul.f32 %v2969, 0.0009765625
      %v2974 = vmul.f32 %v2971, 0.0009765625
      %v2975 = vmul.f32 %v2900, %v2900
      %v2976 = vmul.f32 %v2901, %v2901
      %v2977 = vsub.f32 %v2973, %v2975
      %v2978 = vsub.f32 %v2974, %v2976
      %v2979 = vmax.f32 %v2977, 0.0
      %v2980 = vmax.f32 %v2978, 0.0
      %v2981 = vlaneseq
      %v2982 = vshrl.u32 %v2981, 7
      %v2983 = vsub.s32 0, %v2982
      %v2984 = vrot.slane %v2900, %v2983
      %v2985 = vlaneseq
      %v2986 = vshrl.u32 %v2985, 7
      %v2987 = vsub.s32 0, %v2986
      %v2988 = vrot.slane %v2901, %v2987
      %v2989 = vsub.f32 %v2713, %v2984
      %v2990 = vsub.f32 %v2714, %v2988
      %v2991 = vsub.f32 %v2715, %v2984
      %v2992 = vsub.f32 %v2716, %v2988
      %v2993 = vsub.f32 %v2717, %v2984
      %v2994 = vsub.f32 %v2718, %v2988
      %v2995 = vsub.f32 %v2719, %v2984
      %v2996 = vsub.f32 %v2720, %v2988
      %v2997 = vadd.f32 %v2979, 1e-05
      %v2998 = vadd.f32 %v2980, 1e-05
      %v2999 = vrsqrt.pop %v2997
      %v3000 = vrsqrt.pop %v2998
      %v3001 = vlaneseq
      %v3002 = vshrl.u32 %v3001, 7
      %v3003 = vsub.s32 0, %v3002
      %v3004 = vrot.slane %v2999, %v3003
      %v3005 = vlaneseq
      %v3006 = vshrl.u32 %v3005, 7
      %v3007 = vsub.s32 0, %v3006
      %v3008 = vrot.slane %v3000, %v3007
      %v3009 = vmul.f32 %v2989, %v3004
      %v3010 = vmul.f32 %v2990, %v3008
      %v3011 = vmul.f32 %v2991, %v3004
      %v3012 = vmul.f32 %v2992, %v3008
      %v3013 = vmul.f32 %v2993, %v3004
      %v3014 = vmul.f32 %v2994, %v3008
      %v3015 = vmul.f32 %v2995, %v3004
      %v3016 = vmul.f32 %v2996, %v3008
      %v3017 = vpack.c.bf16 %v986, %v985
      %v3018 = vpack.c.bf16 %v988, %v987
      %v3019 = vld [vmem:[%s10] sm:$0xff]
      %v3020 = vld [vmem:[%s10 + $0x8] sm:$0xff]
      %v3021 = vld [vmem:[%s10 + $0x10] sm:$0xff]
      %v3022 = vld [vmem:[%s10 + $0x18] sm:$0xff]
      %v3023 = vld [vmem:[%s10 + $0x20] sm:$0xff]
      %v3024 = vld [vmem:[%s10 + $0x28] sm:$0xff]
      %v3025 = vld [vmem:[%s10 + $0x30] sm:$0xff]
      %v3026 = vld [vmem:[%s10 + $0x38] sm:$0xff]
      %v3027 = vld [vmem:[%s10 + $0x40] sm:$0xff]
      %v3028 = vld [vmem:[%s10 + $0x48] sm:$0xff]
      %v3029 = vld [vmem:[%s10 + $0x50] sm:$0xff]
      %v3030 = vld [vmem:[%s10 + $0x58] sm:$0xff]
      %v3031 = vld [vmem:[%s10 + $0x60] sm:$0xff]
      %v3032 = vld [vmem:[%s10 + $0x68] sm:$0xff]
      %v3033 = vld [vmem:[%s10 + $0x70] sm:$0xff]
      %v3034 = vld [vmem:[%s10 + $0x78] sm:$0xff]
      %v3035 = vld [vmem:[%s11] sm:$0x3]
      %v3037 = vlaneseq
      %v3038 = vshrl.u32 %v3037, 7
      %v3039 = vsub.s32 0, %v3038
      %v3040 = vrot.slane %v3035, %v3039
      %v3041 = vlaneseq
      %v3042 = vshrl.u32 %v3041, 7
      %v3043 = vsub.s32 1, %v3042
      %v3044 = vrot.slane %v3035, %v3043
      %v3063 = vunpack.c.l.b16 %v3019
      %v3064 = vunpack.c.h.b16 %v3019
      %v3065 = vunpack.c.l.b16 %v3020
      %v3066 = vunpack.c.h.b16 %v3020
      %v3067 = vunpack.c.l.b16 %v3021
      %v3068 = vunpack.c.h.b16 %v3021
      %v3069 = vunpack.c.l.b16 %v3022
      %v3070 = vunpack.c.h.b16 %v3022
      %v3071 = vunpack.c.l.b16 %v3023
      %v3072 = vunpack.c.h.b16 %v3023
      %v3073 = vunpack.c.l.b16 %v3024
      %v3074 = vunpack.c.h.b16 %v3024
      %v3075 = vunpack.c.l.b16 %v3025
      %v3076 = vunpack.c.h.b16 %v3025
      %v3077 = vunpack.c.l.b16 %v3026
      %v3078 = vunpack.c.h.b16 %v3026
      %v3079 = vunpack.c.l.b16 %v3027
      %v3080 = vunpack.c.h.b16 %v3027
      %v3081 = vunpack.c.l.b16 %v3028
      %v3082 = vunpack.c.h.b16 %v3028
      %v3083 = vunpack.c.l.b16 %v3029
      %v3084 = vunpack.c.h.b16 %v3029
      %v3085 = vunpack.c.l.b16 %v3030
      %v3086 = vunpack.c.h.b16 %v3030
      %v3087 = vunpack.c.l.b16 %v3031
      %v3088 = vunpack.c.h.b16 %v3031
      %v3089 = vunpack.c.l.b16 %v3032
      %v3090 = vunpack.c.h.b16 %v3032
      %v3091 = vunpack.c.l.b16 %v3033
      %v3092 = vunpack.c.h.b16 %v3033
      %v3093 = vunpack.c.l.b16 %v3034
      %v3094 = vunpack.c.h.b16 %v3034
      %v3095 = vpack.c.b16 %v3065, %v3063
      %v3096 = vpack.c.b16 %v3066, %v3064
      %v3097 = vpack.c.b16 %v3069, %v3067
      %v3098 = vpack.c.b16 %v3070, %v3068
      %v3099 = vpack.c.b16 %v3073, %v3071
      %v3100 = vpack.c.b16 %v3074, %v3072
      %v3101 = vpack.c.b16 %v3077, %v3075
      %v3102 = vpack.c.b16 %v3078, %v3076
      %v3103 = vpack.c.b16 %v3081, %v3079
      %v3104 = vpack.c.b16 %v3082, %v3080
      %v3105 = vpack.c.b16 %v3085, %v3083
      %v3106 = vpack.c.b16 %v3086, %v3084
      %v3107 = vpack.c.b16 %v3089, %v3087
      %v3108 = vpack.c.b16 %v3090, %v3088
      %v3109 = vpack.c.b16 %v3093, %v3091
      %v3110 = vpack.c.b16 %v3094, %v3092
      %3127 = vmatprep.subr.bf16.mxu0 %v3096
      %3128 = vmatpush1.bf16.msra.mxu0 %v3095
      %3129 = vmatprep.subr.bf16.mxu0 %v3098
      %3130 = vmatpush1.bf16.msra.mxu0 %v3097
      %3131 = vmatprep.subr.bf16.mxu0 %v3100
      %3132 = vmatpush1.bf16.msra.mxu0 %v3099
      %3133 = vmatprep.subr.bf16.mxu0 %v3102
      %3134 = vmatpush1.bf16.msra.mxu0 %v3101
      %3135 = vmatprep.subr.bf16.mxu0 %v3104
      %3136 = vmatpush1.bf16.msra.mxu0 %v3103
      %3137 = vmatprep.subr.bf16.mxu0 %v3106
      %3138 = vmatpush1.bf16.msra.mxu0 %v3105
      %3139 = vmatprep.subr.bf16.mxu0 %v3108
      %3140 = vmatpush1.bf16.msra.mxu0 %v3107
      %3141 = vmatprep.subr.bf16.mxu0 %v3110
      %3142 = vmatpush1.bf16.msra.mxu0 %v3109
      %3143 = vmatprep.subr.bf16.mxu0 0
      %3144 = vmatpush1.bf16.msra.mxu0 0
      %3145 = vmatprep.subr.bf16.mxu0 0
      %3146 = vmatpush1.bf16.msra.mxu0 0
      %3147 = vmatprep.subr.bf16.mxu0 0
      %3148 = vmatpush1.bf16.msra.mxu0 0
      %3149 = vmatprep.subr.bf16.mxu0 0
      %3150 = vmatpush1.bf16.msra.mxu0 0
      %3151 = vmatprep.subr.bf16.mxu0 0
      %3152 = vmatpush1.bf16.msra.mxu0 0
      %3153 = vmatprep.subr.bf16.mxu0 0
      %3154 = vmatpush1.bf16.msra.mxu0 0
      %3155 = vmatprep.subr.bf16.mxu0 0
      %3156 = vmatpush1.bf16.msra.mxu0 0
      %3157 = vmatprep.subr.bf16.mxu0 0
      %3158 = vmatpush1.bf16.msra.mxu0 0
      %3159 = vmatprep.mubr.bf16.mxu0 0
      %3160 = vmatmul.mubr.bf16.gmra.mrb[0].mxu0 %v3017
      %v3161 = vpop.f32.mrb[0].mxu0
      %v3162 = vadd.f32 %v3040, %v3161
      %v3163 = vpop.f32.mrb[0].mxu0
      %v3164 = vadd.f32 %v3044, %v3163
      %v3165 = vpop.f32.mrb[0].mxu0
      %v3166 = vadd.f32 %v3040, %v3165
      %v3167 = vpop.f32.mrb[0].mxu0
      %v3168 = vadd.f32 %v3044, %v3167
      %3169 = vmatprep.mubr.bf16.mxu0 0
      %3170 = vmatmul.mubr.bf16.gmra.mrb[0].mxu0 %v3018
      %v3171 = vpop.f32.mrb[0].mxu0
      %v3172 = vadd.f32 %v3040, %v3171
      %v3173 = vpop.f32.mrb[0].mxu0
      %v3174 = vadd.f32 %v3044, %v3173
      %v3175 = vpop.f32.mrb[0].mxu0
      %v3176 = vadd.f32 %v3040, %v3175
      %v3177 = vpop.f32.mrb[0].mxu0
      %v3178 = vadd.f32 %v3044, %v3177
      %3179 = vdwg.mxu0
      %v3180 = vadd.f32 %v3009, %v3162
      %v3181 = vadd.f32 %v3010, %v3164
      %v3182 = vadd.f32 %v3011, %v3166
      %v3183 = vadd.f32 %v3012, %v3168
      %v3184 = vadd.f32 %v3013, %v3172
      %v3185 = vadd.f32 %v3014, %v3174
      %v3186 = vadd.f32 %v3015, %v3176
      %v3187 = vadd.f32 %v3016, %v3178
      %vm3188 = vcmp.ge.f32.partialorder %v3180, 0.0
      %vm3189 = vcmp.ge.f32.partialorder %v3181, 0.0
      %vm3190 = vcmp.ge.f32.partialorder %v3182, 0.0
      %vm3191 = vcmp.ge.f32.partialorder %v3183, 0.0
      %vm3192 = vcmp.ge.f32.partialorder %v3184, 0.0
      %vm3193 = vcmp.ge.f32.partialorder %v3185, 0.0
      %vm3194 = vcmp.ge.f32.partialorder %v3186, 0.0
      %vm3195 = vcmp.ge.f32.partialorder %v3187, 0.0
      %v3196 = vmul.f32 %v3180, 0.2
      %v3197 = vmul.f32 %v3181, 0.2
      %v3198 = vmul.f32 %v3182, 0.2
      %v3199 = vmul.f32 %v3183, 0.2
      %v3200 = vmul.f32 %v3184, 0.2
      %v3201 = vmul.f32 %v3185, 0.2
      %v3202 = vmul.f32 %v3186, 0.2
      %v3203 = vmul.f32 %v3187, 0.2
      %v3204 = vsel %vm3188, %v3180, %v3196
      %v3205 = vsel %vm3189, %v3181, %v3197
      %v3206 = vsel %vm3190, %v3182, %v3198
      %v3207 = vsel %vm3191, %v3183, %v3199
      %v3208 = vsel %vm3192, %v3184, %v3200
      %v3209 = vsel %vm3193, %v3185, %v3201
      %v3210 = vsel %vm3194, %v3186, %v3202
      %v3211 = vsel %vm3195, %v3187, %v3203
      %3212 = vst [vmem:[%s413] sm:$0xff] %v3204
      %3213 = vst [vmem:[%s413 + $0x8] sm:$0xff] %v3205
      %3214 = vst [vmem:[%s413 + $0x10] sm:$0xff] %v3206
      %3215 = vst [vmem:[%s413 + $0x18] sm:$0xff] %v3207
      %3216 = vst [vmem:[%s413 + $0x20] sm:$0xff] %v3208
      %3217 = vst [vmem:[%s413 + $0x28] sm:$0xff] %v3209
      %3218 = vst [vmem:[%s413 + $0x30] sm:$0xff] %v3210
      %3219 = vst [vmem:[%s413 + $0x38] sm:$0xff] %v3211
      %p3220 = scmp.lt.s32.totalorder %s23, 1
      %s3221 = scalar_select %p3220, %s23, 1
      %s3222 = smul.addr %s3221, 8
      %s3223 = smul.addr %s3222, 8
      %s3224 = scalar_lea.vmem %s12, %s3223
      // Predicated region
      $region69: #{res_nn_up_forward.1} parent=67 // pred_check
        %p3225 = pneg %p298
      $region70: #{res_nn_up_forward.1} parent=67 // pred_check_branch
        %3227 = sbr.rel (%p3225) target = $region72
      $region71: #{res_nn_up_forward.1} parent=67 // pred_region
        _
      $region72: #{res_nn_up_forward.1} parent=67 // pred_fallthru
        _
    $region68: #{res_nn_up_forward.1} parent=5 // pred_fallthru
      _
    %p3228 = scmp.le.s32.totalorder 2, %s18
    // Predicated region
    $region73: #{res_nn_up_forward.1} parent=5 // pred_check
      %p3229 = pneg %p3228
    $region74: #{res_nn_up_forward.1} parent=5 // pred_check_branch
      %3231 = sbr.rel (%p3229) target = $region76
    $region75: #{res_nn_up_forward.1} parent=5 // pred_region
      %s3232 = ssub.s32 %s18, 2
      // Predicated region
      $region77: #{res_nn_up_forward.1} parent=75 // pred_check
        %p3233 = pneg %p304
      $region78: #{res_nn_up_forward.1} parent=75 // pred_check_branch
        %3235 = sbr.rel (%p3233) target = $region80
      $region79: #{res_nn_up_forward.1} parent=75 // pred_region
        %p3236 = scmp.lt.s32.totalorder %s24, 1
        %s3237 = scalar_select %p3236, %s24, 1
        %s3238 = smul.addr %s3237, 8
        %s3239 = smul.addr %s3238, 8
        %s3240 = scalar_lea.vmem %s12, %s3239
      $region80: #{res_nn_up_forward.1} parent=75 // pred_fallthru
        _
    $region76: #{res_nn_up_forward.1} parent=5 // pred_fallthru
      _
  $region6: #{res_nn_up_forward.1} parent=0 // loop_footer
    %s22 = sadd.s32 1, %s18
  $region7: #{res_nn_up_forward.1} parent=0 // loop_footer_branch
    %17 = sbr.rel target = $region3
  $region8: #{res_nn_up_forward.1} parent=0 // loop_exit
    _

</llo_original>
